<compile_context>
chip_gen: v6e
topology: v6e:2x2x1
jax: 0.10.0
libtpu: 0.0.40
codegen_flags: <defaults>
</compile_context>

<pallas_src>
import functools

import jax
import jax.numpy as jnp
from jax.experimental import pallas as pl
from jax.experimental.pallas import tpu as pltpu


# ----------------------------------------------------------------------------
# helpers
# ----------------------------------------------------------------------------
def _round_up(x, m):
    return ((x + m - 1) // m) * m


def _choose_k_tile(K, max_tile=768):
    """Largest multiple-of-128 divisor of K that is <= max_tile; else full K.

    (Block last dim must be a multiple of 128 or equal the full array dim.)"""
    if K <= max_tile:
        return K
    for d in range(max_tile - max_tile % 128, 0, -128):
        if K % d == 0:
            return d
    return K


# ----------------------------------------------------------------------------
# Pallas kernels
# ----------------------------------------------------------------------------
def _matmul_bias_act_kernel(x_ref, w_ref, b_ref, o_ref, acc_ref, *, leaky, slope):
    """Gridded (M, K) matmul with f32 VMEM accumulator; bias + LeakyReLU fused
    into the epilogue of the last K step."""
    k = pl.program_id(1)

    @pl.when(k == 0)
    def _():
        acc_ref[...] = jnp.zeros_like(acc_ref)

    acc_ref[...] += jnp.dot(x_ref[...], w_ref[...],
                            preferred_element_type=jnp.float32)

    @pl.when(k == pl.num_programs(1) - 1)
    def _():
        acc = acc_ref[...] + b_ref[...]            # f32 epilogue (v5e-safe)
        if leaky:
            acc = jnp.where(acc >= 0.0, acc, slope * acc)
        o_ref[...] = acc.astype(o_ref.dtype)


def matmul_bias_act(x, w, b, *, leaky=True, slope=0.2, out_dtype=jnp.bfloat16):
    """x: (M, K) bf16, w: (K, N) bf16, b: (N,) f32 -> (M, N) out_dtype.

    Grid = (M tiles [parallel], K tiles [arbitrary]); output block is resident
    across the K axis, accumulated in an f32 VMEM scratch."""
    M, K = x.shape
    Kw, N = w.shape
    assert Kw == K and b.shape == (N,)
    assert N % 128 == 0, "pad Cout to a multiple of 128 for lane-dense stores"

    TM = 256 if M >= 256 else _round_up(M, 8)
    Mp = _round_up(M, TM)
    if Mp != M:
        x = jnp.pad(x, ((0, Mp - M), (0, 0)))
    TK = _choose_k_tile(K)
    grid = (Mp // TM, K // TK)

    elt_in = x.dtype.itemsize
    elt_out = jnp.dtype(out_dtype).itemsize
    cost = pl.CostEstimate(
        flops=2 * Mp * K * N,
        transcendentals=0,
        bytes_accessed=Mp * K * elt_in + K * N * elt_in + N * 4 + Mp * N * elt_out,
    )
    vmem_needed = (2 * (TM * TK * elt_in + TK * N * elt_in + N * 4 + TM * N * elt_out)
                   + TM * N * 4)
    vmem_limit = int(min(64 * 2 ** 20, max(16 * 2 ** 20, 4 * vmem_needed)))

    out = pl.pallas_call(
        functools.partial(_matmul_bias_act_kernel, leaky=leaky, slope=slope),
        out_shape=jax.ShapeDtypeStruct((Mp, N), out_dtype),
        grid_spec=pltpu.PrefetchScalarGridSpec(
            num_scalar_prefetch=0,
            grid=grid,
            in_specs=[
                pl.BlockSpec((TM, TK), lambda i, k: (i, k)),
                pl.BlockSpec((TK, N), lambda i, k: (k, 0)),
                pl.BlockSpec((1, N), lambda i, k: (0, 0)),
            ],
            out_specs=pl.BlockSpec((TM, N), lambda i, k: (i, 0)),
            scratch_shapes=[pltpu.VMEM((TM, N), jnp.float32)],
        ),
        compiler_params=pltpu.CompilerParams(
            dimension_semantics=("parallel", "arbitrary"),
            vmem_limit_bytes=vmem_limit,
        ),
        cost_estimate=cost,
    )(x, w, b.astype(jnp.float32).reshape(1, N))
    if Mp != M:
        out = out[:M]
    return out


def _pool_linear_kernel(x_ref, w_ref, b_ref, o_ref):
    """AdaptiveAvgPool2d(1) + Flatten + Linear fused (tiny, single block)."""
    pooled = jnp.mean(x_ref[...].astype(jnp.float32), axis=1)           # (N, C)
    out = jnp.dot(pooled, w_ref[...], preferred_element_type=jnp.float32)
    o_ref[...] = (out + b_ref[...]).astype(o_ref.dtype)


def pool_linear(x3, w, b):
    """x3: (N, HW, C) bf16, w: (C, Nout) f32, b: (Nout,) f32 -> (N, Nout) f32."""
    # TODO(synk): fold this into the conv6 epilogue to save one HBM round-trip
    # of the (N, HW, 256) activation (secondary win at these sizes).
    N, HW, C = x3.shape
    Nout = w.shape[1]
    return pl.pallas_call(
        _pool_linear_kernel,
        out_shape=jax.ShapeDtypeStruct((N, Nout), jnp.float32),
        in_specs=[
            pl.BlockSpec((N, HW, C), lambda: (0, 0, 0)),
            pl.BlockSpec((C, Nout), lambda: (0, 0)),
            pl.BlockSpec((1, Nout), lambda: (0, 0)),
        ],
        out_specs=pl.BlockSpec((N, Nout), lambda: (0, 0)),
    )(x3, w.astype(jnp.float32), b.astype(jnp.float32).reshape(1, Nout))


# ----------------------------------------------------------------------------
# Conv layer = im2col (bf16, JAX glue) + Pallas fused matmul/bias/LeakyReLU
# ----------------------------------------------------------------------------
def conv2d_sn_lrelu(x_nhwc, w_oihw, b, *, stride):
    """3x3 conv, padding=1, given stride, then LeakyReLU(0.2).
    x_nhwc: (N, H, W, Cin) bf16; w_oihw: (Cout, Cin, 3, 3) f32 (spectral-normed)."""
    N, H, W, C = x_nhwc.shape
    Cout = w_oihw.shape[0]
    k, pad = 3, 1
    Ho = (H + 2 * pad - k) // stride + 1
    Wo = (W + 2 * pad - k) // stride + 1

    xp = jnp.pad(x_nhwc, ((0, 0), (pad, pad), (pad, pad), (0, 0)))
    cols = []
    for dh in range(k):
        for dw in range(k):
            cols.append(
                xp[:, dh:dh + stride * Ho:stride, dw:dw + stride * Wo:stride, :]
            )  # each: (N, Ho, Wo, C)
    # (N, Ho, Wo, 9, C) -> (N*Ho*Wo, 9*C); column order = (kh, kw, cin)
    patches = jnp.stack(cols, axis=3).reshape(N * Ho * Wo, k * k * C)
    patches = patches.astype(jnp.bfloat16)

    # weight to matching (kh, kw, cin) x Cout layout; pad Cout to 128 multiple
    # for lane-dense stores (zero-filled columns, sliced off below).
    w_mat = jnp.transpose(w_oihw, (2, 3, 1, 0)).reshape(k * k * C, Cout)
    Cout_p = _round_up(Cout, 128)
    b_p = b.astype(jnp.float32)
    if Cout_p != Cout:
        w_mat = jnp.pad(w_mat, ((0, 0), (0, Cout_p - Cout)))
        b_p = jnp.pad(b_p, (0, Cout_p - Cout))
    w_mat = w_mat.astype(jnp.bfloat16)

    out = matmul_bias_act(patches, w_mat, b_p, leaky=True, slope=0.2,
                          out_dtype=jnp.bfloat16)
    out = out.reshape(N, Ho, Wo, Cout_p)
    if Cout_p != Cout:
        out = out[..., :Cout]                    # fuses into next layer's im2col
    return out


def spectral_normalize(w_oihw, n_power_iters=3, eps=1e-12):
    """W / sigma(W.reshape(Cout, -1)) via a few power-iteration matvecs.
    # TODO(synk): PyTorch keeps a persistent randomly-initialized `u` updated
    # one power step per forward; here sigma is re-estimated from a fixed start.
    """
    w2d = w_oihw.reshape(w_oihw.shape[0], -1).astype(jnp.float32)
    co = w2d.shape[0]
    u = jnp.full((co,), 1.0 / jnp.sqrt(co), jnp.float32)

    def step(_, u):
        v = w2d.T @ u
        v = v / (jnp.linalg.norm(v) + eps)
        u = w2d @ v
        u = u / (jnp.linalg.norm(u) + eps)
        return u

    u = jax.lax.fori_loop(0, n_power_iters, step, u)
    v = w2d.T @ u
    v = v / (jnp.linalg.norm(v) + eps)
    sigma = u @ (w2d @ v)
    return w_oihw / sigma


# ----------------------------------------------------------------------------
# Parameter construction (deterministic, synthetic)
# ----------------------------------------------------------------------------
def init_params(key, input_channels=3):
    conv_dims = [
        (64, input_channels),  # conv1, stride 1
        (64, 64),              # conv2, stride 2
        (128, 64),             # conv3, stride 1
        (128, 128),            # conv4, stride 2
        (256, 128),            # conv5, stride 1
        (256, 256),            # conv6, stride 2
    ]
    conv_params = []
    for i, (co, ci) in enumerate(conv_dims):
        kw, kb = jax.random.split(jax.random.fold_in(key, i))
        w = jax.random.normal(kw, (co, ci, 3, 3), jnp.float32) * 0.05
        b = jax.random.normal(kb, (co,), jnp.float32) * 0.01
        conv_params.append((w, b))
    klw, klb = jax.random.split(jax.random.fold_in(key, 100))
    lin_w = jax.random.normal(klw, (1, 256), jnp.float32) * 0.05  # torch Linear: (out, in)
    lin_b = jax.random.normal(klb, (1,), jnp.float32) * 0.01
    return conv_params, (lin_w, lin_b)


# ----------------------------------------------------------------------------
# Full forward pass
# ----------------------------------------------------------------------------
def discriminator_forward(x_nchw, conv_params, linear_params):
    x = jnp.transpose(x_nchw, (0, 2, 3, 1)).astype(jnp.bfloat16)  # NCHW -> NHWC
    strides = [1, 2, 1, 2, 1, 2]
    for (w, b), s in zip(conv_params, strides):
        w_sn = spectral_normalize(w)
        x = conv2d_sn_lrelu(x, w_sn, b, stride=s)
    N, Ho, Wo, C = x.shape
    x3 = x.reshape(N, Ho * Wo, C)            # spatial positions collapsed
    lin_w, lin_b = linear_params
    return pool_linear(x3, lin_w.T, lin_b)   # (N, 1) f32


discriminator_forward_jit = jax.jit(discriminator_forward)


if __name__ == "__main__":
    key = jax.random.PRNGKey(0)
    k_params, k_input = jax.random.split(key)

    conv_params, linear_params = init_params(k_params, input_channels=3)

    # small example input: batch=2, channels=3 (RGB), spatial=16x16 (NCHW)
    x = jax.random.normal(k_input, (2, 3, 16, 16), jnp.float32)

    out = discriminator_forward_jit(x, conv_params, linear_params)
    out = jax.block_until_ready(out)
    assert out.shape == (2, 1), out.shape
    assert out.dtype == jnp.float32
    assert bool(jnp.all(jnp.isfinite(out)))
    print("KERNEL_OK")
</pallas_src>

<mosaic_0001>
module attributes {stable_mosaic.version = 11 : i64} {
  func.func @_matmul_bias_act_kernel(%arg0: i32, %arg1: i32, %arg2: memref<256x27xbf16, #tpu.memory_space<vmem>>, %arg3: memref<27x128xbf16, #tpu.memory_space<vmem>>, %arg4: memref<1x128xf32, #tpu.memory_space<vmem>>, %arg5: memref<256x128xbf16, #tpu.memory_space<vmem>>, %arg6: memref<256x128xf32, #tpu.memory_space<vmem>>) attributes {dimension_semantics = [#tpu.dimension_semantics<parallel>, #tpu.dimension_semantics<arbitrary>], iteration_bounds = array<i64: 2, 1>, scalar_prefetch = 0 : i64, scratch_operands = 1 : i64, tpu.core_type = #tpu.core_type<tc>, window_params = [{transform_indices = @transform_0, window_bounds = array<i64: 256, 27>}, {transform_indices = @transform_1, window_bounds = array<i64: 27, 128>}, {pipeline_mode = #tpu.pipeline_mode<synchronous>, transform_indices = @transform_2, window_bounds = array<i64: 1, 128>}, {transform_indices = @transform_3, window_bounds = array<i64: 256, 128>}]} {
    %c0_i32 = arith.constant 0 : i32
    %0 = arith.cmpi eq, %arg1, %c0_i32 : i32
    %1 = arith.extui %0 : i1 to i32
    %c0_i32_0 = arith.constant 0 : i32
    %2 = arith.cmpi ne, %1, %c0_i32_0 : i32
    scf.if %2 {
      %cst_10 = arith.constant 0.000000e+00 : f32
      %12 = vector.broadcast %cst_10 : f32 to vector<256x128xf32>
      %c0_11 = arith.constant 0 : index
      %c0_12 = arith.constant 0 : index
      %13 = vector.load %arg6[%c0_11, %c0_12] : memref<256x128xf32, #tpu.memory_space<vmem>>, vector<256x128xf32>
      tpu.vector_store %arg6[%c0_11, %c0_12], %12 {strides = array<i32>} : memref<256x128xf32, #tpu.memory_space<vmem>>, vector<256x128xf32>,
    } else {
    }
    %c0 = arith.constant 0 : index
    %c0_1 = arith.constant 0 : index
    %3 = vector.load %arg6[%c0, %c0_1] : memref<256x128xf32, #tpu.memory_space<vmem>>, vector<256x128xf32>
    %c0_2 = arith.constant 0 : index
    %c0_3 = arith.constant 0 : index
    %4 = vector.load %arg2[%c0_2, %c0_3] : memref<256x27xbf16, #tpu.memory_space<vmem>>, vector<256x27xbf16>
    %c0_4 = arith.constant 0 : index
    %c0_5 = arith.constant 0 : index
    %5 = vector.load %arg3[%c0_4, %c0_5] : memref<27x128xbf16, #tpu.memory_space<vmem>>, vector<27x128xbf16>
    %cst = arith.constant dense<0.000000e+00> : vector<256x128xf32>
    %6 = tpu.matmul %4, %5, %cst {dimension_numbers = #tpu.dot_dimension_numbers<[1], [0], [0], [1], [0, 0, 1, 1], [], []>} : vector<256x27xbf16>, vector<27x128xbf16>, vector<256x128xf32> -> vector<256x128xf32>
    %7 = arith.addf %3, %6 : vector<256x128xf32>
    %c0_6 = arith.constant 0 : index
    %c0_7 = arith.constant 0 : index
    %8 = vector.load %arg6[%c0_6, %c0_7] : memref<256x128xf32, #tpu.memory_space<vmem>>, vector<256x128xf32>
    tpu.vector_store %arg6[%c0_6, %c0_7], %7 {strides = array<i32>} : memref<256x128xf32, #tpu.memory_space<vmem>>, vector<256x128xf32>,
    %c0_i32_8 = arith.constant 0 : i32
    %9 = arith.cmpi eq, %arg1, %c0_i32_8 : i32
    %10 = arith.extui %9 : i1 to i32
    %c0_i32_9 = arith.constant 0 : i32
    %11 = arith.cmpi ne, %10, %c0_i32_9 : i32
    scf.if %11 {
      %c0_10 = arith.constant 0 : index
      %c0_11 = arith.constant 0 : index
      %12 = vector.load %arg6[%c0_10, %c0_11] : memref<256x128xf32, #tpu.memory_space<vmem>>, vector<256x128xf32>
      %c0_12 = arith.constant 0 : index
      %c0_13 = arith.constant 0 : index
      %13 = vector.load %arg4[%c0_12, %c0_13] : memref<1x128xf32, #tpu.memory_space<vmem>>, vector<1x128xf32>
      %14 = vector.broadcast %13 : vector<1x128xf32> to vector<256x128xf32>
      %15 = arith.addf %12, %14 : vector<256x128xf32>
      %cst_14 = arith.constant 0.000000e+00 : f32
      %16 = vector.broadcast %cst_14 : f32 to vector<256x128xf32>
      %17 = arith.cmpf oge, %15, %16 : vector<256x128xf32>
      %cst_15 = arith.constant 2.000000e-01 : f32
      %18 = vector.broadcast %cst_15 : f32 to vector<256x128xf32>
      %19 = arith.mulf %18, %15 : vector<256x128xf32>
      %20 = arith.select %17, %15, %19 : vector<256x128xi1>, vector<256x128xf32>
      %21 = arith.truncf %20 : vector<256x128xf32> to vector<256x128xbf16>
      %c0_16 = arith.constant 0 : index
      %c0_17 = arith.constant 0 : index
      %22 = vector.load %arg5[%c0_16, %c0_17] : memref<256x128xbf16, #tpu.memory_space<vmem>>, vector<256x128xbf16>
      tpu.vector_store %arg5[%c0_16, %c0_17], %21 {strides = array<i32>} : memref<256x128xbf16, #tpu.memory_space<vmem>>, vector<256x128xbf16>,
    } else {
    }
    return
  }
  func.func @transform_0(%arg0: i32, %arg1: i32) -> (i32, i32) {
    %c0_i32 = arith.constant 0 : i32
    return %arg0, %arg1 : i32, i32
  }
  func.func @transform_1(%arg0: i32, %arg1: i32) -> (i32, i32) {
    %c0_i32 = arith.constant 0 : i32
    %c0_i32_0 = arith.constant 0 : i32
    return %arg1, %c0_i32 : i32, i32
  }
  func.func @transform_2(%arg0: i32, %arg1: i32) -> (i32, i32) {
    %c0_i32 = arith.constant 0 : i32
    %c0_i32_0 = arith.constant 0 : i32
    %c0_i32_1 = arith.constant 0 : i32
    return %c0_i32, %c0_i32_0 : i32, i32
  }
  func.func @transform_3(%arg0: i32, %arg1: i32) -> (i32, i32) {
    %c0_i32 = arith.constant 0 : i32
    %c0_i32_0 = arith.constant 0 : i32
    return %arg0, %c0_i32 : i32, i32
  }
}

module attributes {stable_mosaic.version = 11 : i64} {
  func.func @_matmul_bias_act_kernel(%arg0: i32, %arg1: i32, %arg2: memref<128x576xbf16, #tpu.memory_space<vmem>>, %arg3: memref<576x128xbf16, #tpu.memory_space<vmem>>, %arg4: memref<1x128xf32, #tpu.memory_space<vmem>>, %arg5: memref<128x128xbf16, #tpu.memory_space<vmem>>, %arg6: memref<128x128xf32, #tpu.memory_space<vmem>>) attributes {dimension_semantics = [#tpu.dimension_semantics<parallel>, #tpu.dimension_semantics<arbitrary>], iteration_bounds = array<i64: 1, 1>, scalar_prefetch = 0 : i64, scratch_operands = 1 : i64, tpu.core_type = #tpu.core_type<tc>, window_params = [{transform_indices = @transform_0, window_bounds = array<i64: 128, 576>}, {transform_indices = @transform_1, window_bounds = array<i64: 576, 128>}, {pipeline_mode = #tpu.pipeline_mode<synchronous>, transform_indices = @transform_2, window_bounds = array<i64: 1, 128>}, {transform_indices = @transform_3, window_bounds = array<i64: 128, 128>}]} {
    %c0_i32 = arith.constant 0 : i32
    %0 = arith.cmpi eq, %arg1, %c0_i32 : i32
    %1 = arith.extui %0 : i1 to i32
    %c0_i32_0 = arith.constant 0 : i32
    %2 = arith.cmpi ne, %1, %c0_i32_0 : i32
    scf.if %2 {
      %cst_10 = arith.constant 0.000000e+00 : f32
      %12 = vector.broadcast %cst_10 : f32 to vector<128x128xf32>
      %c0_11 = arith.constant 0 : index
      %c0_12 = arith.constant 0 : index
      %13 = vector.load %arg6[%c0_11, %c0_12] : memref<128x128xf32, #tpu.memory_space<vmem>>, vector<128x128xf32>
      tpu.vector_store %arg6[%c0_11, %c0_12], %12 {strides = array<i32>} : memref<128x128xf32, #tpu.memory_space<vmem>>, vector<128x128xf32>,
    } else {
    }
    %c0 = arith.constant 0 : index
    %c0_1 = arith.constant 0 : index
    %3 = vector.load %arg6[%c0, %c0_1] : memref<128x128xf32, #tpu.memory_space<vmem>>, vector<128x128xf32>
    %c0_2 = arith.constant 0 : index
    %c0_3 = arith.constant 0 : index
    %4 = vector.load %arg2[%c0_2, %c0_3] : memref<128x576xbf16, #tpu.memory_space<vmem>>, vector<128x576xbf16>
    %c0_4 = arith.constant 0 : index
    %c0_5 = arith.constant 0 : index
    %5 = vector.load %arg3[%c0_4, %c0_5] : memref<576x128xbf16, #tpu.memory_space<vmem>>, vector<576x128xbf16>
    %cst = arith.constant dense<0.000000e+00> : vector<128x128xf32>
    %6 = tpu.matmul %4, %5, %cst {dimension_numbers = #tpu.dot_dimension_numbers<[1], [0], [0], [1], [0, 0, 1, 1], [], []>} : vector<128x576xbf16>, vector<576x128xbf16>, vector<128x128xf32> -> vector<128x128xf32>
    %7 = arith.addf %3, %6 : vector<128x128xf32>
    %c0_6 = arith.constant 0 : index
    %c0_7 = arith.constant 0 : index
    %8 = vector.load %arg6[%c0_6, %c0_7] : memref<128x128xf32, #tpu.memory_space<vmem>>, vector<128x128xf32>
    tpu.vector_store %arg6[%c0_6, %c0_7], %7 {strides = array<i32>} : memref<128x128xf32, #tpu.memory_space<vmem>>, vector<128x128xf32>,
    %c0_i32_8 = arith.constant 0 : i32
    %9 = arith.cmpi eq, %arg1, %c0_i32_8 : i32
    %10 = arith.extui %9 : i1 to i32
    %c0_i32_9 = arith.constant 0 : i32
    %11 = arith.cmpi ne, %10, %c0_i32_9 : i32
    scf.if %11 {
      %c0_10 = arith.constant 0 : index
      %c0_11 = arith.constant 0 : index
      %12 = vector.load %arg6[%c0_10, %c0_11] : memref<128x128xf32, #tpu.memory_space<vmem>>, vector<128x128xf32>
      %c0_12 = arith.constant 0 : index
      %c0_13 = arith.constant 0 : index
      %13 = vector.load %arg4[%c0_12, %c0_13] : memref<1x128xf32, #tpu.memory_space<vmem>>, vector<1x128xf32>
      %14 = vector.broadcast %13 : vector<1x128xf32> to vector<128x128xf32>
      %15 = arith.addf %12, %14 : vector<128x128xf32>
      %cst_14 = arith.constant 0.000000e+00 : f32
      %16 = vector.broadcast %cst_14 : f32 to vector<128x128xf32>
      %17 = arith.cmpf oge, %15, %16 : vector<128x128xf32>
      %cst_15 = arith.constant 2.000000e-01 : f32
      %18 = vector.broadcast %cst_15 : f32 to vector<128x128xf32>
      %19 = arith.mulf %18, %15 : vector<128x128xf32>
      %20 = arith.select %17, %15, %19 : vector<128x128xi1>, vector<128x128xf32>
      %21 = arith.truncf %20 : vector<128x128xf32> to vector<128x128xbf16>
      %c0_16 = arith.constant 0 : index
      %c0_17 = arith.constant 0 : index
      %22 = vector.load %arg5[%c0_16, %c0_17] : memref<128x128xbf16, #tpu.memory_space<vmem>>, vector<128x128xbf16>
      tpu.vector_store %arg5[%c0_16, %c0_17], %21 {strides = array<i32>} : memref<128x128xbf16, #tpu.memory_space<vmem>>, vector<128x128xbf16>,
    } else {
    }
    return
  }
  func.func @transform_0(%arg0: i32, %arg1: i32) -> (i32, i32) {
    %c0_i32 = arith.constant 0 : i32
    return %arg0, %arg1 : i32, i32
  }
  func.func @transform_1(%arg0: i32, %arg1: i32) -> (i32, i32) {
    %c0_i32 = arith.constant 0 : i32
    %c0_i32_0 = arith.constant 0 : i32
    return %arg1, %c0_i32 : i32, i32
  }
  func.func @transform_2(%arg0: i32, %arg1: i32) -> (i32, i32) {
    %c0_i32 = arith.constant 0 : i32
    %c0_i32_0 = arith.constant 0 : i32
    %c0_i32_1 = arith.constant 0 : i32
    return %c0_i32, %c0_i32_0 : i32, i32
  }
  func.func @transform_3(%arg0: i32, %arg1: i32) -> (i32, i32) {
    %c0_i32 = arith.constant 0 : i32
    %c0_i32_0 = arith.constant 0 : i32
    return %arg0, %c0_i32 : i32, i32
  }
}

module attributes {stable_mosaic.version = 11 : i64} {
  func.func @_matmul_bias_act_kernel(%arg0: i32, %arg1: i32, %arg2: memref<32x384xbf16, #tpu.memory_space<vmem>>, %arg3: memref<384x128xbf16, #tpu.memory_space<vmem>>, %arg4: memref<1x128xf32, #tpu.memory_space<vmem>>, %arg5: memref<32x128xbf16, #tpu.memory_space<vmem>>, %arg6: memref<32x128xf32, #tpu.memory_space<vmem>>) attributes {dimension_semantics = [#tpu.dimension_semantics<parallel>, #tpu.dimension_semantics<arbitrary>], iteration_bounds = array<i64: 1, 3>, scalar_prefetch = 0 : i64, scratch_operands = 1 : i64, tpu.core_type = #tpu.core_type<tc>, window_params = [{transform_indices = @transform_0, window_bounds = array<i64: 32, 384>}, {transform_indices = @transform_1, window_bounds = array<i64: 384, 128>}, {pipeline_mode = #tpu.pipeline_mode<synchronous>, transform_indices = @transform_2, window_bounds = array<i64: 1, 128>}, {transform_indices = @transform_3, window_bounds = array<i64: 32, 128>}]} {
    %c0_i32 = arith.constant 0 : i32
    %0 = arith.cmpi eq, %arg1, %c0_i32 : i32
    %1 = arith.extui %0 : i1 to i32
    %c0_i32_0 = arith.constant 0 : i32
    %2 = arith.cmpi ne, %1, %c0_i32_0 : i32
    scf.if %2 {
      %cst_9 = arith.constant 0.000000e+00 : f32
      %12 = vector.broadcast %cst_9 : f32 to vector<32x128xf32>
      %c0_10 = arith.constant 0 : index
      %c0_11 = arith.constant 0 : index
      %13 = vector.load %arg6[%c0_10, %c0_11] : memref<32x128xf32, #tpu.memory_space<vmem>>, vector<32x128xf32>
      tpu.vector_store %arg6[%c0_10, %c0_11], %12 {strides = array<i32>} : memref<32x128xf32, #tpu.memory_space<vmem>>, vector<32x128xf32>,
    } else {
    }
    %c0 = arith.constant 0 : index
    %c0_1 = arith.constant 0 : index
    %3 = vector.load %arg6[%c0, %c0_1] : memref<32x128xf32, #tpu.memory_space<vmem>>, vector<32x128xf32>
    %c0_2 = arith.constant 0 : index
    %c0_3 = arith.constant 0 : index
    %4 = vector.load %arg2[%c0_2, %c0_3] : memref<32x384xbf16, #tpu.memory_space<vmem>>, vector<32x384xbf16>
    %c0_4 = arith.constant 0 : index
    %c0_5 = arith.constant 0 : index
    %5 = vector.load %arg3[%c0_4, %c0_5] : memref<384x128xbf16, #tpu.memory_space<vmem>>, vector<384x128xbf16>
    %cst = arith.constant dense<0.000000e+00> : vector<32x128xf32>
    %6 = tpu.matmul %4, %5, %cst {dimension_numbers = #tpu.dot_dimension_numbers<[1], [0], [0], [1], [0, 0, 1, 1], [], []>} : vector<32x384xbf16>, vector<384x128xbf16>, vector<32x128xf32> -> vector<32x128xf32>
    %7 = arith.addf %3, %6 : vector<32x128xf32>
    %c0_6 = arith.constant 0 : index
    %c0_7 = arith.constant 0 : index
    %8 = vector.load %arg6[%c0_6, %c0_7] : memref<32x128xf32, #tpu.memory_space<vmem>>, vector<32x128xf32>
    tpu.vector_store %arg6[%c0_6, %c0_7], %7 {strides = array<i32>} : memref<32x128xf32, #tpu.memory_space<vmem>>, vector<32x128xf32>,
    %c2_i32 = arith.constant 2 : i32
    %9 = arith.cmpi eq, %arg1, %c2_i32 : i32
    %10 = arith.extui %9 : i1 to i32
    %c0_i32_8 = arith.constant 0 : i32
    %11 = arith.cmpi ne, %10, %c0_i32_8 : i32
    scf.if %11 {
      %c0_9 = arith.constant 0 : index
      %c0_10 = arith.constant 0 : index
      %12 = vector.load %arg6[%c0_9, %c0_10] : memref<32x128xf32, #tpu.memory_space<vmem>>, vector<32x128xf32>
      %c0_11 = arith.constant 0 : index
      %c0_12 = arith.constant 0 : index
      %13 = vector.load %arg4[%c0_11, %c0_12] : memref<1x128xf32, #tpu.memory_space<vmem>>, vector<1x128xf32>
      %14 = vector.broadcast %13 : vector<1x128xf32> to vector<32x128xf32>
      %15 = arith.addf %12, %14 : vector<32x128xf32>
      %cst_13 = arith.constant 0.000000e+00 : f32
      %16 = vector.broadcast %cst_13 : f32 to vector<32x128xf32>
      %17 = arith.cmpf oge, %15, %16 : vector<32x128xf32>
      %cst_14 = arith.constant 2.000000e-01 : f32
      %18 = vector.broadcast %cst_14 : f32 to vector<32x128xf32>
      %19 = arith.mulf %18, %15 : vector<32x128xf32>
      %20 = arith.select %17, %15, %19 : vector<32x128xi1>, vector<32x128xf32>
      %21 = arith.truncf %20 : vector<32x128xf32> to vector<32x128xbf16>
      %c0_15 = arith.constant 0 : index
      %c0_16 = arith.constant 0 : index
      %22 = vector.load %arg5[%c0_15, %c0_16] : memref<32x128xbf16, #tpu.memory_space<vmem>>, vector<32x128xbf16>
      tpu.vector_store %arg5[%c0_15, %c0_16], %21 {strides = array<i32>} : memref<32x128xbf16, #tpu.memory_space<vmem>>, vector<32x128xbf16>,
    } else {
    }
    return
  }
  func.func @transform_0(%arg0: i32, %arg1: i32) -> (i32, i32) {
    %c0_i32 = arith.constant 0 : i32
    return %arg0, %arg1 : i32, i32
  }
  func.func @transform_1(%arg0: i32, %arg1: i32) -> (i32, i32) {
    %c0_i32 = arith.constant 0 : i32
    %c0_i32_0 = arith.constant 0 : i32
    return %arg1, %c0_i32 : i32, i32
  }
  func.func @transform_2(%arg0: i32, %arg1: i32) -> (i32, i32) {
    %c0_i32 = arith.constant 0 : i32
    %c0_i32_0 = arith.constant 0 : i32
    %c0_i32_1 = arith.constant 0 : i32
    return %c0_i32, %c0_i32_0 : i32, i32
  }
  func.func @transform_3(%arg0: i32, %arg1: i32) -> (i32, i32) {
    %c0_i32 = arith.constant 0 : i32
    %c0_i32_0 = arith.constant 0 : i32
    return %arg0, %c0_i32 : i32, i32
  }
}

module attributes {stable_mosaic.version = 11 : i64} {
  func.func @_matmul_bias_act_kernel(%arg0: i32, %arg1: i32, %arg2: memref<32x384xbf16, #tpu.memory_space<vmem>>, %arg3: memref<384x256xbf16, #tpu.memory_space<vmem>>, %arg4: memref<1x256xf32, #tpu.memory_space<vmem>>, %arg5: memref<32x256xbf16, #tpu.memory_space<vmem>>, %arg6: memref<32x256xf32, #tpu.memory_space<vmem>>) attributes {dimension_semantics = [#tpu.dimension_semantics<parallel>, #tpu.dimension_semantics<arbitrary>], iteration_bounds = array<i64: 1, 3>, scalar_prefetch = 0 : i64, scratch_operands = 1 : i64, tpu.core_type = #tpu.core_type<tc>, window_params = [{transform_indices = @transform_0, window_bounds = array<i64: 32, 384>}, {transform_indices = @transform_1, window_bounds = array<i64: 384, 256>}, {pipeline_mode = #tpu.pipeline_mode<synchronous>, transform_indices = @transform_2, window_bounds = array<i64: 1, 256>}, {transform_indices = @transform_3, window_bounds = array<i64: 32, 256>}]} {
    %c0_i32 = arith.constant 0 : i32
    %0 = arith.cmpi eq, %arg1, %c0_i32 : i32
    %1 = arith.extui %0 : i1 to i32
    %c0_i32_0 = arith.constant 0 : i32
    %2 = arith.cmpi ne, %1, %c0_i32_0 : i32
    scf.if %2 {
      %cst_9 = arith.constant 0.000000e+00 : f32
      %12 = vector.broadcast %cst_9 : f32 to vector<32x256xf32>
      %c0_10 = arith.constant 0 : index
      %c0_11 = arith.constant 0 : index
      %13 = vector.load %arg6[%c0_10, %c0_11] : memref<32x256xf32, #tpu.memory_space<vmem>>, vector<32x256xf32>
      tpu.vector_store %arg6[%c0_10, %c0_11], %12 {strides = array<i32>} : memref<32x256xf32, #tpu.memory_space<vmem>>, vector<32x256xf32>,
    } else {
    }
    %c0 = arith.constant 0 : index
    %c0_1 = arith.constant 0 : index
    %3 = vector.load %arg6[%c0, %c0_1] : memref<32x256xf32, #tpu.memory_space<vmem>>, vector<32x256xf32>
    %c0_2 = arith.constant 0 : index
    %c0_3 = arith.constant 0 : index
    %4 = vector.load %arg2[%c0_2, %c0_3] : memref<32x384xbf16, #tpu.memory_space<vmem>>, vector<32x384xbf16>
    %c0_4 = arith.constant 0 : index
    %c0_5 = arith.constant 0 : index
    %5 = vector.load %arg3[%c0_4, %c0_5] : memref<384x256xbf16, #tpu.memory_space<vmem>>, vector<384x256xbf16>
    %cst = arith.constant dense<0.000000e+00> : vector<32x256xf32>
    %6 = tpu.matmul %4, %5, %cst {dimension_numbers = #tpu.dot_dimension_numbers<[1], [0], [0], [1], [0, 0, 1, 1], [], []>} : vector<32x384xbf16>, vector<384x256xbf16>, vector<32x256xf32> -> vector<32x256xf32>
    %7 = arith.addf %3, %6 : vector<32x256xf32>
    %c0_6 = arith.constant 0 : index
    %c0_7 = arith.constant 0 : index
    %8 = vector.load %arg6[%c0_6, %c0_7] : memref<32x256xf32, #tpu.memory_space<vmem>>, vector<32x256xf32>
    tpu.vector_store %arg6[%c0_6, %c0_7], %7 {strides = array<i32>} : memref<32x256xf32, #tpu.memory_space<vmem>>, vector<32x256xf32>,
    %c2_i32 = arith.constant 2 : i32
    %9 = arith.cmpi eq, %arg1, %c2_i32 : i32
    %10 = arith.extui %9 : i1 to i32
    %c0_i32_8 = arith.constant 0 : i32
    %11 = arith.cmpi ne, %10, %c0_i32_8 : i32
    scf.if %11 {
      %c0_9 = arith.constant 0 : index
      %c0_10 = arith.constant 0 : index
      %12 = vector.load %arg6[%c0_9, %c0_10] : memref<32x256xf32, #tpu.memory_space<vmem>>, vector<32x256xf32>
      %c0_11 = arith.constant 0 : index
      %c0_12 = arith.constant 0 : index
      %13 = vector.load %arg4[%c0_11, %c0_12] : memref<1x256xf32, #tpu.memory_space<vmem>>, vector<1x256xf32>
      %14 = vector.broadcast %13 : vector<1x256xf32> to vector<32x256xf32>
      %15 = arith.addf %12, %14 : vector<32x256xf32>
      %cst_13 = arith.constant 0.000000e+00 : f32
      %16 = vector.broadcast %cst_13 : f32 to vector<32x256xf32>
      %17 = arith.cmpf oge, %15, %16 : vector<32x256xf32>
      %cst_14 = arith.constant 2.000000e-01 : f32
      %18 = vector.broadcast %cst_14 : f32 to vector<32x256xf32>
      %19 = arith.mulf %18, %15 : vector<32x256xf32>
      %20 = arith.select %17, %15, %19 : vector<32x256xi1>, vector<32x256xf32>
      %21 = arith.truncf %20 : vector<32x256xf32> to vector<32x256xbf16>
      %c0_15 = arith.constant 0 : index
      %c0_16 = arith.constant 0 : index
      %22 = vector.load %arg5[%c0_15, %c0_16] : memref<32x256xbf16, #tpu.memory_space<vmem>>, vector<32x256xbf16>
      tpu.vector_store %arg5[%c0_15, %c0_16], %21 {strides = array<i32>} : memref<32x256xbf16, #tpu.memory_space<vmem>>, vector<32x256xbf16>,
    } else {
    }
    return
  }
  func.func @transform_0(%arg0: i32, %arg1: i32) -> (i32, i32) {
    %c0_i32 = arith.constant 0 : i32
    return %arg0, %arg1 : i32, i32
  }
  func.func @transform_1(%arg0: i32, %arg1: i32) -> (i32, i32) {
    %c0_i32 = arith.constant 0 : i32
    %c0_i32_0 = arith.constant 0 : i32
    return %arg1, %c0_i32 : i32, i32
  }
  func.func @transform_2(%arg0: i32, %arg1: i32) -> (i32, i32) {
    %c0_i32 = arith.constant 0 : i32
    %c0_i32_0 = arith.constant 0 : i32
    %c0_i32_1 = arith.constant 0 : i32
    return %c0_i32, %c0_i32_0 : i32, i32
  }
  func.func @transform_3(%arg0: i32, %arg1: i32) -> (i32, i32) {
    %c0_i32 = arith.constant 0 : i32
    %c0_i32_0 = arith.constant 0 : i32
    return %arg0, %c0_i32 : i32, i32
  }
}

module attributes {stable_mosaic.version = 11 : i64} {
  func.func @_matmul_bias_act_kernel(%arg0: i32, %arg1: i32, %arg2: memref<8x768xbf16, #tpu.memory_space<vmem>>, %arg3: memref<768x256xbf16, #tpu.memory_space<vmem>>, %arg4: memref<1x256xf32, #tpu.memory_space<vmem>>, %arg5: memref<8x256xbf16, #tpu.memory_space<vmem>>, %arg6: memref<8x256xf32, #tpu.memory_space<vmem>>) attributes {dimension_semantics = [#tpu.dimension_semantics<parallel>, #tpu.dimension_semantics<arbitrary>], iteration_bounds = array<i64: 1, 3>, scalar_prefetch = 0 : i64, scratch_operands = 1 : i64, tpu.core_type = #tpu.core_type<tc>, window_params = [{transform_indices = @transform_0, window_bounds = array<i64: 8, 768>}, {transform_indices = @transform_1, window_bounds = array<i64: 768, 256>}, {pipeline_mode = #tpu.pipeline_mode<synchronous>, transform_indices = @transform_2, window_bounds = array<i64: 1, 256>}, {transform_indices = @transform_3, window_bounds = array<i64: 8, 256>}]} {
    %c0_i32 = arith.constant 0 : i32
    %0 = arith.cmpi eq, %arg1, %c0_i32 : i32
    %1 = arith.extui %0 : i1 to i32
    %c0_i32_0 = arith.constant 0 : i32
    %2 = arith.cmpi ne, %1, %c0_i32_0 : i32
    scf.if %2 {
      %cst_9 = arith.constant 0.000000e+00 : f32
      %12 = vector.broadcast %cst_9 : f32 to vector<8x256xf32>
      %c0_10 = arith.constant 0 : index
      %c0_11 = arith.constant 0 : index
      %13 = vector.load %arg6[%c0_10, %c0_11] : memref<8x256xf32, #tpu.memory_space<vmem>>, vector<8x256xf32>
      tpu.vector_store %arg6[%c0_10, %c0_11], %12 {strides = array<i32>} : memref<8x256xf32, #tpu.memory_space<vmem>>, vector<8x256xf32>,
    } else {
    }
    %c0 = arith.constant 0 : index
    %c0_1 = arith.constant 0 : index
    %3 = vector.load %arg6[%c0, %c0_1] : memref<8x256xf32, #tpu.memory_space<vmem>>, vector<8x256xf32>
    %c0_2 = arith.constant 0 : index
    %c0_3 = arith.constant 0 : index
    %4 = vector.load %arg2[%c0_2, %c0_3] : memref<8x768xbf16, #tpu.memory_space<vmem>>, vector<8x768xbf16>
    %c0_4 = arith.constant 0 : index
    %c0_5 = arith.constant 0 : index
    %5 = vector.load %arg3[%c0_4, %c0_5] : memref<768x256xbf16, #tpu.memory_space<vmem>>, vector<768x256xbf16>
    %cst = arith.constant dense<0.000000e+00> : vector<8x256xf32>
    %6 = tpu.matmul %4, %5, %cst {dimension_numbers = #tpu.dot_dimension_numbers<[1], [0], [0], [1], [0, 0, 1, 1], [], []>} : vector<8x768xbf16>, vector<768x256xbf16>, vector<8x256xf32> -> vector<8x256xf32>
    %7 = arith.addf %3, %6 : vector<8x256xf32>
    %c0_6 = arith.constant 0 : index
    %c0_7 = arith.constant 0 : index
    %8 = vector.load %arg6[%c0_6, %c0_7] : memref<8x256xf32, #tpu.memory_space<vmem>>, vector<8x256xf32>
    tpu.vector_store %arg6[%c0_6, %c0_7], %7 {strides = array<i32>} : memref<8x256xf32, #tpu.memory_space<vmem>>, vector<8x256xf32>,
    %c2_i32 = arith.constant 2 : i32
    %9 = arith.cmpi eq, %arg1, %c2_i32 : i32
    %10 = arith.extui %9 : i1 to i32
    %c0_i32_8 = arith.constant 0 : i32
    %11 = arith.cmpi ne, %10, %c0_i32_8 : i32
    scf.if %11 {
      %c0_9 = arith.constant 0 : index
      %c0_10 = arith.constant 0 : index
      %12 = vector.load %arg6[%c0_9, %c0_10] : memref<8x256xf32, #tpu.memory_space<vmem>>, vector<8x256xf32>
      %c0_11 = arith.constant 0 : index
      %c0_12 = arith.constant 0 : index
      %13 = vector.load %arg4[%c0_11, %c0_12] : memref<1x256xf32, #tpu.memory_space<vmem>>, vector<1x256xf32>
      %14 = vector.broadcast %13 : vector<1x256xf32> to vector<8x256xf32>
      %15 = arith.addf %12, %14 : vector<8x256xf32>
      %cst_13 = arith.constant 0.000000e+00 : f32
      %16 = vector.broadcast %cst_13 : f32 to vector<8x256xf32>
      %17 = arith.cmpf oge, %15, %16 : vector<8x256xf32>
      %cst_14 = arith.constant 2.000000e-01 : f32
      %18 = vector.broadcast %cst_14 : f32 to vector<8x256xf32>
      %19 = arith.mulf %18, %15 : vector<8x256xf32>
      %20 = arith.select %17, %15, %19 : vector<8x256xi1>, vector<8x256xf32>
      %21 = arith.truncf %20 : vector<8x256xf32> to vector<8x256xbf16>
      %c0_15 = arith.constant 0 : index
      %c0_16 = arith.constant 0 : index
      %22 = vector.load %arg5[%c0_15, %c0_16] : memref<8x256xbf16, #tpu.memory_space<vmem>>, vector<8x256xbf16>
      tpu.vector_store %arg5[%c0_15, %c0_16], %21 {strides = array<i32>} : memref<8x256xbf16, #tpu.memory_space<vmem>>, vector<8x256xbf16>,
    } else {
    }
    return
  }
  func.func @transform_0(%arg0: i32, %arg1: i32) -> (i32, i32) {
    %c0_i32 = arith.constant 0 : i32
    return %arg0, %arg1 : i32, i32
  }
  func.func @transform_1(%arg0: i32, %arg1: i32) -> (i32, i32) {
    %c0_i32 = arith.constant 0 : i32
    %c0_i32_0 = arith.constant 0 : i32
    return %arg1, %c0_i32 : i32, i32
  }
  func.func @transform_2(%arg0: i32, %arg1: i32) -> (i32, i32) {
    %c0_i32 = arith.constant 0 : i32
    %c0_i32_0 = arith.constant 0 : i32
    %c0_i32_1 = arith.constant 0 : i32
    return %c0_i32, %c0_i32_0 : i32, i32
  }
  func.func @transform_3(%arg0: i32, %arg1: i32) -> (i32, i32) {
    %c0_i32 = arith.constant 0 : i32
    %c0_i32_0 = arith.constant 0 : i32
    return %arg0, %c0_i32 : i32, i32
  }
}

module attributes {stable_mosaic.version = 11 : i64} {
  func.func @_pool_linear_kernel(%arg0: memref<2x4x256xbf16, #tpu.memory_space<vmem>>, %arg1: memref<256x1xf32, #tpu.memory_space<vmem>>, %arg2: memref<1x1xf32, #tpu.memory_space<vmem>>, %arg3: memref<2x1xf32, #tpu.memory_space<vmem>>) attributes {dimension_semantics = [], scalar_prefetch = 0 : i64, scratch_operands = 0 : i64, tpu.core_type = #tpu.core_type<tc>} {
    %c0 = arith.constant 0 : index
    %c0_0 = arith.constant 0 : index
    %c0_1 = arith.constant 0 : index
    %0 = vector.load %arg0[%c0, %c0_0, %c0_1] : memref<2x4x256xbf16, #tpu.memory_space<vmem>>, vector<2x4x256xbf16>
    %1 = arith.extf %0 : vector<2x4x256xbf16> to vector<2x4x256xf32>
    %cst = arith.constant dense<0.000000e+00> : vector<2x256xf32>
    %2 = vector.multi_reduction <add>, %1, %cst [1] : vector<2x4x256xf32> to vector<2x256xf32>
    %cst_2 = arith.constant 4.000000e+00 : f32
    %3 = vector.broadcast %cst_2 : f32 to vector<2x256xf32>
    %4 = arith.divf %2, %3 : vector<2x256xf32>
    %c0_3 = arith.constant 0 : index
    %c0_4 = arith.constant 0 : index
    %5 = vector.load %arg1[%c0_3, %c0_4] : memref<256x1xf32, #tpu.memory_space<vmem>>, vector<256x1xf32>
    %cst_5 = arith.constant dense<0.000000e+00> : vector<2x1xf32>
    %6 = tpu.matmul %4, %5, %cst_5 {dimension_numbers = #tpu.dot_dimension_numbers<[1], [0], [0], [1], [0, 0, 1, 1], [], []>} : vector<2x256xf32>, vector<256x1xf32>, vector<2x1xf32> -> vector<2x1xf32>
    %c0_6 = arith.constant 0 : index
    %c0_7 = arith.constant 0 : index
    %7 = vector.load %arg2[%c0_6, %c0_7] : memref<1x1xf32, #tpu.memory_space<vmem>>, vector<1x1xf32>
    %8 = vector.broadcast %7 : vector<1x1xf32> to vector<2x1xf32>
    %9 = arith.addf %6, %8 : vector<2x1xf32>
    %c0_8 = arith.constant 0 : index
    %c0_9 = arith.constant 0 : index
    %10 = vector.load %arg3[%c0_8, %c0_9] : memref<2x1xf32, #tpu.memory_space<vmem>>, vector<2x1xf32>
    tpu.vector_store %arg3[%c0_8, %c0_9], %9 {strides = array<i32>} : memref<2x1xf32, #tpu.memory_space<vmem>>, vector<2x1xf32>,
    return
  }
}

</mosaic_0001>

<llo_original>
// kernel: custom-call
$region0: #{custom-call}
  %s0 = inlined_call_operand.vmem [shape: f32[64], index: 0, kind: output, shape index: {}]

// kernel: discriminator_forward.7
$region0: #{discriminator_forward.7}
  #allocation0 [shape = 'u32[]', space=smem, size = 0x4, offset = 0x4, fixed_abs, tag = 'smem constant byte address 0x4 - core index']
  #allocation1 [shape = 'u32[144,128]{1,0:T(1,128)}', space=vmem, size = 0x12000, scoped, tag = 'internal scratch']
  #allocation2 [shape = 'f32[256,128]{1,0:T(8,128)}', space=vmem, size = 0x20000, scoped, tag = 'scratch operand']
  %s0 = inlined_call_operand.vmem [shape: bf16[512,27], index: 0, kind: input, shape index: {}]
  %s1 = inlined_call_operand.vmem [shape: bf16[27,128], index: 1, kind: input, shape index: {}]
  %s2 = inlined_call_operand.vmem [shape: f32[1,128], index: 2, kind: input, shape index: {}]
  %s3 = inlined_call_operand.vmem [shape: bf16[512,128], index: 3, kind: output, shape index: {}]
  %s4 = sld [smem:[#allocation0]]
  $region53: #{discriminator_forward.7} parent=0
    _
  %s6 = ssub.s32 1, %s4
  %s7 = scalar_select 0, %s6, %s4
  loop: start=0, step=1, limit=4
  $region2: #{discriminator_forward.7} parent=0 // loop_pre_header
    _
  $region3: #{discriminator_forward.7} parent=0 // loop_header
    %s9 = sphi 0, %s13
    %p10 = scmp.ge.s32.totalorder %s9, 4
    %s16 = sphi 0, %s28
    %s17 = sphi 0, %s24
    %s18 = sphi 0, %s16
    %s19 = sphi 0, %s17
    %s20 = sphi 0, %s18
    %s21 = sphi 0, %s19
    %s33 = sphi 0, %s35
    %s36 = sphi 0, %s33
    %s37 = sphi 0, %s36
    %s53 = sphi 0, %s37
    %s59 = sphi 0, %s61
    %s62 = sphi 0, %s59
    %s63 = sphi 0, %s62
    %s79 = sphi 0, %s63
    %s83 = sphi 0, %s83
    %s85 = sphi 0, %s83
    %s86 = sphi 0, %s85
    %s100 = sphi 0, %s86
    %s106 = sphi 0, %s108
    %s109 = sphi 0, %s106
    %s110 = sphi 0, %s109
    %s126 = sphi 0, %s110
  $region4: #{discriminator_forward.7} parent=0 // loop_header_branch
    %12 = sbr.rel (%p10) target = $region8
  $region5: #{discriminator_forward.7} parent=0 // loop_body
    %s14 = ssub.s32 %s9, 1
    %s15 = ssub.s32 %s9, 2
    %s22 = sadd.s32 1, %s17
    %p23 = scmp.ge.s32.totalorder %s22, 1
    %s24 = scalar_select %p23, 0, %s22
    %s25 = sadd.s32 1, %s16
    %s26 = scalar_select %p23, %s25, %s16
    %p27 = scmp.ge.s32.totalorder %s26, 2
    %s28 = scalar_select %p27, 0, %s26
    %s29 = ssub.s32 %s16, %s28
    %s30 = ssub.s32 %s17, %s24
    %s31 = sor.u32 %s29, %s30
    %p32 = scmp.eq.s32.totalorder %s31, 0
    %s34 = sadd.s32 %s33, 1
    %s35 = scalar_select %p32, %s33, %s34
    %p38 = pneg %p32
    %p39 = scmp.eq.s32.totalorder %s9, 1
    %p40 = por %p38, %p39
    %p41 = scmp.ne.s32.totalorder %s33, %s36
    %p42 = scmp.eq.s32.totalorder %s9, 0
    %p43 = por %p41, %p42
    %p44 = scmp.ne.s32.totalorder %s33, %s36
    %p45 = scmp.eq.s32.totalorder %s14, 1
    %p46 = por %p44, %p45
    %p47 = scmp.ne.s32.totalorder %s36, %s37
    %p48 = scmp.eq.s32.totalorder %s14, 0
    %p49 = por %p47, %p48
    %p50 = scmp.ne.s32.totalorder %s36, %s37
    %p51 = scmp.eq.s32.totalorder %s15, 1
    %p52 = por %p50, %p51
    %p54 = scmp.ne.s32.totalorder %s37, %s53
    %p55 = scmp.eq.s32.totalorder %s15, 0
    %p56 = por %p54, %p55
    %s57 = ssub.s32 %s17, %s24
    %p58 = scmp.eq.s32.totalorder %s57, 0
    %s60 = sadd.s32 %s59, 1
    %s61 = scalar_select %p58, %s59, %s60
    %p64 = pneg %p58
    %p65 = scmp.eq.s32.totalorder %s9, 1
    %p66 = por %p64, %p65
    %p67 = scmp.ne.s32.totalorder %s59, %s62
    %p68 = scmp.eq.s32.totalorder %s9, 0
    %p69 = por %p67, %p68
    %p70 = scmp.ne.s32.totalorder %s59, %s62
    %p71 = scmp.eq.s32.totalorder %s14, 1
    %p72 = por %p70, %p71
    %p73 = scmp.ne.s32.totalorder %s62, %s63
    %p74 = scmp.eq.s32.totalorder %s14, 0
    %p75 = por %p73, %p74
    %p76 = scmp.ne.s32.totalorder %s62, %s63
    %p77 = scmp.eq.s32.totalorder %s15, 1
    %p78 = por %p76, %p77
    %p80 = scmp.ne.s32.totalorder %s63, %s79
    %p81 = scmp.eq.s32.totalorder %s15, 0
    %p82 = por %p80, %p81
    %s84 = sadd.s32 %s83, 1
    %p87 = scmp.eq.s32.totalorder %s9, 1
    %p88 = scmp.ne.s32.totalorder %s83, %s85
    %p89 = scmp.eq.s32.totalorder %s9, 0
    %p90 = por %p88, %p89
    %p91 = scmp.ne.s32.totalorder %s83, %s85
    %p92 = scmp.eq.s32.totalorder %s14, 1
    %p93 = por %p91, %p92
    %p94 = scmp.ne.s32.totalorder %s85, %s86
    %p95 = scmp.eq.s32.totalorder %s14, 0
    %p96 = por %p94, %p95
    %p97 = scmp.ne.s32.totalorder %s85, %s86
    %p98 = scmp.eq.s32.totalorder %s15, 1
    %p99 = por %p97, %p98
    %p101 = scmp.ne.s32.totalorder %s86, %s100
    %p102 = scmp.eq.s32.totalorder %s15, 0
    %p103 = por %p101, %p102
    %s104 = ssub.s32 %s16, %s28
    %p105 = scmp.eq.s32.totalorder %s104, 0
    %s107 = sadd.s32 %s106, 1
    %s108 = scalar_select %p105, %s106, %s107
    %p111 = pneg %p105
    %p112 = scmp.eq.s32.totalorder %s9, 1
    %p113 = por %p111, %p112
    %p114 = scmp.ne.s32.totalorder %s106, %s109
    %p115 = scmp.eq.s32.totalorder %s9, 0
    %p116 = por %p114, %p115
    %p117 = scmp.ne.s32.totalorder %s106, %s109
    %p118 = scmp.eq.s32.totalorder %s14, 1
    %p119 = por %p117, %p118
    %p120 = scmp.ne.s32.totalorder %s109, %s110
    %p121 = scmp.eq.s32.totalorder %s14, 0
    %p122 = por %p120, %p121
    %p123 = scmp.ne.s32.totalorder %s109, %s110
    %p124 = scmp.eq.s32.totalorder %s15, 1
    %p125 = por %p123, %p124
    %p127 = scmp.ne.s32.totalorder %s110, %s126
    %p128 = scmp.eq.s32.totalorder %s15, 0
    %p129 = por %p127, %p128
    %p130 = scmp.le.s32.totalorder 1, %s9
    %p131 = scmp.lt.s32.totalorder %s9, 3
    %p132 = pnand %p130, %p131
    %p133 = pneg %p132
    // Predicated region
    $region9: #{discriminator_forward.7} parent=5 // pred_check
      _
    $region10: #{discriminator_forward.7} parent=5 // pred_check_branch
      %135 = sbr.rel (%p132) target = $region12
    $region11: #{discriminator_forward.7} parent=5 // pred_region
      %s136 = ssub.s32 %s9, 1
      // Predicated region
      $region13: #{discriminator_forward.7} parent=11 // pred_check
        %p137 = pneg %p75
      $region14: #{discriminator_forward.7} parent=11 // pred_check_branch
        %139 = sbr.rel (%p137) target = $region16
      $region15: #{discriminator_forward.7} parent=11 // pred_region
        %s140 = smul.u32 4, %s19
        %p141 = scmp.lt.s32.totalorder %s140, 3
        %s142 = scalar_select %p141, %s140, 3
        %s143 = smul.addr %s142, 4
        %s144 = scalar_lea.vmem %s1, %s143
        %s145 = smul.u32 4, %s19
      $region16: #{discriminator_forward.7} parent=11 // pred_fallthru
        _
      // Predicated region
      $region17: #{discriminator_forward.7} parent=11 // pred_check
        %p146 = pneg %p96
      $region18: #{discriminator_forward.7} parent=11 // pred_check_branch
        %148 = sbr.rel (%p146) target = $region20
      $region19: #{discriminator_forward.7} parent=11 // pred_region
        _
      $region20: #{discriminator_forward.7} parent=11 // pred_fallthru
        _
    $region12: #{discriminator_forward.7} parent=5 // pred_fallthru
      _
    %p149 = scmp.lt.s32.totalorder %s9, 2
    // Predicated region
    $region21: #{discriminator_forward.7} parent=5 // pred_check
      %p150 = pneg %p149
    $region22: #{discriminator_forward.7} parent=5 // pred_check_branch
      %152 = sbr.rel (%p150) target = $region24
    $region23: #{discriminator_forward.7} parent=5 // pred_region
      // Predicated region
      $region25: #{discriminator_forward.7} parent=23 // pred_check
        %p153 = pneg %p43
      $region26: #{discriminator_forward.7} parent=23 // pred_check_branch
        %155 = sbr.rel (%p153) target = $region28
      $region27: #{discriminator_forward.7} parent=23 // pred_region
        %s156 = smul.u32 32, %s16
        %p157 = scmp.lt.s32.totalorder %s156, 63
        %s158 = scalar_select %p157, %s156, 63
        %p159 = scmp.lt.s32.totalorder %s17, 0
        %s160 = scalar_select %p159, %s17, 0
        %s161 = sadd.s32 %s160, %s158
        %s162 = smul.addr %s161, 4
        %s163 = scalar_lea.vmem %s0, %s162
        %s164 = smul.u32 32, %s16
      $region28: #{discriminator_forward.7} parent=23 // pred_fallthru
        _
    $region24: #{discriminator_forward.7} parent=5 // pred_fallthru
      _
    %p165 = scmp.le.s32.totalorder 1, %s9
    %p166 = scmp.lt.s32.totalorder %s9, 3
    %p167 = pnand %p165, %p166
    %p168 = pneg %p167
    // Predicated region
    $region29: #{discriminator_forward.7} parent=5 // pred_check
      _
    $region30: #{discriminator_forward.7} parent=5 // pred_check_branch
      %170 = sbr.rel (%p167) target = $region32
    $region31: #{discriminator_forward.7} parent=5 // pred_region
      %s171 = ssub.s32 %s9, 1
      %s172 = smul.u32 32, %s18
      %p173 = scmp.lt.s32.totalorder %s172, 63
      %s174 = scalar_select %p173, %s172, 63
      %p175 = scmp.lt.s32.totalorder %s19, 0
      %s176 = scalar_select %p175, %s19, 0
      %s177 = sadd.s32 %s176, %s174
      %s178 = smul.addr %s177, 4
      %s179 = scalar_lea.vmem %s0, %s178
      %p180 = pneg %p49
      %p181 = pneg %p46
      %s182 = smul.u32 4, %s19
      %p183 = scmp.lt.s32.totalorder %s182, 3
      %s184 = scalar_select %p183, %s182, 3
      %s185 = smul.addr %s184, 4
      %s186 = scalar_lea.vmem %s1, %s185
      %p187 = pneg %p75
      %p188 = pneg %p72
      %p189 = pneg %p96
      %p190 = pneg %p93
      %p191 = pneg %p122
      %p192 = pneg %p119
      %s193 = smul.u32 32, %s18
      %p194 = scmp.lt.s32.totalorder %s193, 63
      %s195 = scalar_select %p194, %s193, 63
      %s196 = smul.addr %s195, 4
      %s197 = scalar_lea.vmem %s3, %s196
      %s198 = smul.u32 32, %s18
      %p199 = scmp.lt.s32.totalorder %s198, 63
      %s200 = scalar_select %p199, %s198, 63
      %p201 = scmp.lt.s32.totalorder %s19, 0
      %s202 = scalar_select %p201, %s19, 0
      %s203 = sadd.s32 %s202, %s200
      %s204 = smul.addr %s203, 4
      %s205 = scalar_lea.vmem %s0, %s204
      %s206 = smul.u32 32, %s18
      %s207 = smul.u32 4, %s19
      %p208 = scmp.lt.s32.totalorder %s207, 3
      %s209 = scalar_select %p208, %s207, 3
      %s210 = smul.addr %s209, 4
      %s211 = scalar_lea.vmem %s1, %s210
      %s212 = smul.u32 4, %s19
      %s213 = smul.u32 32, %s18
      %p214 = scmp.lt.s32.totalorder %s213, 63
      %s215 = scalar_select %p214, %s213, 63
      %s216 = smul.addr %s215, 4
      %s217 = scalar_lea.vmem %s3, %s216
      %s218 = smul.u32 32, %s18
      %p220 = scmp.eq.s32.totalorder %s19, 0
      // Predicated region
      $region33: #{discriminator_forward.7} parent=31 // pred_check
        %p221 = pneg %p220
      $region34: #{discriminator_forward.7} parent=31 // pred_check_branch
        %223 = sbr.rel (%p221) target = $region36
      $region35: #{discriminator_forward.7} parent=31 // pred_region
        %224 = vst [vmem:[#allocation2] sm:$0xff] 0.0
        %225 = vst [vmem:[#allocation2 + $0x8] sm:$0xff] 0.0
        %226 = vst [vmem:[#allocation2 + $0x10] sm:$0xff] 0.0
        %227 = vst [vmem:[#allocation2 + $0x18] sm:$0xff] 0.0
        %228 = vst [vmem:[#allocation2 + $0x20] sm:$0xff] 0.0
        %229 = vst [vmem:[#allocation2 + $0x28] sm:$0xff] 0.0
        %230 = vst [vmem:[#allocation2 + $0x30] sm:$0xff] 0.0
        %231 = vst [vmem:[#allocation2 + $0x38] sm:$0xff] 0.0
        %232 = vst [vmem:[#allocation2 + $0x40] sm:$0xff] 0.0
        %233 = vst [vmem:[#allocation2 + $0x48] sm:$0xff] 0.0
        %234 = vst [vmem:[#allocation2 + $0x50] sm:$0xff] 0.0
        %235 = vst [vmem:[#allocation2 + $0x58] sm:$0xff] 0.0
        %236 = vst [vmem:[#allocation2 + $0x60] sm:$0xff] 0.0
        %237 = vst [vmem:[#allocation2 + $0x68] sm:$0xff] 0.0
        %238 = vst [vmem:[#allocation2 + $0x70] sm:$0xff] 0.0
        %239 = vst [vmem:[#allocation2 + $0x78] sm:$0xff] 0.0
        %240 = vst [vmem:[#allocation2 + $0x80] sm:$0xff] 0.0
        %241 = vst [vmem:[#allocation2 + $0x88] sm:$0xff] 0.0
        %242 = vst [vmem:[#allocation2 + $0x90] sm:$0xff] 0.0
        %243 = vst [vmem:[#allocation2 + $0x98] sm:$0xff] 0.0
        %244 = vst [vmem:[#allocation2 + $0xa0] sm:$0xff] 0.0
        %245 = vst [vmem:[#allocation2 + $0xa8] sm:$0xff] 0.0
        %246 = vst [vmem:[#allocation2 + $0xb0] sm:$0xff] 0.0
        %247 = vst [vmem:[#allocation2 + $0xb8] sm:$0xff] 0.0
        %248 = vst [vmem:[#allocation2 + $0xc0] sm:$0xff] 0.0
        %249 = vst [vmem:[#allocation2 + $0xc8] sm:$0xff] 0.0
        %250 = vst [vmem:[#allocation2 + $0xd0] sm:$0xff] 0.0
        %251 = vst [vmem:[#allocation2 + $0xd8] sm:$0xff] 0.0
        %252 = vst [vmem:[#allocation2 + $0xe0] sm:$0xff] 0.0
        %253 = vst [vmem:[#allocation2 + $0xe8] sm:$0xff] 0.0
        %254 = vst [vmem:[#allocation2 + $0xf0] sm:$0xff] 0.0
        %255 = vst [vmem:[#allocation2 + $0xf8] sm:$0xff] 0.0
      $region36: #{discriminator_forward.7} parent=31 // pred_fallthru
        _
      %v256 = vld [vmem:[#allocation2] sm:$0xff]
      %v257 = vld [vmem:[#allocation2 + $0x8] sm:$0xff]
      %v258 = vld [vmem:[#allocation2 + $0x10] sm:$0xff]
      %v259 = vld [vmem:[#allocation2 + $0x18] sm:$0xff]
      %v260 = vld [vmem:[#allocation2 + $0x20] sm:$0xff]
      %v261 = vld [vmem:[#allocation2 + $0x28] sm:$0xff]
      %v262 = vld [vmem:[#allocation2 + $0x30] sm:$0xff]
      %v263 = vld [vmem:[#allocation2 + $0x38] sm:$0xff]
      %v264 = vld [vmem:[#allocation2 + $0x40] sm:$0xff]
      %v265 = vld [vmem:[#allocation2 + $0x48] sm:$0xff]
      %v266 = vld [vmem:[#allocation2 + $0x50] sm:$0xff]
      %v267 = vld [vmem:[#allocation2 + $0x58] sm:$0xff]
      %v268 = vld [vmem:[#allocation2 + $0x60] sm:$0xff]
      %v269 = vld [vmem:[#allocation2 + $0x68] sm:$0xff]
      %v270 = vld [vmem:[#allocation2 + $0x70] sm:$0xff]
      %v271 = vld [vmem:[#allocation2 + $0x78] sm:$0xff]
      %v272 = vld [vmem:[#allocation2 + $0x80] sm:$0xff]
      %v273 = vld [vmem:[#allocation2 + $0x88] sm:$0xff]
      %v274 = vld [vmem:[#allocation2 + $0x90] sm:$0xff]
      %v275 = vld [vmem:[#allocation2 + $0x98] sm:$0xff]
      %v276 = vld [vmem:[#allocation2 + $0xa0] sm:$0xff]
      %v277 = vld [vmem:[#allocation2 + $0xa8] sm:$0xff]
      %v278 = vld [vmem:[#allocation2 + $0xb0] sm:$0xff]
      %v279 = vld [vmem:[#allocation2 + $0xb8] sm:$0xff]
      %v280 = vld [vmem:[#allocation2 + $0xc0] sm:$0xff]
      %v281 = vld [vmem:[#allocation2 + $0xc8] sm:$0xff]
      %v282 = vld [vmem:[#allocation2 + $0xd0] sm:$0xff]
      %v283 = vld [vmem:[#allocation2 + $0xd8] sm:$0xff]
      %v284 = vld [vmem:[#allocation2 + $0xe0] sm:$0xff]
      %v285 = vld [vmem:[#allocation2 + $0xe8] sm:$0xff]
      %v286 = vld [vmem:[#allocation2 + $0xf0] sm:$0xff]
      %v287 = vld [vmem:[#allocation2 + $0xf8] sm:$0xff]
      %v288 = vld [vmem:[%s205] sm:$0xf]
      %v289 = vld [vmem:[%s205 + $0x4] sm:$0xf]
      %v290 = vld [vmem:[%s205 + $0x8] sm:$0xf]
      %v291 = vld [vmem:[%s205 + $0xc] sm:$0xf]
      %v292 = vld [vmem:[%s205 + $0x10] sm:$0xf]
      %v293 = vld [vmem:[%s205 + $0x14] sm:$0xf]
      %v294 = vld [vmem:[%s205 + $0x18] sm:$0xf]
      %v295 = vld [vmem:[%s205 + $0x1c] sm:$0xf]
      %v296 = vld [vmem:[%s205 + $0x20] sm:$0xf]
      %v297 = vld [vmem:[%s205 + $0x24] sm:$0xf]
      %v298 = vld [vmem:[%s205 + $0x28] sm:$0xf]
      %v299 = vld [vmem:[%s205 + $0x2c] sm:$0xf]
      %v300 = vld [vmem:[%s205 + $0x30] sm:$0xf]
      %v301 = vld [vmem:[%s205 + $0x34] sm:$0xf]
      %v302 = vld [vmem:[%s205 + $0x38] sm:$0xf]
      %v303 = vld [vmem:[%s205 + $0x3c] sm:$0xf]
      %v304 = vld [vmem:[%s205 + $0x40] sm:$0xf]
      %v305 = vld [vmem:[%s205 + $0x44] sm:$0xf]
      %v306 = vld [vmem:[%s205 + $0x48] sm:$0xf]
      %v307 = vld [vmem:[%s205 + $0x4c] sm:$0xf]
      %v308 = vld [vmem:[%s205 + $0x50] sm:$0xf]
      %v309 = vld [vmem:[%s205 + $0x54] sm:$0xf]
      %v310 = vld [vmem:[%s205 + $0x58] sm:$0xf]
      %v311 = vld [vmem:[%s205 + $0x5c] sm:$0xf]
      %v312 = vld [vmem:[%s205 + $0x60] sm:$0xf]
      %v313 = vld [vmem:[%s205 + $0x64] sm:$0xf]
      %v314 = vld [vmem:[%s205 + $0x68] sm:$0xf]
      %v315 = vld [vmem:[%s205 + $0x6c] sm:$0xf]
      %v316 = vld [vmem:[%s205 + $0x70] sm:$0xf]
      %v317 = vld [vmem:[%s205 + $0x74] sm:$0xf]
      %v318 = vld [vmem:[%s205 + $0x78] sm:$0xf]
      %v319 = vld [vmem:[%s205 + $0x7c] sm:$0xf]
      %v320 = vld [vmem:[%s211] sm:$0xf]
      %v321 = vld [vmem:[%s211 + $0x4] sm:$0xf]
      %v322 = vld [vmem:[%s211 + $0x8] sm:$0xf]
      %v323 = vld [vmem:[%s211 + $0xc] sm:$0x3]
      %v356 = vunpack.c.l.b16 %v288
      %v357 = vunpack.c.l.b16 %v289
      %v358 = vunpack.c.l.b16 %v290
      %v359 = vunpack.c.l.b16 %v291
      %v360 = vunpack.c.l.b16 %v292
      %v361 = vunpack.c.l.b16 %v293
      %v362 = vunpack.c.l.b16 %v294
      %v363 = vunpack.c.l.b16 %v295
      %v364 = vunpack.c.l.b16 %v296
      %v365 = vunpack.c.l.b16 %v297
      %v366 = vunpack.c.l.b16 %v298
      %v367 = vunpack.c.l.b16 %v299
      %v368 = vunpack.c.l.b16 %v300
      %v369 = vunpack.c.l.b16 %v301
      %v370 = vunpack.c.l.b16 %v302
      %v371 = vunpack.c.l.b16 %v303
      %v372 = vunpack.c.l.b16 %v304
      %v373 = vunpack.c.l.b16 %v305
      %v374 = vunpack.c.l.b16 %v306
      %v375 = vunpack.c.l.b16 %v307
      %v376 = vunpack.c.l.b16 %v308
      %v377 = vunpack.c.l.b16 %v309
      %v378 = vunpack.c.l.b16 %v310
      %v379 = vunpack.c.l.b16 %v311
      %v380 = vunpack.c.l.b16 %v312
      %v381 = vunpack.c.l.b16 %v313
      %v382 = vunpack.c.l.b16 %v314
      %v383 = vunpack.c.l.b16 %v315
      %v384 = vunpack.c.l.b16 %v316
      %v385 = vunpack.c.l.b16 %v317
      %v386 = vunpack.c.l.b16 %v318
      %v387 = vunpack.c.l.b16 %v319
      %v388 = vpack.c.b16 %v357, %v356
      %v389 = vpack.c.b16 %v359, %v358
      %v390 = vpack.c.b16 %v361, %v360
      %v391 = vpack.c.b16 %v363, %v362
      %v392 = vpack.c.b16 %v365, %v364
      %v393 = vpack.c.b16 %v367, %v366
      %v394 = vpack.c.b16 %v369, %v368
      %v395 = vpack.c.b16 %v371, %v370
      %v396 = vpack.c.b16 %v373, %v372
      %v397 = vpack.c.b16 %v375, %v374
      %v398 = vpack.c.b16 %v377, %v376
      %v399 = vpack.c.b16 %v379, %v378
      %v400 = vpack.c.b16 %v381, %v380
      %v401 = vpack.c.b16 %v383, %v382
      %v402 = vpack.c.b16 %v385, %v384
      %v403 = vpack.c.b16 %v387, %v386
      %v408 = vunpack.c.l.b16 %v320
      %v409 = vunpack.c.l.b16 %v321
      %v410 = vunpack.c.l.b16 %v322
      %v411 = vunpack.c.l.b16 %v323
      %v412 = vpack.c.b16 %v409, %v408
      %v413 = vpack.c.b16 %v411, %v410
      %vm415 = vcmask 220160
      %v417 = vsel %vm415, %v388, 0
      %v420 = vsel %vm415, %v389, 0
      %v423 = vsel %vm415, %v390, 0
      %v426 = vsel %vm415, %v391, 0
      %v429 = vsel %vm415, %v392, 0
      %v432 = vsel %vm415, %v393, 0
      %v435 = vsel %vm415, %v394, 0
      %v438 = vsel %vm415, %v395, 0
      %v441 = vsel %vm415, %v396, 0
      %v444 = vsel %vm415, %v397, 0
      %v447 = vsel %vm415, %v398, 0
      %v450 = vsel %vm415, %v399, 0
      %v453 = vsel %vm415, %v400, 0
      %v456 = vsel %vm415, %v401, 0
      %v459 = vsel %vm415, %v402, 0
      %v462 = vsel %vm415, %v403, 0
      %vm464 = vcmask 1044480
      %vm465 = vcmask 1045504
      %v466 = vsel %vm464, 4294967295, 65535
      %v467 = vsel %vm465, %v466, 0
      %v469 = vand.u32 %v413, %v467
      %471 = vmatprep.subr.bf16.mxu0 0
      %472 = vmatpush1.bf16.msra.mxu0 0
      %473 = vmatprep.subr.bf16.mxu0 0
      %474 = vmatpush1.bf16.msra.mxu0 0
      %475 = vmatprep.subr.bf16.mxu0 0
      %476 = vmatpush1.bf16.msra.mxu0 0
      %477 = vmatprep.subr.bf16.mxu0 0
      %478 = vmatpush1.bf16.msra.mxu0 0
      %479 = vmatprep.subr.bf16.mxu0 0
      %480 = vmatpush1.bf16.msra.mxu0 0
      %481 = vmatprep.subr.bf16.mxu0 0
      %482 = vmatpush1.bf16.msra.mxu0 0
      %483 = vmatprep.subr.bf16.mxu0 0
      %484 = vmatpush1.bf16.msra.mxu0 %v469
      %485 = vmatprep.subr.bf16.mxu0 0
      %486 = vmatpush1.bf16.msra.mxu0 %v412
      %487 = vmatprep.subr.bf16.mxu0 0
      %488 = vmatpush2.bf16.msra.mxu0 0
      %489 = vmatprep.subr.bf16.mxu0 0
      %490 = vmatpush2.bf16.msra.mxu0 0
      %491 = vmatprep.subr.bf16.mxu0 0
      %492 = vmatpush2.bf16.msra.mxu0 0
      %493 = vmatprep.subr.bf16.mxu0 0
      %494 = vmatpush2.bf16.msra.mxu0 0
      %495 = vmatprep.subr.bf16.mxu0 0
      %496 = vmatpush2.bf16.msra.mxu0 0
      %497 = vmatprep.subr.bf16.mxu0 0
      %498 = vmatpush2.bf16.msra.mxu0 0
      %499 = vmatprep.subr.bf16.mxu0 0
      %500 = vmatpush2.bf16.msra.mxu0 0
      %501 = vmatprep.subr.bf16.mxu0 0
      %502 = vmatpush2.bf16.msra.mxu0 0
      %503 = vmatprep.mubr.bf16.mxu0 0
      %504 = vmatmul.mubr.bf16.gmra.mxu0 %v417
      %v505 = vpop.f32.mrf.mxu0
      %v506 = vadd.f32 0.0, %v505
      %v507 = vpop.f32.mrf.mxu0
      %v508 = vpop.f32.mrf.mxu0
      %v509 = vadd.f32 0.0, %v508
      %v510 = vpop.f32.mrf.mxu0
      %511 = vmatprep.mubr.bf16.mxu0 0
      %512 = vmatmul.mubr.bf16.gmra.mxu0 %v420
      %v513 = vpop.f32.mrf.mxu0
      %v514 = vadd.f32 0.0, %v513
      %v515 = vpop.f32.mrf.mxu0
      %v516 = vpop.f32.mrf.mxu0
      %v517 = vadd.f32 0.0, %v516
      %v518 = vpop.f32.mrf.mxu0
      %519 = vmatprep.mubr.bf16.mxu0 0
      %520 = vmatmul.mubr.bf16.gmra.mxu0 %v423
      %v521 = vpop.f32.mrf.mxu0
      %v522 = vadd.f32 0.0, %v521
      %v523 = vpop.f32.mrf.mxu0
      %v524 = vpop.f32.mrf.mxu0
      %v525 = vadd.f32 0.0, %v524
      %v526 = vpop.f32.mrf.mxu0
      %527 = vmatprep.mubr.bf16.mxu0 0
      %528 = vmatmul.mubr.bf16.gmra.mxu0 %v426
      %v529 = vpop.f32.mrf.mxu0
      %v530 = vadd.f32 0.0, %v529
      %v531 = vpop.f32.mrf.mxu0
      %v532 = vpop.f32.mrf.mxu0
      %v533 = vadd.f32 0.0, %v532
      %v534 = vpop.f32.mrf.mxu0
      %535 = vmatprep.mubr.bf16.mxu0 0
      %536 = vmatmul.mubr.bf16.gmra.mxu0 %v429
      %v537 = vpop.f32.mrf.mxu0
      %v538 = vadd.f32 0.0, %v537
      %v539 = vpop.f32.mrf.mxu0
      %v540 = vpop.f32.mrf.mxu0
      %v541 = vadd.f32 0.0, %v540
      %v542 = vpop.f32.mrf.mxu0
      %543 = vmatprep.mubr.bf16.mxu0 0
      %544 = vmatmul.mubr.bf16.gmra.mxu0 %v432
      %v545 = vpop.f32.mrf.mxu0
      %v546 = vadd.f32 0.0, %v545
      %v547 = vpop.f32.mrf.mxu0
      %v548 = vpop.f32.mrf.mxu0
      %v549 = vadd.f32 0.0, %v548
      %v550 = vpop.f32.mrf.mxu0
      %551 = vmatprep.mubr.bf16.mxu0 0
      %552 = vmatmul.mubr.bf16.gmra.mxu0 %v435
      %v553 = vpop.f32.mrf.mxu0
      %v554 = vadd.f32 0.0, %v553
      %v555 = vpop.f32.mrf.mxu0
      %v556 = vpop.f32.mrf.mxu0
      %v557 = vadd.f32 0.0, %v556
      %v558 = vpop.f32.mrf.mxu0
      %559 = vmatprep.mubr.bf16.mxu0 0
      %560 = vmatmul.mubr.bf16.gmra.mxu0 %v438
      %v561 = vpop.f32.mrf.mxu0
      %v562 = vadd.f32 0.0, %v561
      %v563 = vpop.f32.mrf.mxu0
      %v564 = vpop.f32.mrf.mxu0
      %v565 = vadd.f32 0.0, %v564
      %v566 = vpop.f32.mrf.mxu0
      %567 = vmatprep.mubr.bf16.mxu0 0
      %568 = vmatmul.mubr.bf16.gmra.mxu0 %v441
      %v569 = vpop.f32.mrf.mxu0
      %v570 = vadd.f32 0.0, %v569
      %v571 = vpop.f32.mrf.mxu0
      %v572 = vpop.f32.mrf.mxu0
      %v573 = vadd.f32 0.0, %v572
      %v574 = vpop.f32.mrf.mxu0
      %575 = vmatprep.mubr.bf16.mxu0 0
      %576 = vmatmul.mubr.bf16.gmra.mxu0 %v444
      %v577 = vpop.f32.mrf.mxu0
      %v578 = vadd.f32 0.0, %v577
      %v579 = vpop.f32.mrf.mxu0
      %v580 = vpop.f32.mrf.mxu0
      %v581 = vadd.f32 0.0, %v580
      %v582 = vpop.f32.mrf.mxu0
      %583 = vmatprep.mubr.bf16.mxu0 0
      %584 = vmatmul.mubr.bf16.gmra.mxu0 %v447
      %v585 = vpop.f32.mrf.mxu0
      %v586 = vadd.f32 0.0, %v585
      %v587 = vpop.f32.mrf.mxu0
      %v588 = vpop.f32.mrf.mxu0
      %v589 = vadd.f32 0.0, %v588
      %v590 = vpop.f32.mrf.mxu0
      %591 = vmatprep.mubr.bf16.mxu0 0
      %592 = vmatmul.mubr.bf16.gmra.mxu0 %v450
      %v593 = vpop.f32.mrf.mxu0
      %v594 = vadd.f32 0.0, %v593
      %v595 = vpop.f32.mrf.mxu0
      %v596 = vpop.f32.mrf.mxu0
      %v597 = vadd.f32 0.0, %v596
      %v598 = vpop.f32.mrf.mxu0
      %599 = vmatprep.mubr.bf16.mxu0 0
      %600 = vmatmul.mubr.bf16.gmra.mxu0 %v453
      %v601 = vpop.f32.mrf.mxu0
      %v602 = vadd.f32 0.0, %v601
      %v603 = vpop.f32.mrf.mxu0
      %v604 = vpop.f32.mrf.mxu0
      %v605 = vadd.f32 0.0, %v604
      %v606 = vpop.f32.mrf.mxu0
      %607 = vmatprep.mubr.bf16.mxu0 0
      %608 = vmatmul.mubr.bf16.gmra.mxu0 %v456
      %v609 = vpop.f32.mrf.mxu0
      %v610 = vadd.f32 0.0, %v609
      %v611 = vpop.f32.mrf.mxu0
      %v612 = vpop.f32.mrf.mxu0
      %v613 = vadd.f32 0.0, %v612
      %v614 = vpop.f32.mrf.mxu0
      %615 = vmatprep.mubr.bf16.mxu0 0
      %616 = vmatmul.mubr.bf16.gmra.mxu0 %v459
      %v617 = vpop.f32.mrf.mxu0
      %v618 = vadd.f32 0.0, %v617
      %v619 = vpop.f32.mrf.mxu0
      %v620 = vpop.f32.mrf.mxu0
      %v621 = vadd.f32 0.0, %v620
      %v622 = vpop.f32.mrf.mxu0
      %623 = vmatprep.mubr.bf16.mxu0 0
      %624 = vmatmul.mubr.bf16.gmra.mxu0 %v462
      %v625 = vpop.f32.mrf.mxu0
      %v626 = vadd.f32 0.0, %v625
      %v627 = vpop.f32.mrf.mxu0
      %v628 = vpop.f32.mrf.mxu0
      %v629 = vadd.f32 0.0, %v628
      %v630 = vpop.f32.mrf.mxu0
      %631 = vdwg.mxu0
      %v632 = vadd.f32 %v256, %v506
      %v633 = vadd.f32 %v257, %v509
      %v634 = vadd.f32 %v258, %v514
      %v635 = vadd.f32 %v259, %v517
      %v636 = vadd.f32 %v260, %v522
      %v637 = vadd.f32 %v261, %v525
      %v638 = vadd.f32 %v262, %v530
      %v639 = vadd.f32 %v263, %v533
      %v640 = vadd.f32 %v264, %v538
      %v641 = vadd.f32 %v265, %v541
      %v642 = vadd.f32 %v266, %v546
      %v643 = vadd.f32 %v267, %v549
      %v644 = vadd.f32 %v268, %v554
      %v645 = vadd.f32 %v269, %v557
      %v646 = vadd.f32 %v270, %v562
      %v647 = vadd.f32 %v271, %v565
      %v648 = vadd.f32 %v272, %v570
      %v649 = vadd.f32 %v273, %v573
      %v650 = vadd.f32 %v274, %v578
      %v651 = vadd.f32 %v275, %v581
      %v652 = vadd.f32 %v276, %v586
      %v653 = vadd.f32 %v277, %v589
      %v654 = vadd.f32 %v278, %v594
      %v655 = vadd.f32 %v279, %v597
      %v656 = vadd.f32 %v280, %v602
      %v657 = vadd.f32 %v281, %v605
      %v658 = vadd.f32 %v282, %v610
      %v659 = vadd.f32 %v283, %v613
      %v660 = vadd.f32 %v284, %v618
      %v661 = vadd.f32 %v285, %v621
      %v662 = vadd.f32 %v286, %v626
      %v663 = vadd.f32 %v287, %v629
      %664 = vst [vmem:[#allocation2] sm:$0xff] %v632
      %665 = vst [vmem:[#allocation2 + $0x8] sm:$0xff] %v633
      %666 = vst [vmem:[#allocation2 + $0x10] sm:$0xff] %v634
      %667 = vst [vmem:[#allocation2 + $0x18] sm:$0xff] %v635
      %668 = vst [vmem:[#allocation2 + $0x20] sm:$0xff] %v636
      %669 = vst [vmem:[#allocation2 + $0x28] sm:$0xff] %v637
      %670 = vst [vmem:[#allocation2 + $0x30] sm:$0xff] %v638
      %671 = vst [vmem:[#allocation2 + $0x38] sm:$0xff] %v639
      %672 = vst [vmem:[#allocation2 + $0x40] sm:$0xff] %v640
      %673 = vst [vmem:[#allocation2 + $0x48] sm:$0xff] %v641
      %674 = vst [vmem:[#allocation2 + $0x50] sm:$0xff] %v642
      %675 = vst [vmem:[#allocation2 + $0x58] sm:$0xff] %v643
      %676 = vst [vmem:[#allocation2 + $0x60] sm:$0xff] %v644
      %677 = vst [vmem:[#allocation2 + $0x68] sm:$0xff] %v645
      %678 = vst [vmem:[#allocation2 + $0x70] sm:$0xff] %v646
      %679 = vst [vmem:[#allocation2 + $0x78] sm:$0xff] %v647
      %680 = vst [vmem:[#allocation2 + $0x80] sm:$0xff] %v648
      %681 = vst [vmem:[#allocation2 + $0x88] sm:$0xff] %v649
      %682 = vst [vmem:[#allocation2 + $0x90] sm:$0xff] %v650
      %683 = vst [vmem:[#allocation2 + $0x98] sm:$0xff] %v651
      %684 = vst [vmem:[#allocation2 + $0xa0] sm:$0xff] %v652
      %685 = vst [vmem:[#allocation2 + $0xa8] sm:$0xff] %v653
      %686 = vst [vmem:[#allocation2 + $0xb0] sm:$0xff] %v654
      %687 = vst [vmem:[#allocation2 + $0xb8] sm:$0xff] %v655
      %688 = vst [vmem:[#allocation2 + $0xc0] sm:$0xff] %v656
      %689 = vst [vmem:[#allocation2 + $0xc8] sm:$0xff] %v657
      %690 = vst [vmem:[#allocation2 + $0xd0] sm:$0xff] %v658
      %691 = vst [vmem:[#allocation2 + $0xd8] sm:$0xff] %v659
      %692 = vst [vmem:[#allocation2 + $0xe0] sm:$0xff] %v660
      %693 = vst [vmem:[#allocation2 + $0xe8] sm:$0xff] %v661
      %694 = vst [vmem:[#allocation2 + $0xf0] sm:$0xff] %v662
      %695 = vst [vmem:[#allocation2 + $0xf8] sm:$0xff] %v663
      // Predicated region
      $region37: #{discriminator_forward.7} parent=31 // pred_check
        %p696 = pneg %p220
      $region38: #{discriminator_forward.7} parent=31 // pred_check_branch
        %698 = sbr.rel (%p696) target = $region40
      $region39: #{discriminator_forward.7} parent=31 // pred_region
        %v699 = vld [vmem:[#allocation2] sm:$0xff]
        %v700 = vld [vmem:[#allocation2 + $0x8] sm:$0xff]
        %v701 = vld [vmem:[#allocation2 + $0x10] sm:$0xff]
        %v702 = vld [vmem:[#allocation2 + $0x18] sm:$0xff]
        %v703 = vld [vmem:[#allocation2 + $0x20] sm:$0xff]
        %v704 = vld [vmem:[#allocation2 + $0x28] sm:$0xff]
        %v705 = vld [vmem:[#allocation2 + $0x30] sm:$0xff]
        %v706 = vld [vmem:[#allocation2 + $0x38] sm:$0xff]
        %v707 = vld [vmem:[#allocation2 + $0x40] sm:$0xff]
        %v708 = vld [vmem:[#allocation2 + $0x48] sm:$0xff]
        %v709 = vld [vmem:[#allocation2 + $0x50] sm:$0xff]
        %v710 = vld [vmem:[#allocation2 + $0x58] sm:$0xff]
        %v711 = vld [vmem:[#allocation2 + $0x60] sm:$0xff]
        %v712 = vld [vmem:[#allocation2 + $0x68] sm:$0xff]
        %v713 = vld [vmem:[#allocation2 + $0x70] sm:$0xff]
        %v714 = vld [vmem:[#allocation2 + $0x78] sm:$0xff]
        %v715 = vld [vmem:[#allocation2 + $0x80] sm:$0xff]
        %v716 = vld [vmem:[#allocation2 + $0x88] sm:$0xff]
        %v717 = vld [vmem:[#allocation2 + $0x90] sm:$0xff]
        %v718 = vld [vmem:[#allocation2 + $0x98] sm:$0xff]
        %v719 = vld [vmem:[#allocation2 + $0xa0] sm:$0xff]
        %v720 = vld [vmem:[#allocation2 + $0xa8] sm:$0xff]
        %v721 = vld [vmem:[#allocation2 + $0xb0] sm:$0xff]
        %v722 = vld [vmem:[#allocation2 + $0xb8] sm:$0xff]
        %v723 = vld [vmem:[#allocation2 + $0xc0] sm:$0xff]
        %v724 = vld [vmem:[#allocation2 + $0xc8] sm:$0xff]
        %v725 = vld [vmem:[#allocation2 + $0xd0] sm:$0xff]
        %v726 = vld [vmem:[#allocation2 + $0xd8] sm:$0xff]
        %v727 = vld [vmem:[#allocation2 + $0xe0] sm:$0xff]
        %v728 = vld [vmem:[#allocation2 + $0xe8] sm:$0xff]
        %v729 = vld [vmem:[#allocation2 + $0xf0] sm:$0xff]
        %v730 = vld [vmem:[#allocation2 + $0xf8] sm:$0xff]
        %v731 = vld [vmem:[%s2] sm:$0x1]
        %v733 = vlaneseq
        %v734 = vshrl.u32 %v733, 7
        %v735 = vsub.s32 0, %v734
        %v736 = vrot.slane %v731, %v735
        %v738 = vadd.f32 %v699, %v736
        %v739 = vadd.f32 %v700, %v736
        %v740 = vadd.f32 %v701, %v736
        %v741 = vadd.f32 %v702, %v736
        %v742 = vadd.f32 %v703, %v736
        %v743 = vadd.f32 %v704, %v736
        %v744 = vadd.f32 %v705, %v736
        %v745 = vadd.f32 %v706, %v736
        %v746 = vadd.f32 %v707, %v736
        %v747 = vadd.f32 %v708, %v736
        %v748 = vadd.f32 %v709, %v736
        %v749 = vadd.f32 %v710, %v736
        %v750 = vadd.f32 %v711, %v736
        %v751 = vadd.f32 %v712, %v736
        %v752 = vadd.f32 %v713, %v736
        %v753 = vadd.f32 %v714, %v736
        %v754 = vadd.f32 %v715, %v736
        %v755 = vadd.f32 %v716, %v736
        %v756 = vadd.f32 %v717, %v736
        %v757 = vadd.f32 %v718, %v736
        %v758 = vadd.f32 %v719, %v736
        %v759 = vadd.f32 %v720, %v736
        %v760 = vadd.f32 %v721, %v736
        %v761 = vadd.f32 %v722, %v736
        %v762 = vadd.f32 %v723, %v736
        %v763 = vadd.f32 %v724, %v736
        %v764 = vadd.f32 %v725, %v736
        %v765 = vadd.f32 %v726, %v736
        %v766 = vadd.f32 %v727, %v736
        %v767 = vadd.f32 %v728, %v736
        %v768 = vadd.f32 %v729, %v736
        %v769 = vadd.f32 %v730, %v736
        %vm770 = vcmp.ge.f32.partialorder %v738, 0.0
        %vm771 = vcmp.ge.f32.partialorder %v739, 0.0
        %vm772 = vcmp.ge.f32.partialorder %v740, 0.0
        %vm773 = vcmp.ge.f32.partialorder %v741, 0.0
        %vm774 = vcmp.ge.f32.partialorder %v742, 0.0
        %vm775 = vcmp.ge.f32.partialorder %v743, 0.0
        %vm776 = vcmp.ge.f32.partialorder %v744, 0.0
        %vm777 = vcmp.ge.f32.partialorder %v745, 0.0
        %vm778 = vcmp.ge.f32.partialorder %v746, 0.0
        %vm779 = vcmp.ge.f32.partialorder %v747, 0.0
        %vm780 = vcmp.ge.f32.partialorder %v748, 0.0
        %vm781 = vcmp.ge.f32.partialorder %v749, 0.0
        %vm782 = vcmp.ge.f32.partialorder %v750, 0.0
        %vm783 = vcmp.ge.f32.partialorder %v751, 0.0
        %vm784 = vcmp.ge.f32.partialorder %v752, 0.0
        %vm785 = vcmp.ge.f32.partialorder %v753, 0.0
        %vm786 = vcmp.ge.f32.partialorder %v754, 0.0
        %vm787 = vcmp.ge.f32.partialorder %v755, 0.0
        %vm788 = vcmp.ge.f32.partialorder %v756, 0.0
        %vm789 = vcmp.ge.f32.partialorder %v757, 0.0
        %vm790 = vcmp.ge.f32.partialorder %v758, 0.0
        %vm791 = vcmp.ge.f32.partialorder %v759, 0.0
        %vm792 = vcmp.ge.f32.partialorder %v760, 0.0
        %vm793 = vcmp.ge.f32.partialorder %v761, 0.0
        %vm794 = vcmp.ge.f32.partialorder %v762, 0.0
        %vm795 = vcmp.ge.f32.partialorder %v763, 0.0
        %vm796 = vcmp.ge.f32.partialorder %v764, 0.0
        %vm797 = vcmp.ge.f32.partialorder %v765, 0.0
        %vm798 = vcmp.ge.f32.partialorder %v766, 0.0
        %vm799 = vcmp.ge.f32.partialorder %v767, 0.0
        %vm800 = vcmp.ge.f32.partialorder %v768, 0.0
        %vm801 = vcmp.ge.f32.partialorder %v769, 0.0
        %v802 = vmul.f32 %v738, 0.2
        %v803 = vmul.f32 %v739, 0.2
        %v804 = vmul.f32 %v740, 0.2
        %v805 = vmul.f32 %v741, 0.2
        %v806 = vmul.f32 %v742, 0.2
        %v807 = vmul.f32 %v743, 0.2
        %v808 = vmul.f32 %v744, 0.2
        %v809 = vmul.f32 %v745, 0.2
        %v810 = vmul.f32 %v746, 0.2
        %v811 = vmul.f32 %v747, 0.2
        %v812 = vmul.f32 %v748, 0.2
        %v813 = vmul.f32 %v749, 0.2
        %v814 = vmul.f32 %v750, 0.2
        %v815 = vmul.f32 %v751, 0.2
        %v816 = vmul.f32 %v752, 0.2
        %v817 = vmul.f32 %v753, 0.2
        %v818 = vmul.f32 %v754, 0.2
        %v819 = vmul.f32 %v755, 0.2
        %v820 = vmul.f32 %v756, 0.2
        %v821 = vmul.f32 %v757, 0.2
        %v822 = vmul.f32 %v758, 0.2
        %v823 = vmul.f32 %v759, 0.2
        %v824 = vmul.f32 %v760, 0.2
        %v825 = vmul.f32 %v761, 0.2
        %v826 = vmul.f32 %v762, 0.2
        %v827 = vmul.f32 %v763, 0.2
        %v828 = vmul.f32 %v764, 0.2
        %v829 = vmul.f32 %v765, 0.2
        %v830 = vmul.f32 %v766, 0.2
        %v831 = vmul.f32 %v767, 0.2
        %v832 = vmul.f32 %v768, 0.2
        %v833 = vmul.f32 %v769, 0.2
        %v834 = vsel %vm770, %v738, %v802
        %v835 = vsel %vm771, %v739, %v803
        %v836 = vsel %vm772, %v740, %v804
        %v837 = vsel %vm773, %v741, %v805
        %v838 = vsel %vm774, %v742, %v806
        %v839 = vsel %vm775, %v743, %v807
        %v840 = vsel %vm776, %v744, %v808
        %v841 = vsel %vm777, %v745, %v809
        %v842 = vsel %vm778, %v746, %v810
        %v843 = vsel %vm779, %v747, %v811
        %v844 = vsel %vm780, %v748, %v812
        %v845 = vsel %vm781, %v749, %v813
        %v846 = vsel %vm782, %v750, %v814
        %v847 = vsel %vm783, %v751, %v815
        %v848 = vsel %vm784, %v752, %v816
        %v849 = vsel %vm785, %v753, %v817
        %v850 = vsel %vm786, %v754, %v818
        %v851 = vsel %vm787, %v755, %v819
        %v852 = vsel %vm788, %v756, %v820
        %v853 = vsel %vm789, %v757, %v821
        %v854 = vsel %vm790, %v758, %v822
        %v855 = vsel %vm791, %v759, %v823
        %v856 = vsel %vm792, %v760, %v824
        %v857 = vsel %vm793, %v761, %v825
        %v858 = vsel %vm794, %v762, %v826
        %v859 = vsel %vm795, %v763, %v827
        %v860 = vsel %vm796, %v764, %v828
        %v861 = vsel %vm797, %v765, %v829
        %v862 = vsel %vm798, %v766, %v830
        %v863 = vsel %vm799, %v767, %v831
        %v864 = vsel %vm800, %v768, %v832
        %v865 = vsel %vm801, %v769, %v833
        %v866 = vpack.c.bf16 %v835, %v834
        %v867 = vpack.c.bf16 %v837, %v836
        %v868 = vpack.c.bf16 %v839, %v838
        %v869 = vpack.c.bf16 %v841, %v840
        %v870 = vpack.c.bf16 %v843, %v842
        %v871 = vpack.c.bf16 %v845, %v844
        %v872 = vpack.c.bf16 %v847, %v846
        %v873 = vpack.c.bf16 %v849, %v848
        %v874 = vpack.c.bf16 %v851, %v850
        %v875 = vpack.c.bf16 %v853, %v852
        %v876 = vpack.c.bf16 %v855, %v854
        %v877 = vpack.c.bf16 %v857, %v856
        %v878 = vpack.c.bf16 %v859, %v858
        %v879 = vpack.c.bf16 %v861, %v860
        %v880 = vpack.c.bf16 %v863, %v862
        %v881 = vpack.c.bf16 %v865, %v864
        %v898 = vunpack.c.l.b16 %v866
        %v899 = vunpack.c.h.b16 %v866
        %v900 = vunpack.c.l.b16 %v867
        %v901 = vunpack.c.h.b16 %v867
        %v902 = vunpack.c.l.b16 %v868
        %v903 = vunpack.c.h.b16 %v868
        %v904 = vunpack.c.l.b16 %v869
        %v905 = vunpack.c.h.b16 %v869
        %v906 = vunpack.c.l.b16 %v870
        %v907 = vunpack.c.h.b16 %v870
        %v908 = vunpack.c.l.b16 %v871
        %v909 = vunpack.c.h.b16 %v871
        %v910 = vunpack.c.l.b16 %v872
        %v911 = vunpack.c.h.b16 %v872
        %v912 = vunpack.c.l.b16 %v873
        %v913 = vunpack.c.h.b16 %v873
        %v914 = vunpack.c.l.b16 %v874
        %v915 = vunpack.c.h.b16 %v874
        %v916 = vunpack.c.l.b16 %v875
        %v917 = vunpack.c.h.b16 %v875
        %v918 = vunpack.c.l.b16 %v876
        %v919 = vunpack.c.h.b16 %v876
        %v920 = vunpack.c.l.b16 %v877
        %v921 = vunpack.c.h.b16 %v877
        %v922 = vunpack.c.l.b16 %v878
        %v923 = vunpack.c.h.b16 %v878
        %v924 = vunpack.c.l.b16 %v879
        %v925 = vunpack.c.h.b16 %v879
        %v926 = vunpack.c.l.b16 %v880
        %v927 = vunpack.c.h.b16 %v880
        %v928 = vunpack.c.l.b16 %v881
        %v929 = vunpack.c.h.b16 %v881
        %v930 = vpack.c.b16 %v898, %v898
        %v931 = vpack.c.b16 %v899, %v899
        %v932 = vpack.c.b16 %v900, %v900
        %v933 = vpack.c.b16 %v901, %v901
        %v934 = vpack.c.b16 %v902, %v902
        %v935 = vpack.c.b16 %v903, %v903
        %v936 = vpack.c.b16 %v904, %v904
        %v937 = vpack.c.b16 %v905, %v905
        %v938 = vpack.c.b16 %v906, %v906
        %v939 = vpack.c.b16 %v907, %v907
        %v940 = vpack.c.b16 %v908, %v908
        %v941 = vpack.c.b16 %v909, %v909
        %v942 = vpack.c.b16 %v910, %v910
        %v943 = vpack.c.b16 %v911, %v911
        %v944 = vpack.c.b16 %v912, %v912
        %v945 = vpack.c.b16 %v913, %v913
        %v946 = vpack.c.b16 %v914, %v914
        %v947 = vpack.c.b16 %v915, %v915
        %v948 = vpack.c.b16 %v916, %v916
        %v949 = vpack.c.b16 %v917, %v917
        %v950 = vpack.c.b16 %v918, %v918
        %v951 = vpack.c.b16 %v919, %v919
        %v952 = vpack.c.b16 %v920, %v920
        %v953 = vpack.c.b16 %v921, %v921
        %v954 = vpack.c.b16 %v922, %v922
        %v955 = vpack.c.b16 %v923, %v923
        %v956 = vpack.c.b16 %v924, %v924
        %v957 = vpack.c.b16 %v925, %v925
        %v958 = vpack.c.b16 %v926, %v926
        %v959 = vpack.c.b16 %v927, %v927
        %v960 = vpack.c.b16 %v928, %v928
        %v961 = vpack.c.b16 %v929, %v929
        %994 = vst [vmem:[%s217] sm:$0xf] %v930
        %995 = vst [vmem:[%s217 + $0x4] sm:$0xf] %v931
        %996 = vst [vmem:[%s217 + $0x8] sm:$0xf] %v932
        %997 = vst [vmem:[%s217 + $0xc] sm:$0xf] %v933
        %998 = vst [vmem:[%s217 + $0x10] sm:$0xf] %v934
        %999 = vst [vmem:[%s217 + $0x14] sm:$0xf] %v935
        %1000 = vst [vmem:[%s217 + $0x18] sm:$0xf] %v936
        %1001 = vst [vmem:[%s217 + $0x1c] sm:$0xf] %v937
        %1002 = vst [vmem:[%s217 + $0x20] sm:$0xf] %v938
        %1003 = vst [vmem:[%s217 + $0x24] sm:$0xf] %v939
        %1004 = vst [vmem:[%s217 + $0x28] sm:$0xf] %v940
        %1005 = vst [vmem:[%s217 + $0x2c] sm:$0xf] %v941
        %1006 = vst [vmem:[%s217 + $0x30] sm:$0xf] %v942
        %1007 = vst [vmem:[%s217 + $0x34] sm:$0xf] %v943
        %1008 = vst [vmem:[%s217 + $0x38] sm:$0xf] %v944
        %1009 = vst [vmem:[%s217 + $0x3c] sm:$0xf] %v945
        %1010 = vst [vmem:[%s217 + $0x40] sm:$0xf] %v946
        %1011 = vst [vmem:[%s217 + $0x44] sm:$0xf] %v947
        %1012 = vst [vmem:[%s217 + $0x48] sm:$0xf] %v948
        %1013 = vst [vmem:[%s217 + $0x4c] sm:$0xf] %v949
        %1014 = vst [vmem:[%s217 + $0x50] sm:$0xf] %v950
        %1015 = vst [vmem:[%s217 + $0x54] sm:$0xf] %v951
        %1016 = vst [vmem:[%s217 + $0x58] sm:$0xf] %v952
        %1017 = vst [vmem:[%s217 + $0x5c] sm:$0xf] %v953
        %1018 = vst [vmem:[%s217 + $0x60] sm:$0xf] %v954
        %1019 = vst [vmem:[%s217 + $0x64] sm:$0xf] %v955
        %1020 = vst [vmem:[%s217 + $0x68] sm:$0xf] %v956
        %1021 = vst [vmem:[%s217 + $0x6c] sm:$0xf] %v957
        %1022 = vst [vmem:[%s217 + $0x70] sm:$0xf] %v958
        %1023 = vst [vmem:[%s217 + $0x74] sm:$0xf] %v959
        %1024 = vst [vmem:[%s217 + $0x78] sm:$0xf] %v960
        %1025 = vst [vmem:[%s217 + $0x7c] sm:$0xf] %v961
      $region40: #{discriminator_forward.7} parent=31 // pred_fallthru
        _
      %s1026 = smul.u32 32, %s18
      %p1027 = scmp.lt.s32.totalorder %s1026, 63
      %s1028 = scalar_select %p1027, %s1026, 63
      %s1029 = smul.addr %s1028, 4
      %s1030 = scalar_lea.vmem %s3, %s1029
      // Predicated region
      $region41: #{discriminator_forward.7} parent=31 // pred_check
        %p1031 = pneg %p119
      $region42: #{discriminator_forward.7} parent=31 // pred_check_branch
        %1033 = sbr.rel (%p1031) target = $region44
      $region43: #{discriminator_forward.7} parent=31 // pred_region
        %s1034 = smul.u32 32, %s18
      $region44: #{discriminator_forward.7} parent=31 // pred_fallthru
        _
    $region32: #{discriminator_forward.7} parent=5 // pred_fallthru
      _
    %p1035 = scmp.le.s32.totalorder 2, %s9
    // Predicated region
    $region45: #{discriminator_forward.7} parent=5 // pred_check
      %p1036 = pneg %p1035
    $region46: #{discriminator_forward.7} parent=5 // pred_check_branch
      %1038 = sbr.rel (%p1036) target = $region48
    $region47: #{discriminator_forward.7} parent=5 // pred_region
      %s1039 = ssub.s32 %s9, 2
      // Predicated region
      $region49: #{discriminator_forward.7} parent=47 // pred_check
        %p1040 = pneg %p125
      $region50: #{discriminator_forward.7} parent=47 // pred_check_branch
        %1042 = sbr.rel (%p1040) target = $region52
      $region51: #{discriminator_forward.7} parent=47 // pred_region
        %s1043 = smul.u32 32, %s20
        %p1044 = scmp.lt.s32.totalorder %s1043, 63
        %s1045 = scalar_select %p1044, %s1043, 63
        %s1046 = smul.addr %s1045, 4
        %s1047 = scalar_lea.vmem %s3, %s1046
      $region52: #{discriminator_forward.7} parent=47 // pred_fallthru
        _
    $region48: #{discriminator_forward.7} parent=5 // pred_fallthru
      _
  $region6: #{discriminator_forward.7} parent=0 // loop_footer
    %s13 = sadd.s32 1, %s9
  $region7: #{discriminator_forward.7} parent=0 // loop_footer_branch
    %8 = sbr.rel target = $region3
  $region8: #{discriminator_forward.7} parent=0 // loop_exit
    _

// kernel: custom-call.2
$region0: #{custom-call.2}
  %s0 = inlined_call_operand.vmem [shape: f32[128], index: 0, kind: output, shape index: {}]

// kernel: discriminator_forward.8
$region0: #{discriminator_forward.8}
  #allocation0 [shape = 'u32[]', space=smem, size = 0x4, offset = 0x4, fixed_abs, tag = 'smem constant byte address 0x4 - core index']
  #allocation1 [shape = 'u32[144,128]{1,0:T(1,128)}', space=vmem, size = 0x12000, scoped, tag = 'internal scratch']
  #allocation2 [shape = 'f32[128,128]{1,0:T(8,128)}', space=vmem, size = 0x10000, scoped, tag = 'scratch operand']
  %s0 = inlined_call_operand.vmem [shape: bf16[128,576], index: 0, kind: input, shape index: {}]
  %s1 = inlined_call_operand.vmem [shape: bf16[576,128], index: 1, kind: input, shape index: {}]
  %s2 = inlined_call_operand.vmem [shape: f32[1,128], index: 2, kind: input, shape index: {}]
  %s3 = inlined_call_operand.vmem [shape: bf16[128,128], index: 3, kind: output, shape index: {}]
  %s4 = sld [smem:[#allocation0]]
  $region30: #{discriminator_forward.8} parent=0
    _
  %s6 = ssub.s32 1, %s4
  %s7 = scalar_select 0, %s6, %s4
  // Predicated region
  $region2: #{discriminator_forward.8} parent=0 // pred_check
    _
  $region3: #{discriminator_forward.8} parent=0 // pred_check_branch
    %9 = sbr.rel (0) target = $region5
  $region4: #{discriminator_forward.8} parent=0 // pred_region
    _
  $region5: #{discriminator_forward.8} parent=0 // pred_fallthru
    _
  // Predicated region
  $region6: #{discriminator_forward.8} parent=0 // pred_check
    _
  $region7: #{discriminator_forward.8} parent=0 // pred_check_branch
    %11 = sbr.rel (0) target = $region9
  $region8: #{discriminator_forward.8} parent=0 // pred_region
    _
  $region9: #{discriminator_forward.8} parent=0 // pred_fallthru
    _
  // Predicated region
  $region10: #{discriminator_forward.8} parent=0 // pred_check
    _
  $region11: #{discriminator_forward.8} parent=0 // pred_check_branch
    %13 = sbr.rel (0) target = $region13
  $region12: #{discriminator_forward.8} parent=0 // pred_region
    _
  $region13: #{discriminator_forward.8} parent=0 // pred_fallthru
    _
  %p15 = scmp.eq.s32.totalorder 0, 0
  // Predicated region
  $region14: #{discriminator_forward.8} parent=0 // pred_check
    %p16 = pneg %p15
  $region15: #{discriminator_forward.8} parent=0 // pred_check_branch
    %18 = sbr.rel (%p16) target = $region17
  $region16: #{discriminator_forward.8} parent=0 // pred_region
    %19 = vst [vmem:[#allocation2] sm:$0xff] 0.0
    %20 = vst [vmem:[#allocation2 + $0x8] sm:$0xff] 0.0
    %21 = vst [vmem:[#allocation2 + $0x10] sm:$0xff] 0.0
    %22 = vst [vmem:[#allocation2 + $0x18] sm:$0xff] 0.0
    %23 = vst [vmem:[#allocation2 + $0x20] sm:$0xff] 0.0
    %24 = vst [vmem:[#allocation2 + $0x28] sm:$0xff] 0.0
    %25 = vst [vmem:[#allocation2 + $0x30] sm:$0xff] 0.0
    %26 = vst [vmem:[#allocation2 + $0x38] sm:$0xff] 0.0
    %27 = vst [vmem:[#allocation2 + $0x40] sm:$0xff] 0.0
    %28 = vst [vmem:[#allocation2 + $0x48] sm:$0xff] 0.0
    %29 = vst [vmem:[#allocation2 + $0x50] sm:$0xff] 0.0
    %30 = vst [vmem:[#allocation2 + $0x58] sm:$0xff] 0.0
    %31 = vst [vmem:[#allocation2 + $0x60] sm:$0xff] 0.0
    %32 = vst [vmem:[#allocation2 + $0x68] sm:$0xff] 0.0
    %33 = vst [vmem:[#allocation2 + $0x70] sm:$0xff] 0.0
    %34 = vst [vmem:[#allocation2 + $0x78] sm:$0xff] 0.0
  $region17: #{discriminator_forward.8} parent=0 // pred_fallthru
    _
  %v35 = vld [vmem:[#allocation2] sm:$0xff]
  %v36 = vld [vmem:[#allocation2 + $0x8] sm:$0xff]
  %v37 = vld [vmem:[#allocation2 + $0x10] sm:$0xff]
  %v38 = vld [vmem:[#allocation2 + $0x18] sm:$0xff]
  %v39 = vld [vmem:[#allocation2 + $0x20] sm:$0xff]
  %v40 = vld [vmem:[#allocation2 + $0x28] sm:$0xff]
  %v41 = vld [vmem:[#allocation2 + $0x30] sm:$0xff]
  %v42 = vld [vmem:[#allocation2 + $0x38] sm:$0xff]
  %v43 = vld [vmem:[#allocation2 + $0x40] sm:$0xff]
  %v44 = vld [vmem:[#allocation2 + $0x48] sm:$0xff]
  %v45 = vld [vmem:[#allocation2 + $0x50] sm:$0xff]
  %v46 = vld [vmem:[#allocation2 + $0x58] sm:$0xff]
  %v47 = vld [vmem:[#allocation2 + $0x60] sm:$0xff]
  %v48 = vld [vmem:[#allocation2 + $0x68] sm:$0xff]
  %v49 = vld [vmem:[#allocation2 + $0x70] sm:$0xff]
  %v50 = vld [vmem:[#allocation2 + $0x78] sm:$0xff]
  %v51 = vld [vmem:[%s0] sm:$0xff]
  %v52 = vld [vmem:[%s0 + $0x8] sm:$0xff]
  %v53 = vld [vmem:[%s0 + $0x10] sm:$0xf]
  %v54 = vld [vmem:[%s0 + $0x14] sm:$0xff]
  %v55 = vld [vmem:[%s0 + $0x1c] sm:$0xff]
  %v56 = vld [vmem:[%s0 + $0x24] sm:$0xf]
  %v57 = vld [vmem:[%s0 + $0x28] sm:$0xff]
  %v58 = vld [vmem:[%s0 + $0x30] sm:$0xff]
  %v59 = vld [vmem:[%s0 + $0x38] sm:$0xf]
  %v60 = vld [vmem:[%s0 + $0x3c] sm:$0xff]
  %v61 = vld [vmem:[%s0 + $0x44] sm:$0xff]
  %v62 = vld [vmem:[%s0 + $0x4c] sm:$0xf]
  %v63 = vld [vmem:[%s0 + $0x50] sm:$0xff]
  %v64 = vld [vmem:[%s0 + $0x58] sm:$0xff]
  %v65 = vld [vmem:[%s0 + $0x60] sm:$0xf]
  %v66 = vld [vmem:[%s0 + $0x64] sm:$0xff]
  %v67 = vld [vmem:[%s0 + $0x6c] sm:$0xff]
  %v68 = vld [vmem:[%s0 + $0x74] sm:$0xf]
  %v69 = vld [vmem:[%s0 + $0x78] sm:$0xff]
  %v70 = vld [vmem:[%s0 + $0x80] sm:$0xff]
  %v71 = vld [vmem:[%s0 + $0x88] sm:$0xf]
  %v72 = vld [vmem:[%s0 + $0x8c] sm:$0xff]
  %v73 = vld [vmem:[%s0 + $0x94] sm:$0xff]
  %v74 = vld [vmem:[%s0 + $0x9c] sm:$0xf]
  %v75 = vld [vmem:[%s0 + $0xa0] sm:$0xff]
  %v76 = vld [vmem:[%s0 + $0xa8] sm:$0xff]
  %v77 = vld [vmem:[%s0 + $0xb0] sm:$0xf]
  %v78 = vld [vmem:[%s0 + $0xb4] sm:$0xff]
  %v79 = vld [vmem:[%s0 + $0xbc] sm:$0xff]
  %v80 = vld [vmem:[%s0 + $0xc4] sm:$0xf]
  %v81 = vld [vmem:[%s0 + $0xc8] sm:$0xff]
  %v82 = vld [vmem:[%s0 + $0xd0] sm:$0xff]
  %v83 = vld [vmem:[%s0 + $0xd8] sm:$0xf]
  %v84 = vld [vmem:[%s0 + $0xdc] sm:$0xff]
  %v85 = vld [vmem:[%s0 + $0xe4] sm:$0xff]
  %v86 = vld [vmem:[%s0 + $0xec] sm:$0xf]
  %v87 = vld [vmem:[%s0 + $0xf0] sm:$0xff]
  %v88 = vld [vmem:[%s0 + $0xf8] sm:$0xff]
  %v89 = vld [vmem:[%s0 + $0x100] sm:$0xf]
  %v90 = vld [vmem:[%s0 + $0x104] sm:$0xff]
  %v91 = vld [vmem:[%s0 + $0x10c] sm:$0xff]
  %v92 = vld [vmem:[%s0 + $0x114] sm:$0xf]
  %v93 = vld [vmem:[%s0 + $0x118] sm:$0xff]
  %v94 = vld [vmem:[%s0 + $0x120] sm:$0xff]
  %v95 = vld [vmem:[%s0 + $0x128] sm:$0xf]
  %v96 = vld [vmem:[%s0 + $0x12c] sm:$0xff]
  %v97 = vld [vmem:[%s0 + $0x134] sm:$0xff]
  %v98 = vld [vmem:[%s0 + $0x13c] sm:$0xf]
  %v99 = vld [vmem:[%s1] sm:$0xf]
  %v100 = vld [vmem:[%s1 + $0x4] sm:$0xf]
  %v101 = vld [vmem:[%s1 + $0x8] sm:$0xf]
  %v102 = vld [vmem:[%s1 + $0xc] sm:$0xf]
  %v103 = vld [vmem:[%s1 + $0x10] sm:$0xf]
  %v104 = vld [vmem:[%s1 + $0x14] sm:$0xf]
  %v105 = vld [vmem:[%s1 + $0x18] sm:$0xf]
  %v106 = vld [vmem:[%s1 + $0x1c] sm:$0xf]
  %v107 = vld [vmem:[%s1 + $0x20] sm:$0xf]
  %v108 = vld [vmem:[%s1 + $0x24] sm:$0xf]
  %v109 = vld [vmem:[%s1 + $0x28] sm:$0xf]
  %v110 = vld [vmem:[%s1 + $0x2c] sm:$0xf]
  %v111 = vld [vmem:[%s1 + $0x30] sm:$0xf]
  %v112 = vld [vmem:[%s1 + $0x34] sm:$0xf]
  %v113 = vld [vmem:[%s1 + $0x38] sm:$0xf]
  %v114 = vld [vmem:[%s1 + $0x3c] sm:$0xf]
  %v115 = vld [vmem:[%s1 + $0x40] sm:$0xf]
  %v116 = vld [vmem:[%s1 + $0x44] sm:$0xf]
  %v117 = vld [vmem:[%s1 + $0x48] sm:$0xf]
  %v118 = vld [vmem:[%s1 + $0x4c] sm:$0xf]
  %v119 = vld [vmem:[%s1 + $0x50] sm:$0xf]
  %v120 = vld [vmem:[%s1 + $0x54] sm:$0xf]
  %v121 = vld [vmem:[%s1 + $0x58] sm:$0xf]
  %v122 = vld [vmem:[%s1 + $0x5c] sm:$0xf]
  %v123 = vld [vmem:[%s1 + $0x60] sm:$0xf]
  %v124 = vld [vmem:[%s1 + $0x64] sm:$0xf]
  %v125 = vld [vmem:[%s1 + $0x68] sm:$0xf]
  %v126 = vld [vmem:[%s1 + $0x6c] sm:$0xf]
  %v127 = vld [vmem:[%s1 + $0x70] sm:$0xf]
  %v128 = vld [vmem:[%s1 + $0x74] sm:$0xf]
  %v129 = vld [vmem:[%s1 + $0x78] sm:$0xf]
  %v130 = vld [vmem:[%s1 + $0x7c] sm:$0xf]
  %v131 = vld [vmem:[%s1 + $0x80] sm:$0xf]
  %v132 = vld [vmem:[%s1 + $0x84] sm:$0xf]
  %v133 = vld [vmem:[%s1 + $0x88] sm:$0xf]
  %v134 = vld [vmem:[%s1 + $0x8c] sm:$0xf]
  %v135 = vld [vmem:[%s1 + $0x90] sm:$0xf]
  %v136 = vld [vmem:[%s1 + $0x94] sm:$0xf]
  %v137 = vld [vmem:[%s1 + $0x98] sm:$0xf]
  %v138 = vld [vmem:[%s1 + $0x9c] sm:$0xf]
  %v139 = vld [vmem:[%s1 + $0xa0] sm:$0xf]
  %v140 = vld [vmem:[%s1 + $0xa4] sm:$0xf]
  %v141 = vld [vmem:[%s1 + $0xa8] sm:$0xf]
  %v142 = vld [vmem:[%s1 + $0xac] sm:$0xf]
  %v143 = vld [vmem:[%s1 + $0xb0] sm:$0xf]
  %v144 = vld [vmem:[%s1 + $0xb4] sm:$0xf]
  %v145 = vld [vmem:[%s1 + $0xb8] sm:$0xf]
  %v146 = vld [vmem:[%s1 + $0xbc] sm:$0xf]
  %v147 = vld [vmem:[%s1 + $0xc0] sm:$0xf]
  %v148 = vld [vmem:[%s1 + $0xc4] sm:$0xf]
  %v149 = vld [vmem:[%s1 + $0xc8] sm:$0xf]
  %v150 = vld [vmem:[%s1 + $0xcc] sm:$0xf]
  %v151 = vld [vmem:[%s1 + $0xd0] sm:$0xf]
  %v152 = vld [vmem:[%s1 + $0xd4] sm:$0xf]
  %v153 = vld [vmem:[%s1 + $0xd8] sm:$0xf]
  %v154 = vld [vmem:[%s1 + $0xdc] sm:$0xf]
  %v155 = vld [vmem:[%s1 + $0xe0] sm:$0xf]
  %v156 = vld [vmem:[%s1 + $0xe4] sm:$0xf]
  %v157 = vld [vmem:[%s1 + $0xe8] sm:$0xf]
  %v158 = vld [vmem:[%s1 + $0xec] sm:$0xf]
  %v159 = vld [vmem:[%s1 + $0xf0] sm:$0xf]
  %v160 = vld [vmem:[%s1 + $0xf4] sm:$0xf]
  %v161 = vld [vmem:[%s1 + $0xf8] sm:$0xf]
  %v162 = vld [vmem:[%s1 + $0xfc] sm:$0xf]
  %v163 = vld [vmem:[%s1 + $0x100] sm:$0xf]
  %v164 = vld [vmem:[%s1 + $0x104] sm:$0xf]
  %v165 = vld [vmem:[%s1 + $0x108] sm:$0xf]
  %v166 = vld [vmem:[%s1 + $0x10c] sm:$0xf]
  %v167 = vld [vmem:[%s1 + $0x110] sm:$0xf]
  %v168 = vld [vmem:[%s1 + $0x114] sm:$0xf]
  %v169 = vld [vmem:[%s1 + $0x118] sm:$0xf]
  %v170 = vld [vmem:[%s1 + $0x11c] sm:$0xf]
  %v219 = vunpack.c.l.b16 %v51
  %v220 = vunpack.c.h.b16 %v51
  %v221 = vunpack.c.l.b16 %v52
  %v222 = vunpack.c.h.b16 %v52
  %v223 = vunpack.c.l.b16 %v53
  %v224 = vunpack.c.l.b16 %v54
  %v225 = vunpack.c.h.b16 %v54
  %v226 = vunpack.c.l.b16 %v55
  %v227 = vunpack.c.h.b16 %v55
  %v228 = vunpack.c.l.b16 %v56
  %v229 = vunpack.c.l.b16 %v57
  %v230 = vunpack.c.h.b16 %v57
  %v231 = vunpack.c.l.b16 %v58
  %v232 = vunpack.c.h.b16 %v58
  %v233 = vunpack.c.l.b16 %v59
  %v234 = vunpack.c.l.b16 %v60
  %v235 = vunpack.c.h.b16 %v60
  %v236 = vunpack.c.l.b16 %v61
  %v237 = vunpack.c.h.b16 %v61
  %v238 = vunpack.c.l.b16 %v62
  %v239 = vunpack.c.l.b16 %v63
  %v240 = vunpack.c.h.b16 %v63
  %v241 = vunpack.c.l.b16 %v64
  %v242 = vunpack.c.h.b16 %v64
  %v243 = vunpack.c.l.b16 %v65
  %v244 = vunpack.c.l.b16 %v66
  %v245 = vunpack.c.h.b16 %v66
  %v246 = vunpack.c.l.b16 %v67
  %v247 = vunpack.c.h.b16 %v67
  %v248 = vunpack.c.l.b16 %v68
  %v249 = vunpack.c.l.b16 %v69
  %v250 = vunpack.c.h.b16 %v69
  %v251 = vunpack.c.l.b16 %v70
  %v252 = vunpack.c.h.b16 %v70
  %v253 = vunpack.c.l.b16 %v71
  %v254 = vunpack.c.l.b16 %v72
  %v255 = vunpack.c.h.b16 %v72
  %v256 = vunpack.c.l.b16 %v73
  %v257 = vunpack.c.h.b16 %v73
  %v258 = vunpack.c.l.b16 %v74
  %v259 = vunpack.c.l.b16 %v75
  %v260 = vunpack.c.h.b16 %v75
  %v261 = vunpack.c.l.b16 %v76
  %v262 = vunpack.c.h.b16 %v76
  %v263 = vunpack.c.l.b16 %v77
  %v264 = vunpack.c.l.b16 %v78
  %v265 = vunpack.c.h.b16 %v78
  %v266 = vunpack.c.l.b16 %v79
  %v267 = vunpack.c.h.b16 %v79
  %v268 = vunpack.c.l.b16 %v80
  %v269 = vunpack.c.l.b16 %v81
  %v270 = vunpack.c.h.b16 %v81
  %v271 = vunpack.c.l.b16 %v82
  %v272 = vunpack.c.h.b16 %v82
  %v273 = vunpack.c.l.b16 %v83
  %v274 = vunpack.c.l.b16 %v84
  %v275 = vunpack.c.h.b16 %v84
  %v276 = vunpack.c.l.b16 %v85
  %v277 = vunpack.c.h.b16 %v85
  %v278 = vunpack.c.l.b16 %v86
  %v279 = vunpack.c.l.b16 %v87
  %v280 = vunpack.c.h.b16 %v87
  %v281 = vunpack.c.l.b16 %v88
  %v282 = vunpack.c.h.b16 %v88
  %v283 = vunpack.c.l.b16 %v89
  %v284 = vunpack.c.l.b16 %v90
  %v285 = vunpack.c.h.b16 %v90
  %v286 = vunpack.c.l.b16 %v91
  %v287 = vunpack.c.h.b16 %v91
  %v288 = vunpack.c.l.b16 %v92
  %v289 = vunpack.c.l.b16 %v93
  %v290 = vunpack.c.h.b16 %v93
  %v291 = vunpack.c.l.b16 %v94
  %v292 = vunpack.c.h.b16 %v94
  %v293 = vunpack.c.l.b16 %v95
  %v294 = vunpack.c.l.b16 %v96
  %v295 = vunpack.c.h.b16 %v96
  %v296 = vunpack.c.l.b16 %v97
  %v297 = vunpack.c.h.b16 %v97
  %v298 = vunpack.c.l.b16 %v98
  %v299 = vpack.c.b16 %v224, %v219
  %v300 = vpack.c.b16 %v225, %v220
  %v301 = vpack.c.b16 %v226, %v221
  %v302 = vpack.c.b16 %v227, %v222
  %v303 = vpack.c.b16 %v228, %v223
  %v304 = vpack.c.b16 %v234, %v229
  %v305 = vpack.c.b16 %v235, %v230
  %v306 = vpack.c.b16 %v236, %v231
  %v307 = vpack.c.b16 %v237, %v232
  %v308 = vpack.c.b16 %v238, %v233
  %v309 = vpack.c.b16 %v244, %v239
  %v310 = vpack.c.b16 %v245, %v240
  %v311 = vpack.c.b16 %v246, %v241
  %v312 = vpack.c.b16 %v247, %v242
  %v313 = vpack.c.b16 %v248, %v243
  %v314 = vpack.c.b16 %v254, %v249
  %v315 = vpack.c.b16 %v255, %v250
  %v316 = vpack.c.b16 %v256, %v251
  %v317 = vpack.c.b16 %v257, %v252
  %v318 = vpack.c.b16 %v258, %v253
  %v319 = vpack.c.b16 %v264, %v259
  %v320 = vpack.c.b16 %v265, %v260
  %v321 = vpack.c.b16 %v266, %v261
  %v322 = vpack.c.b16 %v267, %v262
  %v323 = vpack.c.b16 %v268, %v263
  %v324 = vpack.c.b16 %v274, %v269
  %v325 = vpack.c.b16 %v275, %v270
  %v326 = vpack.c.b16 %v276, %v271
  %v327 = vpack.c.b16 %v277, %v272
  %v328 = vpack.c.b16 %v278, %v273
  %v329 = vpack.c.b16 %v284, %v279
  %v330 = vpack.c.b16 %v285, %v280
  %v331 = vpack.c.b16 %v286, %v281
  %v332 = vpack.c.b16 %v287, %v282
  %v333 = vpack.c.b16 %v288, %v283
  %v334 = vpack.c.b16 %v294, %v289
  %v335 = vpack.c.b16 %v295, %v290
  %v336 = vpack.c.b16 %v296, %v291
  %v337 = vpack.c.b16 %v297, %v292
  %v338 = vpack.c.b16 %v298, %v293
  %v443 = vunpack.c.l.b16 %v99
  %v444 = vunpack.c.l.b16 %v100
  %v445 = vunpack.c.l.b16 %v101
  %v446 = vunpack.c.l.b16 %v102
  %v447 = vunpack.c.l.b16 %v103
  %v448 = vunpack.c.l.b16 %v104
  %v449 = vunpack.c.l.b16 %v105
  %v450 = vunpack.c.l.b16 %v106
  %v451 = vunpack.c.l.b16 %v107
  %v452 = vunpack.c.l.b16 %v108
  %v453 = vunpack.c.l.b16 %v109
  %v454 = vunpack.c.l.b16 %v110
  %v455 = vunpack.c.l.b16 %v111
  %v456 = vunpack.c.l.b16 %v112
  %v457 = vunpack.c.l.b16 %v113
  %v458 = vunpack.c.l.b16 %v114
  %v459 = vunpack.c.l.b16 %v115
  %v460 = vunpack.c.l.b16 %v116
  %v461 = vunpack.c.l.b16 %v117
  %v462 = vunpack.c.l.b16 %v118
  %v463 = vunpack.c.l.b16 %v119
  %v464 = vunpack.c.l.b16 %v120
  %v465 = vunpack.c.l.b16 %v121
  %v466 = vunpack.c.l.b16 %v122
  %v467 = vunpack.c.l.b16 %v123
  %v468 = vunpack.c.l.b16 %v124
  %v469 = vunpack.c.l.b16 %v125
  %v470 = vunpack.c.l.b16 %v126
  %v471 = vunpack.c.l.b16 %v127
  %v472 = vunpack.c.l.b16 %v128
  %v473 = vunpack.c.l.b16 %v129
  %v474 = vunpack.c.l.b16 %v130
  %v475 = vunpack.c.l.b16 %v131
  %v476 = vunpack.c.l.b16 %v132
  %v477 = vunpack.c.l.b16 %v133
  %v478 = vunpack.c.l.b16 %v134
  %v479 = vunpack.c.l.b16 %v135
  %v480 = vunpack.c.l.b16 %v136
  %v481 = vunpack.c.l.b16 %v137
  %v482 = vunpack.c.l.b16 %v138
  %v483 = vunpack.c.l.b16 %v139
  %v484 = vunpack.c.l.b16 %v140
  %v485 = vunpack.c.l.b16 %v141
  %v486 = vunpack.c.l.b16 %v142
  %v487 = vunpack.c.l.b16 %v143
  %v488 = vunpack.c.l.b16 %v144
  %v489 = vunpack.c.l.b16 %v145
  %v490 = vunpack.c.l.b16 %v146
  %v491 = vunpack.c.l.b16 %v147
  %v492 = vunpack.c.l.b16 %v148
  %v493 = vunpack.c.l.b16 %v149
  %v494 = vunpack.c.l.b16 %v150
  %v495 = vunpack.c.l.b16 %v151
  %v496 = vunpack.c.l.b16 %v152
  %v497 = vunpack.c.l.b16 %v153
  %v498 = vunpack.c.l.b16 %v154
  %v499 = vunpack.c.l.b16 %v155
  %v500 = vunpack.c.l.b16 %v156
  %v501 = vunpack.c.l.b16 %v157
  %v502 = vunpack.c.l.b16 %v158
  %v503 = vunpack.c.l.b16 %v159
  %v504 = vunpack.c.l.b16 %v160
  %v505 = vunpack.c.l.b16 %v161
  %v506 = vunpack.c.l.b16 %v162
  %v507 = vunpack.c.l.b16 %v163
  %v508 = vunpack.c.l.b16 %v164
  %v509 = vunpack.c.l.b16 %v165
  %v510 = vunpack.c.l.b16 %v166
  %v511 = vunpack.c.l.b16 %v167
  %v512 = vunpack.c.l.b16 %v168
  %v513 = vunpack.c.l.b16 %v169
  %v514 = vunpack.c.l.b16 %v170
  %v515 = vpack.c.b16 %v444, %v443
  %v516 = vpack.c.b16 %v446, %v445
  %v517 = vpack.c.b16 %v448, %v447
  %v518 = vpack.c.b16 %v450, %v449
  %v519 = vpack.c.b16 %v452, %v451
  %v520 = vpack.c.b16 %v454, %v453
  %v521 = vpack.c.b16 %v456, %v455
  %v522 = vpack.c.b16 %v458, %v457
  %v523 = vpack.c.b16 %v460, %v459
  %v524 = vpack.c.b16 %v462, %v461
  %v525 = vpack.c.b16 %v464, %v463
  %v526 = vpack.c.b16 %v466, %v465
  %v527 = vpack.c.b16 %v468, %v467
  %v528 = vpack.c.b16 %v470, %v469
  %v529 = vpack.c.b16 %v472, %v471
  %v530 = vpack.c.b16 %v474, %v473
  %v531 = vpack.c.b16 %v476, %v475
  %v532 = vpack.c.b16 %v478, %v477
  %v533 = vpack.c.b16 %v480, %v479
  %v534 = vpack.c.b16 %v482, %v481
  %v535 = vpack.c.b16 %v484, %v483
  %v536 = vpack.c.b16 %v486, %v485
  %v537 = vpack.c.b16 %v488, %v487
  %v538 = vpack.c.b16 %v490, %v489
  %v539 = vpack.c.b16 %v492, %v491
  %v540 = vpack.c.b16 %v494, %v493
  %v541 = vpack.c.b16 %v496, %v495
  %v542 = vpack.c.b16 %v498, %v497
  %v543 = vpack.c.b16 %v500, %v499
  %v544 = vpack.c.b16 %v502, %v501
  %v545 = vpack.c.b16 %v504, %v503
  %v546 = vpack.c.b16 %v506, %v505
  %v547 = vpack.c.b16 %v508, %v507
  %v548 = vpack.c.b16 %v510, %v509
  %v549 = vpack.c.b16 %v512, %v511
  %v550 = vpack.c.b16 %v514, %v513
  %vm587 = vcmask 523264
  %v589 = vsel %vm587, %v303, 0
  %v592 = vsel %vm587, %v308, 0
  %v595 = vsel %vm587, %v313, 0
  %v598 = vsel %vm587, %v318, 0
  %v601 = vsel %vm587, %v323, 0
  %v604 = vsel %vm587, %v328, 0
  %v607 = vsel %vm587, %v333, 0
  %v610 = vsel %vm587, %v338, 0
  %612 = vmatprep.subr.bf16.mxu0 0
  %613 = vmatpush1.bf16.msra.mxu0 %v522
  %614 = vmatprep.subr.bf16.mxu0 0
  %615 = vmatpush1.bf16.msra.mxu0 %v521
  %616 = vmatprep.subr.bf16.mxu0 0
  %617 = vmatpush1.bf16.msra.mxu0 %v520
  %618 = vmatprep.subr.bf16.mxu0 0
  %619 = vmatpush1.bf16.msra.mxu0 %v519
  %620 = vmatprep.subr.bf16.mxu0 0
  %621 = vmatpush1.bf16.msra.mxu0 %v518
  %622 = vmatprep.subr.bf16.mxu0 0
  %623 = vmatpush1.bf16.msra.mxu0 %v517
  %624 = vmatprep.subr.bf16.mxu0 0
  %625 = vmatpush1.bf16.msra.mxu0 %v516
  %626 = vmatprep.subr.bf16.mxu0 0
  %627 = vmatpush1.bf16.msra.mxu0 %v515
  %628 = vmatprep.subr.bf16.mxu0 0
  %629 = vmatpush2.bf16.msra.mxu0 %v530
  %630 = vmatprep.subr.bf16.mxu0 0
  %631 = vmatpush2.bf16.msra.mxu0 %v529
  %632 = vmatprep.subr.bf16.mxu0 0
  %633 = vmatpush2.bf16.msra.mxu0 %v528
  %634 = vmatprep.subr.bf16.mxu0 0
  %635 = vmatpush2.bf16.msra.mxu0 %v527
  %636 = vmatprep.subr.bf16.mxu0 0
  %637 = vmatpush2.bf16.msra.mxu0 %v526
  %638 = vmatprep.subr.bf16.mxu0 0
  %639 = vmatpush2.bf16.msra.mxu0 %v525
  %640 = vmatprep.subr.bf16.mxu0 0
  %641 = vmatpush2.bf16.msra.mxu0 %v524
  %642 = vmatprep.subr.bf16.mxu0 0
  %643 = vmatpush2.bf16.msra.mxu0 %v523
  %644 = vmatprep.mubr.bf16.mxu0 %v300
  %645 = vmatmul.mubr.bf16.gmra.mxu0 %v299
  %v646 = vpop.f32.mrf.mxu0
  %v647 = vadd.f32 0.0, %v646
  %v648 = vpop.f32.mrf.mxu0
  %v649 = vpop.f32.mrf.mxu0
  %v650 = vadd.f32 0.0, %v649
  %v651 = vpop.f32.mrf.mxu0
  %652 = vmatprep.mubr.bf16.mxu0 %v305
  %653 = vmatmul.mubr.bf16.gmra.mxu0 %v304
  %v654 = vpop.f32.mrf.mxu0
  %v655 = vadd.f32 0.0, %v654
  %v656 = vpop.f32.mrf.mxu0
  %v657 = vpop.f32.mrf.mxu0
  %v658 = vadd.f32 0.0, %v657
  %v659 = vpop.f32.mrf.mxu0
  %660 = vmatprep.mubr.bf16.mxu0 %v310
  %661 = vmatmul.mubr.bf16.gmra.mxu0 %v309
  %v662 = vpop.f32.mrf.mxu0
  %v663 = vadd.f32 0.0, %v662
  %v664 = vpop.f32.mrf.mxu0
  %v665 = vpop.f32.mrf.mxu0
  %v666 = vadd.f32 0.0, %v665
  %v667 = vpop.f32.mrf.mxu0
  %668 = vmatprep.mubr.bf16.mxu0 %v315
  %669 = vmatmul.mubr.bf16.gmra.mxu0 %v314
  %v670 = vpop.f32.mrf.mxu0
  %v671 = vadd.f32 0.0, %v670
  %v672 = vpop.f32.mrf.mxu0
  %v673 = vpop.f32.mrf.mxu0
  %v674 = vadd.f32 0.0, %v673
  %v675 = vpop.f32.mrf.mxu0
  %676 = vmatprep.mubr.bf16.mxu0 %v320
  %677 = vmatmul.mubr.bf16.gmra.mxu0 %v319
  %v678 = vpop.f32.mrf.mxu0
  %v679 = vadd.f32 0.0, %v678
  %v680 = vpop.f32.mrf.mxu0
  %v681 = vpop.f32.mrf.mxu0
  %v682 = vadd.f32 0.0, %v681
  %v683 = vpop.f32.mrf.mxu0
  %684 = vmatprep.mubr.bf16.mxu0 %v325
  %685 = vmatmul.mubr.bf16.gmra.mxu0 %v324
  %v686 = vpop.f32.mrf.mxu0
  %v687 = vadd.f32 0.0, %v686
  %v688 = vpop.f32.mrf.mxu0
  %v689 = vpop.f32.mrf.mxu0
  %v690 = vadd.f32 0.0, %v689
  %v691 = vpop.f32.mrf.mxu0
  %692 = vmatprep.mubr.bf16.mxu0 %v330
  %693 = vmatmul.mubr.bf16.gmra.mxu0 %v329
  %v694 = vpop.f32.mrf.mxu0
  %v695 = vadd.f32 0.0, %v694
  %v696 = vpop.f32.mrf.mxu0
  %v697 = vpop.f32.mrf.mxu0
  %v698 = vadd.f32 0.0, %v697
  %v699 = vpop.f32.mrf.mxu0
  %700 = vmatprep.mubr.bf16.mxu0 %v335
  %701 = vmatmul.mubr.bf16.gmra.mxu0 %v334
  %v702 = vpop.f32.mrf.mxu0
  %v703 = vadd.f32 0.0, %v702
  %v704 = vpop.f32.mrf.mxu0
  %v705 = vpop.f32.mrf.mxu0
  %v706 = vadd.f32 0.0, %v705
  %v707 = vpop.f32.mrf.mxu0
  %708 = vdwg.mxu0
  %709 = vmatprep.subr.bf16.mxu0 0
  %710 = vmatpush1.bf16.msra.mxu0 %v538
  %711 = vmatprep.subr.bf16.mxu0 0
  %712 = vmatpush1.bf16.msra.mxu0 %v537
  %713 = vmatprep.subr.bf16.mxu0 0
  %714 = vmatpush1.bf16.msra.mxu0 %v536
  %715 = vmatprep.subr.bf16.mxu0 0
  %716 = vmatpush1.bf16.msra.mxu0 %v535
  %717 = vmatprep.subr.bf16.mxu0 0
  %718 = vmatpush1.bf16.msra.mxu0 %v534
  %719 = vmatprep.subr.bf16.mxu0 0
  %720 = vmatpush1.bf16.msra.mxu0 %v533
  %721 = vmatprep.subr.bf16.mxu0 0
  %722 = vmatpush1.bf16.msra.mxu0 %v532
  %723 = vmatprep.subr.bf16.mxu0 0
  %724 = vmatpush1.bf16.msra.mxu0 %v531
  %725 = vmatprep.subr.bf16.mxu0 0
  %726 = vmatpush2.bf16.msra.mxu0 %v546
  %727 = vmatprep.subr.bf16.mxu0 0
  %728 = vmatpush2.bf16.msra.mxu0 %v545
  %729 = vmatprep.subr.bf16.mxu0 0
  %730 = vmatpush2.bf16.msra.mxu0 %v544
  %731 = vmatprep.subr.bf16.mxu0 0
  %732 = vmatpush2.bf16.msra.mxu0 %v543
  %733 = vmatprep.subr.bf16.mxu0 0
  %734 = vmatpush2.bf16.msra.mxu0 %v542
  %735 = vmatprep.subr.bf16.mxu0 0
  %736 = vmatpush2.bf16.msra.mxu0 %v541
  %737 = vmatprep.subr.bf16.mxu0 0
  %738 = vmatpush2.bf16.msra.mxu0 %v540
  %739 = vmatprep.subr.bf16.mxu0 0
  %740 = vmatpush2.bf16.msra.mxu0 %v539
  %741 = vmatprep.mubr.bf16.mxu0 %v302
  %742 = vmatmul.mubr.bf16.gmra.mxu0 %v301
  %v743 = vpop.f32.mrf.mxu0
  %v744 = vadd.f32 %v647, %v743
  %v745 = vpop.f32.mrf.mxu0
  %v746 = vpop.f32.mrf.mxu0
  %v747 = vadd.f32 %v650, %v746
  %v748 = vpop.f32.mrf.mxu0
  %749 = vmatprep.mubr.bf16.mxu0 %v307
  %750 = vmatmul.mubr.bf16.gmra.mxu0 %v306
  %v751 = vpop.f32.mrf.mxu0
  %v752 = vadd.f32 %v655, %v751
  %v753 = vpop.f32.mrf.mxu0
  %v754 = vpop.f32.mrf.mxu0
  %v755 = vadd.f32 %v658, %v754
  %v756 = vpop.f32.mrf.mxu0
  %757 = vmatprep.mubr.bf16.mxu0 %v312
  %758 = vmatmul.mubr.bf16.gmra.mxu0 %v311
  %v759 = vpop.f32.mrf.mxu0
  %v760 = vadd.f32 %v663, %v759
  %v761 = vpop.f32.mrf.mxu0
  %v762 = vpop.f32.mrf.mxu0
  %v763 = vadd.f32 %v666, %v762
  %v764 = vpop.f32.mrf.mxu0
  %765 = vmatprep.mubr.bf16.mxu0 %v317
  %766 = vmatmul.mubr.bf16.gmra.mxu0 %v316
  %v767 = vpop.f32.mrf.mxu0
  %v768 = vadd.f32 %v671, %v767
  %v769 = vpop.f32.mrf.mxu0
  %v770 = vpop.f32.mrf.mxu0
  %v771 = vadd.f32 %v674, %v770
  %v772 = vpop.f32.mrf.mxu0
  %773 = vmatprep.mubr.bf16.mxu0 %v322
  %774 = vmatmul.mubr.bf16.gmra.mxu0 %v321
  %v775 = vpop.f32.mrf.mxu0
  %v776 = vadd.f32 %v679, %v775
  %v777 = vpop.f32.mrf.mxu0
  %v778 = vpop.f32.mrf.mxu0
  %v779 = vadd.f32 %v682, %v778
  %v780 = vpop.f32.mrf.mxu0
  %781 = vmatprep.mubr.bf16.mxu0 %v327
  %782 = vmatmul.mubr.bf16.gmra.mxu0 %v326
  %v783 = vpop.f32.mrf.mxu0
  %v784 = vadd.f32 %v687, %v783
  %v785 = vpop.f32.mrf.mxu0
  %v786 = vpop.f32.mrf.mxu0
  %v787 = vadd.f32 %v690, %v786
  %v788 = vpop.f32.mrf.mxu0
  %789 = vmatprep.mubr.bf16.mxu0 %v332
  %790 = vmatmul.mubr.bf16.gmra.mxu0 %v331
  %v791 = vpop.f32.mrf.mxu0
  %v792 = vadd.f32 %v695, %v791
  %v793 = vpop.f32.mrf.mxu0
  %v794 = vpop.f32.mrf.mxu0
  %v795 = vadd.f32 %v698, %v794
  %v796 = vpop.f32.mrf.mxu0
  %797 = vmatprep.mubr.bf16.mxu0 %v337
  %798 = vmatmul.mubr.bf16.gmra.mxu0 %v336
  %v799 = vpop.f32.mrf.mxu0
  %v800 = vadd.f32 %v703, %v799
  %v801 = vpop.f32.mrf.mxu0
  %v802 = vpop.f32.mrf.mxu0
  %v803 = vadd.f32 %v706, %v802
  %v804 = vpop.f32.mrf.mxu0
  %805 = vdwg.mxu0
  %806 = vmatprep.subr.bf16.mxu0 0
  %807 = vmatpush1.bf16.msra.mxu0 0
  %808 = vmatprep.subr.bf16.mxu0 0
  %809 = vmatpush1.bf16.msra.mxu0 0
  %810 = vmatprep.subr.bf16.mxu0 0
  %811 = vmatpush1.bf16.msra.mxu0 0
  %812 = vmatprep.subr.bf16.mxu0 0
  %813 = vmatpush1.bf16.msra.mxu0 0
  %814 = vmatprep.subr.bf16.mxu0 0
  %815 = vmatpush1.bf16.msra.mxu0 %v550
  %816 = vmatprep.subr.bf16.mxu0 0
  %817 = vmatpush1.bf16.msra.mxu0 %v549
  %818 = vmatprep.subr.bf16.mxu0 0
  %819 = vmatpush1.bf16.msra.mxu0 %v548
  %820 = vmatprep.subr.bf16.mxu0 0
  %821 = vmatpush1.bf16.msra.mxu0 %v547
  %822 = vmatprep.subr.bf16.mxu0 0
  %823 = vmatpush2.bf16.msra.mxu0 0
  %824 = vmatprep.subr.bf16.mxu0 0
  %825 = vmatpush2.bf16.msra.mxu0 0
  %826 = vmatprep.subr.bf16.mxu0 0
  %827 = vmatpush2.bf16.msra.mxu0 0
  %828 = vmatprep.subr.bf16.mxu0 0
  %829 = vmatpush2.bf16.msra.mxu0 0
  %830 = vmatprep.subr.bf16.mxu0 0
  %831 = vmatpush2.bf16.msra.mxu0 0
  %832 = vmatprep.subr.bf16.mxu0 0
  %833 = vmatpush2.bf16.msra.mxu0 0
  %834 = vmatprep.subr.bf16.mxu0 0
  %835 = vmatpush2.bf16.msra.mxu0 0
  %836 = vmatprep.subr.bf16.mxu0 0
  %837 = vmatpush2.bf16.msra.mxu0 0
  %838 = vmatprep.mubr.bf16.mxu0 0
  %839 = vmatmul.mubr.bf16.gmra.mxu0 %v589
  %v840 = vpop.f32.mrf.mxu0
  %v841 = vadd.f32 %v744, %v840
  %v842 = vpop.f32.mrf.mxu0
  %v843 = vpop.f32.mrf.mxu0
  %v844 = vadd.f32 %v747, %v843
  %v845 = vpop.f32.mrf.mxu0
  %846 = vmatprep.mubr.bf16.mxu0 0
  %847 = vmatmul.mubr.bf16.gmra.mxu0 %v592
  %v848 = vpop.f32.mrf.mxu0
  %v849 = vadd.f32 %v752, %v848
  %v850 = vpop.f32.mrf.mxu0
  %v851 = vpop.f32.mrf.mxu0
  %v852 = vadd.f32 %v755, %v851
  %v853 = vpop.f32.mrf.mxu0
  %854 = vmatprep.mubr.bf16.mxu0 0
  %855 = vmatmul.mubr.bf16.gmra.mxu0 %v595
  %v856 = vpop.f32.mrf.mxu0
  %v857 = vadd.f32 %v760, %v856
  %v858 = vpop.f32.mrf.mxu0
  %v859 = vpop.f32.mrf.mxu0
  %v860 = vadd.f32 %v763, %v859
  %v861 = vpop.f32.mrf.mxu0
  %862 = vmatprep.mubr.bf16.mxu0 0
  %863 = vmatmul.mubr.bf16.gmra.mxu0 %v598
  %v864 = vpop.f32.mrf.mxu0
  %v865 = vadd.f32 %v768, %v864
  %v866 = vpop.f32.mrf.mxu0
  %v867 = vpop.f32.mrf.mxu0
  %v868 = vadd.f32 %v771, %v867
  %v869 = vpop.f32.mrf.mxu0
  %870 = vmatprep.mubr.bf16.mxu0 0
  %871 = vmatmul.mubr.bf16.gmra.mxu0 %v601
  %v872 = vpop.f32.mrf.mxu0
  %v873 = vadd.f32 %v776, %v872
  %v874 = vpop.f32.mrf.mxu0
  %v875 = vpop.f32.mrf.mxu0
  %v876 = vadd.f32 %v779, %v875
  %v877 = vpop.f32.mrf.mxu0
  %878 = vmatprep.mubr.bf16.mxu0 0
  %879 = vmatmul.mubr.bf16.gmra.mxu0 %v604
  %v880 = vpop.f32.mrf.mxu0
  %v881 = vadd.f32 %v784, %v880
  %v882 = vpop.f32.mrf.mxu0
  %v883 = vpop.f32.mrf.mxu0
  %v884 = vadd.f32 %v787, %v883
  %v885 = vpop.f32.mrf.mxu0
  %886 = vmatprep.mubr.bf16.mxu0 0
  %887 = vmatmul.mubr.bf16.gmra.mxu0 %v607
  %v888 = vpop.f32.mrf.mxu0
  %v889 = vadd.f32 %v792, %v888
  %v890 = vpop.f32.mrf.mxu0
  %v891 = vpop.f32.mrf.mxu0
  %v892 = vadd.f32 %v795, %v891
  %v893 = vpop.f32.mrf.mxu0
  %894 = vmatprep.mubr.bf16.mxu0 0
  %895 = vmatmul.mubr.bf16.gmra.mxu0 %v610
  %v896 = vpop.f32.mrf.mxu0
  %v897 = vadd.f32 %v800, %v896
  %v898 = vpop.f32.mrf.mxu0
  %v899 = vpop.f32.mrf.mxu0
  %v900 = vadd.f32 %v803, %v899
  %v901 = vpop.f32.mrf.mxu0
  %902 = vdwg.mxu0
  %v903 = vadd.f32 %v35, %v841
  %v904 = vadd.f32 %v36, %v844
  %v905 = vadd.f32 %v37, %v849
  %v906 = vadd.f32 %v38, %v852
  %v907 = vadd.f32 %v39, %v857
  %v908 = vadd.f32 %v40, %v860
  %v909 = vadd.f32 %v41, %v865
  %v910 = vadd.f32 %v42, %v868
  %v911 = vadd.f32 %v43, %v873
  %v912 = vadd.f32 %v44, %v876
  %v913 = vadd.f32 %v45, %v881
  %v914 = vadd.f32 %v46, %v884
  %v915 = vadd.f32 %v47, %v889
  %v916 = vadd.f32 %v48, %v892
  %v917 = vadd.f32 %v49, %v897
  %v918 = vadd.f32 %v50, %v900
  %919 = vst [vmem:[#allocation2] sm:$0xff] %v903
  %920 = vst [vmem:[#allocation2 + $0x8] sm:$0xff] %v904
  %921 = vst [vmem:[#allocation2 + $0x10] sm:$0xff] %v905
  %922 = vst [vmem:[#allocation2 + $0x18] sm:$0xff] %v906
  %923 = vst [vmem:[#allocation2 + $0x20] sm:$0xff] %v907
  %924 = vst [vmem:[#allocation2 + $0x28] sm:$0xff] %v908
  %925 = vst [vmem:[#allocation2 + $0x30] sm:$0xff] %v909
  %926 = vst [vmem:[#allocation2 + $0x38] sm:$0xff] %v910
  %927 = vst [vmem:[#allocation2 + $0x40] sm:$0xff] %v911
  %928 = vst [vmem:[#allocation2 + $0x48] sm:$0xff] %v912
  %929 = vst [vmem:[#allocation2 + $0x50] sm:$0xff] %v913
  %930 = vst [vmem:[#allocation2 + $0x58] sm:$0xff] %v914
  %931 = vst [vmem:[#allocation2 + $0x60] sm:$0xff] %v915
  %932 = vst [vmem:[#allocation2 + $0x68] sm:$0xff] %v916
  %933 = vst [vmem:[#allocation2 + $0x70] sm:$0xff] %v917
  %934 = vst [vmem:[#allocation2 + $0x78] sm:$0xff] %v918
  // Predicated region
  $region18: #{discriminator_forward.8} parent=0 // pred_check
    %p935 = pneg %p15
  $region19: #{discriminator_forward.8} parent=0 // pred_check_branch
    %937 = sbr.rel (%p935) target = $region21
  $region20: #{discriminator_forward.8} parent=0 // pred_region
    %v938 = vld [vmem:[#allocation2] sm:$0xff]
    %v939 = vld [vmem:[#allocation2 + $0x8] sm:$0xff]
    %v940 = vld [vmem:[#allocation2 + $0x10] sm:$0xff]
    %v941 = vld [vmem:[#allocation2 + $0x18] sm:$0xff]
    %v942 = vld [vmem:[#allocation2 + $0x20] sm:$0xff]
    %v943 = vld [vmem:[#allocation2 + $0x28] sm:$0xff]
    %v944 = vld [vmem:[#allocation2 + $0x30] sm:$0xff]
    %v945 = vld [vmem:[#allocation2 + $0x38] sm:$0xff]
    %v946 = vld [vmem:[#allocation2 + $0x40] sm:$0xff]
    %v947 = vld [vmem:[#allocation2 + $0x48] sm:$0xff]
    %v948 = vld [vmem:[#allocation2 + $0x50] sm:$0xff]
    %v949 = vld [vmem:[#allocation2 + $0x58] sm:$0xff]
    %v950 = vld [vmem:[#allocation2 + $0x60] sm:$0xff]
    %v951 = vld [vmem:[#allocation2 + $0x68] sm:$0xff]
    %v952 = vld [vmem:[#allocation2 + $0x70] sm:$0xff]
    %v953 = vld [vmem:[#allocation2 + $0x78] sm:$0xff]
    %v954 = vld [vmem:[%s2] sm:$0x1]
    %v956 = vlaneseq
    %v957 = vshrl.u32 %v956, 7
    %v958 = vsub.s32 0, %v957
    %v959 = vrot.slane %v954, %v958
    %v961 = vadd.f32 %v938, %v959
    %v962 = vadd.f32 %v939, %v959
    %v963 = vadd.f32 %v940, %v959
    %v964 = vadd.f32 %v941, %v959
    %v965 = vadd.f32 %v942, %v959
    %v966 = vadd.f32 %v943, %v959
    %v967 = vadd.f32 %v944, %v959
    %v968 = vadd.f32 %v945, %v959
    %v969 = vadd.f32 %v946, %v959
    %v970 = vadd.f32 %v947, %v959
    %v971 = vadd.f32 %v948, %v959
    %v972 = vadd.f32 %v949, %v959
    %v973 = vadd.f32 %v950, %v959
    %v974 = vadd.f32 %v951, %v959
    %v975 = vadd.f32 %v952, %v959
    %v976 = vadd.f32 %v953, %v959
    %vm977 = vcmp.ge.f32.partialorder %v961, 0.0
    %vm978 = vcmp.ge.f32.partialorder %v962, 0.0
    %vm979 = vcmp.ge.f32.partialorder %v963, 0.0
    %vm980 = vcmp.ge.f32.partialorder %v964, 0.0
    %vm981 = vcmp.ge.f32.partialorder %v965, 0.0
    %vm982 = vcmp.ge.f32.partialorder %v966, 0.0
    %vm983 = vcmp.ge.f32.partialorder %v967, 0.0
    %vm984 = vcmp.ge.f32.partialorder %v968, 0.0
    %vm985 = vcmp.ge.f32.partialorder %v969, 0.0
    %vm986 = vcmp.ge.f32.partialorder %v970, 0.0
    %vm987 = vcmp.ge.f32.partialorder %v971, 0.0
    %vm988 = vcmp.ge.f32.partialorder %v972, 0.0
    %vm989 = vcmp.ge.f32.partialorder %v973, 0.0
    %vm990 = vcmp.ge.f32.partialorder %v974, 0.0
    %vm991 = vcmp.ge.f32.partialorder %v975, 0.0
    %vm992 = vcmp.ge.f32.partialorder %v976, 0.0
    %v993 = vmul.f32 %v961, 0.2
    %v994 = vmul.f32 %v962, 0.2
    %v995 = vmul.f32 %v963, 0.2
    %v996 = vmul.f32 %v964, 0.2
    %v997 = vmul.f32 %v965, 0.2
    %v998 = vmul.f32 %v966, 0.2
    %v999 = vmul.f32 %v967, 0.2
    %v1000 = vmul.f32 %v968, 0.2
    %v1001 = vmul.f32 %v969, 0.2
    %v1002 = vmul.f32 %v970, 0.2
    %v1003 = vmul.f32 %v971, 0.2
    %v1004 = vmul.f32 %v972, 0.2
    %v1005 = vmul.f32 %v973, 0.2
    %v1006 = vmul.f32 %v974, 0.2
    %v1007 = vmul.f32 %v975, 0.2
    %v1008 = vmul.f32 %v976, 0.2
    %v1009 = vsel %vm977, %v961, %v993
    %v1010 = vsel %vm978, %v962, %v994
    %v1011 = vsel %vm979, %v963, %v995
    %v1012 = vsel %vm980, %v964, %v996
    %v1013 = vsel %vm981, %v965, %v997
    %v1014 = vsel %vm982, %v966, %v998
    %v1015 = vsel %vm983, %v967, %v999
    %v1016 = vsel %vm984, %v968, %v1000
    %v1017 = vsel %vm985, %v969, %v1001
    %v1018 = vsel %vm986, %v970, %v1002
    %v1019 = vsel %vm987, %v971, %v1003
    %v1020 = vsel %vm988, %v972, %v1004
    %v1021 = vsel %vm989, %v973, %v1005
    %v1022 = vsel %vm990, %v974, %v1006
    %v1023 = vsel %vm991, %v975, %v1007
    %v1024 = vsel %vm992, %v976, %v1008
    %v1025 = vpack.c.bf16 %v1010, %v1009
    %v1026 = vpack.c.bf16 %v1012, %v1011
    %v1027 = vpack.c.bf16 %v1014, %v1013
    %v1028 = vpack.c.bf16 %v1016, %v1015
    %v1029 = vpack.c.bf16 %v1018, %v1017
    %v1030 = vpack.c.bf16 %v1020, %v1019
    %v1031 = vpack.c.bf16 %v1022, %v1021
    %v1032 = vpack.c.bf16 %v1024, %v1023
    %v1041 = vunpack.c.l.b16 %v1025
    %v1042 = vunpack.c.h.b16 %v1025
    %v1043 = vunpack.c.l.b16 %v1026
    %v1044 = vunpack.c.h.b16 %v1026
    %v1045 = vunpack.c.l.b16 %v1027
    %v1046 = vunpack.c.h.b16 %v1027
    %v1047 = vunpack.c.l.b16 %v1028
    %v1048 = vunpack.c.h.b16 %v1028
    %v1049 = vunpack.c.l.b16 %v1029
    %v1050 = vunpack.c.h.b16 %v1029
    %v1051 = vunpack.c.l.b16 %v1030
    %v1052 = vunpack.c.h.b16 %v1030
    %v1053 = vunpack.c.l.b16 %v1031
    %v1054 = vunpack.c.h.b16 %v1031
    %v1055 = vunpack.c.l.b16 %v1032
    %v1056 = vunpack.c.h.b16 %v1032
    %v1057 = vpack.c.b16 %v1041, %v1041
    %v1058 = vpack.c.b16 %v1042, %v1042
    %v1059 = vpack.c.b16 %v1043, %v1043
    %v1060 = vpack.c.b16 %v1044, %v1044
    %v1061 = vpack.c.b16 %v1045, %v1045
    %v1062 = vpack.c.b16 %v1046, %v1046
    %v1063 = vpack.c.b16 %v1047, %v1047
    %v1064 = vpack.c.b16 %v1048, %v1048
    %v1065 = vpack.c.b16 %v1049, %v1049
    %v1066 = vpack.c.b16 %v1050, %v1050
    %v1067 = vpack.c.b16 %v1051, %v1051
    %v1068 = vpack.c.b16 %v1052, %v1052
    %v1069 = vpack.c.b16 %v1053, %v1053
    %v1070 = vpack.c.b16 %v1054, %v1054
    %v1071 = vpack.c.b16 %v1055, %v1055
    %v1072 = vpack.c.b16 %v1056, %v1056
    %1089 = vst [vmem:[%s3] sm:$0xf] %v1057
    %1090 = vst [vmem:[%s3 + $0x4] sm:$0xf] %v1058
    %1091 = vst [vmem:[%s3 + $0x8] sm:$0xf] %v1059
    %1092 = vst [vmem:[%s3 + $0xc] sm:$0xf] %v1060
    %1093 = vst [vmem:[%s3 + $0x10] sm:$0xf] %v1061
    %1094 = vst [vmem:[%s3 + $0x14] sm:$0xf] %v1062
    %1095 = vst [vmem:[%s3 + $0x18] sm:$0xf] %v1063
    %1096 = vst [vmem:[%s3 + $0x1c] sm:$0xf] %v1064
    %1097 = vst [vmem:[%s3 + $0x20] sm:$0xf] %v1065
    %1098 = vst [vmem:[%s3 + $0x24] sm:$0xf] %v1066
    %1099 = vst [vmem:[%s3 + $0x28] sm:$0xf] %v1067
    %1100 = vst [vmem:[%s3 + $0x2c] sm:$0xf] %v1068
    %1101 = vst [vmem:[%s3 + $0x30] sm:$0xf] %v1069
    %1102 = vst [vmem:[%s3 + $0x34] sm:$0xf] %v1070
    %1103 = vst [vmem:[%s3 + $0x38] sm:$0xf] %v1071
    %1104 = vst [vmem:[%s3 + $0x3c] sm:$0xf] %v1072
  $region21: #{discriminator_forward.8} parent=0 // pred_fallthru
    _
  // Predicated region
  $region22: #{discriminator_forward.8} parent=0 // pred_check
    _
  $region23: #{discriminator_forward.8} parent=0 // pred_check_branch
    %1106 = sbr.rel (0) target = $region25
  $region24: #{discriminator_forward.8} parent=0 // pred_region
    _
  $region25: #{discriminator_forward.8} parent=0 // pred_fallthru
    _
  // Predicated region
  $region26: #{discriminator_forward.8} parent=0 // pred_check
    _
  $region27: #{discriminator_forward.8} parent=0 // pred_check_branch
    %1108 = sbr.rel (0) target = $region29
  $region28: #{discriminator_forward.8} parent=0 // pred_region
    _
  $region29: #{discriminator_forward.8} parent=0 // pred_fallthru
    _

// kernel: discriminator_forward.10
$region0: #{discriminator_forward.10}
  #allocation0 [shape = 'u32[]', space=smem, size = 0x4, offset = 0x4, fixed_abs, tag = 'smem constant byte address 0x4 - core index']
  #allocation1 [shape = 'u32[144,128]{1,0:T(1,128)}', space=vmem, size = 0x12000, scoped, tag = 'internal scratch']
  #allocation2 [shape = 'f32[32,128]{1,0:T(8,128)}', space=vmem, size = 0x4000, scoped, tag = 'scratch operand']
  %s0 = inlined_call_operand.vmem [shape: bf16[32,1152], index: 0, kind: input, shape index: {}]
  %s1 = inlined_call_operand.vmem [shape: bf16[1152,128], index: 1, kind: input, shape index: {}]
  %s2 = inlined_call_operand.vmem [shape: f32[1,128], index: 2, kind: input, shape index: {}]
  %s3 = inlined_call_operand.vmem [shape: bf16[32,128], index: 3, kind: output, shape index: {}]
  %s4 = sld [smem:[#allocation0]]
  $region79: #{discriminator_forward.10} parent=0
    _
  %s6 = ssub.s32 1, %s4
  %s7 = scalar_select 0, %s6, %s4
  $region1: #{discriminator_forward.10} parent=0
    #allocation3 [shape = 'u8[49152]{0}', space=vmem, size = 0xc000, scoped, tag = 'input window, operand 0']
    loop: start=0, step=1, limit=5
    $region2: #{discriminator_forward.10} parent=1 // loop_pre_header
      _
    $region3: #{discriminator_forward.10} parent=1 // loop_header
      %s9 = sphi 0, %s13
      %p10 = scmp.ge.s32.totalorder %s9, 5
      %s16 = sphi 0, %s28
      %s17 = sphi 0, %s24
      %s18 = sphi 0, %s16
      %s19 = sphi 0, %s17
      %s20 = sphi 0, %s18
      %s21 = sphi 0, %s19
      %s33 = sphi 0, %s35
      %s36 = sphi 0, %s33
      %s37 = sphi 0, %s36
      %s53 = sphi 0, %s37
      %s59 = sphi 0, %s61
      %s62 = sphi 0, %s59
      %s63 = sphi 0, %s62
      %s79 = sphi 0, %s63
      %s83 = sphi 0, %s83
      %s85 = sphi 0, %s83
      %s86 = sphi 0, %s85
      %s100 = sphi 0, %s86
      %s106 = sphi 0, %s108
      %s109 = sphi 0, %s106
      %s110 = sphi 0, %s109
      %s126 = sphi 0, %s110
    $region4: #{discriminator_forward.10} parent=1 // loop_header_branch
      %12 = sbr.rel (%p10) target = $region8
    $region5: #{discriminator_forward.10} parent=1 // loop_body
      %s14 = ssub.s32 %s9, 1
      %s15 = ssub.s32 %s9, 2
      %s22 = sadd.s32 1, %s17
      %p23 = scmp.ge.s32.totalorder %s22, 3
      %s24 = scalar_select %p23, 0, %s22
      %s25 = sadd.s32 1, %s16
      %s26 = scalar_select %p23, %s25, %s16
      %p27 = scmp.ge.s32.totalorder %s26, 1
      %s28 = scalar_select %p27, 0, %s26
      %s29 = ssub.s32 %s16, %s28
      %s30 = ssub.s32 %s17, %s24
      %s31 = sor.u32 %s29, %s30
      %p32 = scmp.eq.s32.totalorder %s31, 0
      %s34 = sadd.s32 %s33, 1
      %s35 = scalar_select %p32, %s33, %s34
      %p38 = pneg %p32
      %p39 = scmp.eq.s32.totalorder %s9, 2
      %p40 = por %p38, %p39
      %p41 = scmp.ne.s32.totalorder %s33, %s36
      %p42 = scmp.eq.s32.totalorder %s9, 0
      %p43 = por %p41, %p42
      %p44 = scmp.ne.s32.totalorder %s33, %s36
      %p45 = scmp.eq.s32.totalorder %s14, 2
      %p46 = por %p44, %p45
      %p47 = scmp.ne.s32.totalorder %s36, %s37
      %p48 = scmp.eq.s32.totalorder %s14, 0
      %p49 = por %p47, %p48
      %p50 = scmp.ne.s32.totalorder %s36, %s37
      %p51 = scmp.eq.s32.totalorder %s15, 2
      %p52 = por %p50, %p51
      %p54 = scmp.ne.s32.totalorder %s37, %s53
      %p55 = scmp.eq.s32.totalorder %s15, 0
      %p56 = por %p54, %p55
      %s57 = ssub.s32 %s17, %s24
      %p58 = scmp.eq.s32.totalorder %s57, 0
      %s60 = sadd.s32 %s59, 1
      %s61 = scalar_select %p58, %s59, %s60
      %p64 = pneg %p58
      %p65 = scmp.eq.s32.totalorder %s9, 2
      %p66 = por %p64, %p65
      %p67 = scmp.ne.s32.totalorder %s59, %s62
      %p68 = scmp.eq.s32.totalorder %s9, 0
      %p69 = por %p67, %p68
      %p70 = scmp.ne.s32.totalorder %s59, %s62
      %p71 = scmp.eq.s32.totalorder %s14, 2
      %p72 = por %p70, %p71
      %p73 = scmp.ne.s32.totalorder %s62, %s63
      %p74 = scmp.eq.s32.totalorder %s14, 0
      %p75 = por %p73, %p74
      %p76 = scmp.ne.s32.totalorder %s62, %s63
      %p77 = scmp.eq.s32.totalorder %s15, 2
      %p78 = por %p76, %p77
      %p80 = scmp.ne.s32.totalorder %s63, %s79
      %p81 = scmp.eq.s32.totalorder %s15, 0
      %p82 = por %p80, %p81
      %s84 = sadd.s32 %s83, 1
      %p87 = scmp.eq.s32.totalorder %s9, 2
      %p88 = scmp.ne.s32.totalorder %s83, %s85
      %p89 = scmp.eq.s32.totalorder %s9, 0
      %p90 = por %p88, %p89
      %p91 = scmp.ne.s32.totalorder %s83, %s85
      %p92 = scmp.eq.s32.totalorder %s14, 2
      %p93 = por %p91, %p92
      %p94 = scmp.ne.s32.totalorder %s85, %s86
      %p95 = scmp.eq.s32.totalorder %s14, 0
      %p96 = por %p94, %p95
      %p97 = scmp.ne.s32.totalorder %s85, %s86
      %p98 = scmp.eq.s32.totalorder %s15, 2
      %p99 = por %p97, %p98
      %p101 = scmp.ne.s32.totalorder %s86, %s100
      %p102 = scmp.eq.s32.totalorder %s15, 0
      %p103 = por %p101, %p102
      %s104 = ssub.s32 %s16, %s28
      %p105 = scmp.eq.s32.totalorder %s104, 0
      %s107 = sadd.s32 %s106, 1
      %s108 = scalar_select %p105, %s106, %s107
      %p111 = pneg %p105
      %p112 = scmp.eq.s32.totalorder %s9, 2
      %p113 = por %p111, %p112
      %p114 = scmp.ne.s32.totalorder %s106, %s109
      %p115 = scmp.eq.s32.totalorder %s9, 0
      %p116 = por %p114, %p115
      %p117 = scmp.ne.s32.totalorder %s106, %s109
      %p118 = scmp.eq.s32.totalorder %s14, 2
      %p119 = por %p117, %p118
      %p120 = scmp.ne.s32.totalorder %s109, %s110
      %p121 = scmp.eq.s32.totalorder %s14, 0
      %p122 = por %p120, %p121
      %p123 = scmp.ne.s32.totalorder %s109, %s110
      %p124 = scmp.eq.s32.totalorder %s15, 2
      %p125 = por %p123, %p124
      %p127 = scmp.ne.s32.totalorder %s110, %s126
      %p128 = scmp.eq.s32.totalorder %s15, 0
      %p129 = por %p127, %p128
      %p130 = scmp.le.s32.totalorder 1, %s9
      %p131 = scmp.lt.s32.totalorder %s9, 4
      %p132 = pnand %p130, %p131
      %p133 = pneg %p132
      // Predicated region
      $region9: #{discriminator_forward.10} parent=5 // pred_check
        _
      $region10: #{discriminator_forward.10} parent=5 // pred_check_branch
        %135 = sbr.rel (%p132) target = $region12
      $region11: #{discriminator_forward.10} parent=5 // pred_region
        %s136 = ssub.s32 %s9, 1
        // Predicated region
        $region13: #{discriminator_forward.10} parent=11 // pred_check
          %p137 = pneg %p96
        $region14: #{discriminator_forward.10} parent=11 // pred_check_branch
          %139 = sbr.rel (%p137) target = $region16
        $region15: #{discriminator_forward.10} parent=11 // pred_region
          _
        $region16: #{discriminator_forward.10} parent=11 // pred_fallthru
          _
      $region12: #{discriminator_forward.10} parent=5 // pred_fallthru
        _
      %p140 = scmp.lt.s32.totalorder %s9, 3
      // Predicated region
      $region17: #{discriminator_forward.10} parent=5 // pred_check
        %p141 = pneg %p140
      $region18: #{discriminator_forward.10} parent=5 // pred_check_branch
        %143 = sbr.rel (%p141) target = $region20
      $region19: #{discriminator_forward.10} parent=5 // pred_region
        // Predicated region
        $region21: #{discriminator_forward.10} parent=19 // pred_check
          %p144 = pneg %p43
        $region22: #{discriminator_forward.10} parent=19 // pred_check_branch
          %146 = sbr.rel (%p144) target = $region24
        $region23: #{discriminator_forward.10} parent=19 // pred_region
          %s147 = sand.u32 %s33, 1
          %s148 = sand.u32 %s33, 1
          %s149 = smul.addr %s148, 48
          %s150 = scalar_lea.vmem [#allocation3], %s149
          %s151 = smul.u32 4, %s16
          %s152 = smul.u32 3, %s17
          %s153 = smul.addr %s151, 9
          %s154 = sadd.s32 %s152, %s153
          %s155 = smul.addr %s154, 4
          %s156 = scalar_lea.vmem %s0, %s155
          // Predicated region
          $region25: #{discriminator_forward.10} parent=23 // pred_check
            _
          $region26: #{discriminator_forward.10} parent=23 // pred_check_branch
            %158 = sbr.rel (0) target = $region28
          $region27: #{discriminator_forward.10} parent=23 // pred_region
            // Predicated region
            $region29: #{discriminator_forward.10} parent=27 // pred_check
              _
            $region30: #{discriminator_forward.10} parent=27 // pred_check_branch
              %160 = sbr.rel (0) target = $region32
            $region31: #{discriminator_forward.10} parent=27 // pred_region
              %s161 = scalar_lea.vmem %s156, 8
              %s162 = scalar_lea.vmem %s150, 8 [#allocation3]
              loop: start=0, step=1, limit=1
              $region33: #{discriminator_forward.10} parent=31 // loop_pre_header
                _
              $region34: #{discriminator_forward.10} parent=31 // loop_header
                %s164 = sphi 0, %s168
                %p165 = scmp.ge.s32.totalorder %s164, 1
                %s169 = sphi %s156, %s156
                %s170 = sphi %s150, %s150
              $region35: #{discriminator_forward.10} parent=31 // loop_header_branch
                %167 = sbr.rel (%p165) target = $region39
              $region36: #{discriminator_forward.10} parent=31 // loop_body
                %v171 = vld [vmem:[%s169] sm:$0xff]
                %172 = vst [vmem:[%s170] sm:$0xff] %v171
                %v173 = vld [vmem:[%s169 + $0x24] sm:$0xff]
                %174 = vst [vmem:[%s170 + $0xc] sm:$0xff] %v173
                %v175 = vld [vmem:[%s169 + $0x48] sm:$0xff]
                %176 = vst [vmem:[%s170 + $0x18] sm:$0xff] %v175
                %v177 = vld [vmem:[%s169 + $0x6c] sm:$0xff]
                %178 = vst [vmem:[%s170 + $0x24] sm:$0xff] %v177
              $region37: #{discriminator_forward.10} parent=31 // loop_footer
                %s168 = sadd.s32 1, %s164
              $region38: #{discriminator_forward.10} parent=31 // loop_footer_branch
                %163 = sbr.rel target = $region34
              $region39: #{discriminator_forward.10} parent=31 // loop_exit
                _
              %s180 = ssub.s32 16, 1
              loop: start=0, step=1, limit=1
              $region40: #{discriminator_forward.10} parent=31 // loop_pre_header
                _
              $region41: #{discriminator_forward.10} parent=31 // loop_header
                %s182 = sphi 0, %s186
                %p183 = scmp.ge.s32.totalorder %s182, 1
                %s187 = sphi %s161, %s161
                %s188 = sphi %s162, %s162
              $region42: #{discriminator_forward.10} parent=31 // loop_header_branch
                %185 = sbr.rel (%p183) target = $region46
              $region43: #{discriminator_forward.10} parent=31 // loop_body
                %v189 = vld [vmem:[%s187] sm:%s180]
                %190 = vst [vmem:[%s188] sm:%s180] %v189
                %v191 = vld [vmem:[%s187 + $0x24] sm:%s180]
                %192 = vst [vmem:[%s188 + $0xc] sm:%s180] %v191
                %v193 = vld [vmem:[%s187 + $0x48] sm:%s180]
                %194 = vst [vmem:[%s188 + $0x18] sm:%s180] %v193
                %v195 = vld [vmem:[%s187 + $0x6c] sm:%s180]
                %196 = vst [vmem:[%s188 + $0x24] sm:%s180] %v195
              $region44: #{discriminator_forward.10} parent=31 // loop_footer
                %s186 = sadd.s32 1, %s182
              $region45: #{discriminator_forward.10} parent=31 // loop_footer_branch
                %181 = sbr.rel target = $region41
              $region46: #{discriminator_forward.10} parent=31 // loop_exit
                _
            $region32: #{discriminator_forward.10} parent=27 // pred_fallthru
              _
          $region28: #{discriminator_forward.10} parent=23 // pred_fallthru
            _
          %197 = vnop
        $region24: #{discriminator_forward.10} parent=19 // pred_fallthru
          _
        // Predicated region
        $region47: #{discriminator_forward.10} parent=19 // pred_check
          %p198 = pneg %p69
        $region48: #{discriminator_forward.10} parent=19 // pred_check_branch
          %200 = sbr.rel (%p198) target = $region50
        $region49: #{discriminator_forward.10} parent=19 // pred_region
          %s201 = smul.u32 48, %s17
          %p202 = scmp.lt.s32.totalorder %s201, 143
          %s203 = scalar_select %p202, %s201, 143
          %s204 = smul.addr %s203, 4
          %s205 = scalar_lea.vmem %s1, %s204
          %s206 = smul.u32 48, %s17
        $region50: #{discriminator_forward.10} parent=19 // pred_fallthru
          _
      $region20: #{discriminator_forward.10} parent=5 // pred_fallthru
        _
      %p207 = scmp.le.s32.totalorder 1, %s9
      %p208 = scmp.lt.s32.totalorder %s9, 4
      %p209 = pnand %p207, %p208
      %p210 = pneg %p209
      // Predicated region
      $region51: #{discriminator_forward.10} parent=5 // pred_check
        _
      $region52: #{discriminator_forward.10} parent=5 // pred_check_branch
        %212 = sbr.rel (%p209) target = $region54
      $region53: #{discriminator_forward.10} parent=5 // pred_region
        %s213 = ssub.s32 %s9, 1
        %s214 = sand.u32 %s36, 1
        %s215 = sand.u32 %s36, 1
        %s216 = smul.addr %s215, 48
        %s217 = scalar_lea.vmem [#allocation3], %s216
        // Predicated region
        $region55: #{discriminator_forward.10} parent=53 // pred_check
          %p218 = pneg %p49
        $region56: #{discriminator_forward.10} parent=53 // pred_check_branch
          %220 = sbr.rel (%p218) target = $region58
        $region57: #{discriminator_forward.10} parent=53 // pred_region
          _
        $region58: #{discriminator_forward.10} parent=53 // pred_fallthru
          _
        %s221 = sand.u32 %s36, 1
        %s222 = sand.u32 %s36, 1
        %s223 = smul.addr %s222, 48
        %s224 = scalar_lea.vmem [#allocation3], %s223
        %p225 = pneg %p49
        %p226 = pneg %p46
        %s227 = smul.u32 48, %s19
        %p228 = scmp.lt.s32.totalorder %s227, 143
        %s229 = scalar_select %p228, %s227, 143
        %s230 = smul.addr %s229, 4
        %s231 = scalar_lea.vmem %s1, %s230
        %p232 = pneg %p75
        %p233 = pneg %p72
        %p234 = pneg %p96
        %p235 = pneg %p93
        %p236 = pneg %p122
        %p237 = pneg %p119
        %s238 = smul.u32 4, %s18
        %p239 = scmp.lt.s32.totalorder %s238, 3
        %s240 = scalar_select %p239, %s238, 3
        %s241 = smul.addr %s240, 4
        %s242 = scalar_lea.vmem %s3, %s241
        %s243 = smul.u32 4, %s18
        %s244 = smul.u32 3, %s19
        %s245 = smul.u32 48, %s19
        %p246 = scmp.lt.s32.totalorder %s245, 143
        %s247 = scalar_select %p246, %s245, 143
        %s248 = smul.addr %s247, 4
        %s249 = scalar_lea.vmem %s1, %s248
        %s250 = smul.u32 48, %s19
        %s251 = smul.u32 4, %s18
        %p252 = scmp.lt.s32.totalorder %s251, 3
        %s253 = scalar_select %p252, %s251, 3
        %s254 = smul.addr %s253, 4
        %s255 = scalar_lea.vmem %s3, %s254
        %s256 = smul.u32 4, %s18
        %p258 = scmp.eq.s32.totalorder %s19, 0
        // Predicated region
        $region59: #{discriminator_forward.10} parent=53 // pred_check
          %p259 = pneg %p258
        $region60: #{discriminator_forward.10} parent=53 // pred_check_branch
          %261 = sbr.rel (%p259) target = $region62
        $region61: #{discriminator_forward.10} parent=53 // pred_region
          %262 = vst [vmem:[#allocation2] sm:$0xff] 0.0
          %263 = vst [vmem:[#allocation2 + $0x8] sm:$0xff] 0.0
          %264 = vst [vmem:[#allocation2 + $0x10] sm:$0xff] 0.0
          %265 = vst [vmem:[#allocation2 + $0x18] sm:$0xff] 0.0
        $region62: #{discriminator_forward.10} parent=53 // pred_fallthru
          _
        %v266 = vld [vmem:[#allocation2] sm:$0xff]
        %v267 = vld [vmem:[#allocation2 + $0x8] sm:$0xff]
        %v268 = vld [vmem:[#allocation2 + $0x10] sm:$0xff]
        %v269 = vld [vmem:[#allocation2 + $0x18] sm:$0xff]
        %v270 = vld [vmem:[%s217] sm:$0xff]
        %v271 = vld [vmem:[%s217 + $0x8] sm:$0xf]
        %v272 = vld [vmem:[%s217 + $0xc] sm:$0xff]
        %v273 = vld [vmem:[%s217 + $0x14] sm:$0xf]
        %v274 = vld [vmem:[%s217 + $0x18] sm:$0xff]
        %v275 = vld [vmem:[%s217 + $0x20] sm:$0xf]
        %v276 = vld [vmem:[%s217 + $0x24] sm:$0xff]
        %v277 = vld [vmem:[%s217 + $0x2c] sm:$0xf]
        %v278 = vld [vmem:[%s249] sm:$0xf]
        %v279 = vld [vmem:[%s249 + $0x4] sm:$0xf]
        %v280 = vld [vmem:[%s249 + $0x8] sm:$0xf]
        %v281 = vld [vmem:[%s249 + $0xc] sm:$0xf]
        %v282 = vld [vmem:[%s249 + $0x10] sm:$0xf]
        %v283 = vld [vmem:[%s249 + $0x14] sm:$0xf]
        %v284 = vld [vmem:[%s249 + $0x18] sm:$0xf]
        %v285 = vld [vmem:[%s249 + $0x1c] sm:$0xf]
        %v286 = vld [vmem:[%s249 + $0x20] sm:$0xf]
        %v287 = vld [vmem:[%s249 + $0x24] sm:$0xf]
        %v288 = vld [vmem:[%s249 + $0x28] sm:$0xf]
        %v289 = vld [vmem:[%s249 + $0x2c] sm:$0xf]
        %v290 = vld [vmem:[%s249 + $0x30] sm:$0xf]
        %v291 = vld [vmem:[%s249 + $0x34] sm:$0xf]
        %v292 = vld [vmem:[%s249 + $0x38] sm:$0xf]
        %v293 = vld [vmem:[%s249 + $0x3c] sm:$0xf]
        %v294 = vld [vmem:[%s249 + $0x40] sm:$0xf]
        %v295 = vld [vmem:[%s249 + $0x44] sm:$0xf]
        %v296 = vld [vmem:[%s249 + $0x48] sm:$0xf]
        %v297 = vld [vmem:[%s249 + $0x4c] sm:$0xf]
        %v298 = vld [vmem:[%s249 + $0x50] sm:$0xf]
        %v299 = vld [vmem:[%s249 + $0x54] sm:$0xf]
        %v300 = vld [vmem:[%s249 + $0x58] sm:$0xf]
        %v301 = vld [vmem:[%s249 + $0x5c] sm:$0xf]
        %v302 = vld [vmem:[%s249 + $0x60] sm:$0xf]
        %v303 = vld [vmem:[%s249 + $0x64] sm:$0xf]
        %v304 = vld [vmem:[%s249 + $0x68] sm:$0xf]
        %v305 = vld [vmem:[%s249 + $0x6c] sm:$0xf]
        %v306 = vld [vmem:[%s249 + $0x70] sm:$0xf]
        %v307 = vld [vmem:[%s249 + $0x74] sm:$0xf]
        %v308 = vld [vmem:[%s249 + $0x78] sm:$0xf]
        %v309 = vld [vmem:[%s249 + $0x7c] sm:$0xf]
        %v310 = vld [vmem:[%s249 + $0x80] sm:$0xf]
        %v311 = vld [vmem:[%s249 + $0x84] sm:$0xf]
        %v312 = vld [vmem:[%s249 + $0x88] sm:$0xf]
        %v313 = vld [vmem:[%s249 + $0x8c] sm:$0xf]
        %v314 = vld [vmem:[%s249 + $0x90] sm:$0xf]
        %v315 = vld [vmem:[%s249 + $0x94] sm:$0xf]
        %v316 = vld [vmem:[%s249 + $0x98] sm:$0xf]
        %v317 = vld [vmem:[%s249 + $0x9c] sm:$0xf]
        %v318 = vld [vmem:[%s249 + $0xa0] sm:$0xf]
        %v319 = vld [vmem:[%s249 + $0xa4] sm:$0xf]
        %v320 = vld [vmem:[%s249 + $0xa8] sm:$0xf]
        %v321 = vld [vmem:[%s249 + $0xac] sm:$0xf]
        %v322 = vld [vmem:[%s249 + $0xb0] sm:$0xf]
        %v323 = vld [vmem:[%s249 + $0xb4] sm:$0xf]
        %v324 = vld [vmem:[%s249 + $0xb8] sm:$0xf]
        %v325 = vld [vmem:[%s249 + $0xbc] sm:$0xf]
        %v334 = vunpack.c.l.b16 %v270
        %v335 = vunpack.c.h.b16 %v270
        %v336 = vunpack.c.l.b16 %v271
        %v337 = vunpack.c.l.b16 %v272
        %v338 = vunpack.c.h.b16 %v272
        %v339 = vunpack.c.l.b16 %v273
        %v340 = vunpack.c.l.b16 %v274
        %v341 = vunpack.c.h.b16 %v274
        %v342 = vunpack.c.l.b16 %v275
        %v343 = vunpack.c.l.b16 %v276
        %v344 = vunpack.c.h.b16 %v276
        %v345 = vunpack.c.l.b16 %v277
        %v346 = vpack.c.b16 %v337, %v334
        %v347 = vpack.c.b16 %v338, %v335
        %v348 = vpack.c.b16 %v339, %v336
        %v349 = vpack.c.b16 %v343, %v340
        %v350 = vpack.c.b16 %v344, %v341
        %v351 = vpack.c.b16 %v345, %v342
        %v406 = vunpack.c.l.b16 %v278
        %v407 = vunpack.c.l.b16 %v279
        %v408 = vunpack.c.l.b16 %v280
        %v409 = vunpack.c.l.b16 %v281
        %v410 = vunpack.c.l.b16 %v282
        %v411 = vunpack.c.l.b16 %v283
        %v412 = vunpack.c.l.b16 %v284
        %v413 = vunpack.c.l.b16 %v285
        %v414 = vunpack.c.l.b16 %v286
        %v415 = vunpack.c.l.b16 %v287
        %v416 = vunpack.c.l.b16 %v288
        %v417 = vunpack.c.l.b16 %v289
        %v418 = vunpack.c.l.b16 %v290
        %v419 = vunpack.c.l.b16 %v291
        %v420 = vunpack.c.l.b16 %v292
        %v421 = vunpack.c.l.b16 %v293
        %v422 = vunpack.c.l.b16 %v294
        %v423 = vunpack.c.l.b16 %v295
        %v424 = vunpack.c.l.b16 %v296
        %v425 = vunpack.c.l.b16 %v297
        %v426 = vunpack.c.l.b16 %v298
        %v427 = vunpack.c.l.b16 %v299
        %v428 = vunpack.c.l.b16 %v300
        %v429 = vunpack.c.l.b16 %v301
        %v430 = vunpack.c.l.b16 %v302
        %v431 = vunpack.c.l.b16 %v303
        %v432 = vunpack.c.l.b16 %v304
        %v433 = vunpack.c.l.b16 %v305
        %v434 = vunpack.c.l.b16 %v306
        %v435 = vunpack.c.l.b16 %v307
        %v436 = vunpack.c.l.b16 %v308
        %v437 = vunpack.c.l.b16 %v309
        %v438 = vunpack.c.l.b16 %v310
        %v439 = vunpack.c.l.b16 %v311
        %v440 = vunpack.c.l.b16 %v312
        %v441 = vunpack.c.l.b16 %v313
        %v442 = vunpack.c.l.b16 %v314
        %v443 = vunpack.c.l.b16 %v315
        %v444 = vunpack.c.l.b16 %v316
        %v445 = vunpack.c.l.b16 %v317
        %v446 = vunpack.c.l.b16 %v318
        %v447 = vunpack.c.l.b16 %v319
        %v448 = vunpack.c.l.b16 %v320
        %v449 = vunpack.c.l.b16 %v321
        %v450 = vunpack.c.l.b16 %v322
        %v451 = vunpack.c.l.b16 %v323
        %v452 = vunpack.c.l.b16 %v324
        %v453 = vunpack.c.l.b16 %v325
        %v454 = vpack.c.b16 %v407, %v406
        %v455 = vpack.c.b16 %v409, %v408
        %v456 = vpack.c.b16 %v411, %v410
        %v457 = vpack.c.b16 %v413, %v412
        %v458 = vpack.c.b16 %v415, %v414
        %v459 = vpack.c.b16 %v417, %v416
        %v460 = vpack.c.b16 %v419, %v418
        %v461 = vpack.c.b16 %v421, %v420
        %v462 = vpack.c.b16 %v423, %v422
        %v463 = vpack.c.b16 %v425, %v424
        %v464 = vpack.c.b16 %v427, %v426
        %v465 = vpack.c.b16 %v429, %v428
        %v466 = vpack.c.b16 %v431, %v430
        %v467 = vpack.c.b16 %v433, %v432
        %v468 = vpack.c.b16 %v435, %v434
        %v469 = vpack.c.b16 %v437, %v436
        %v470 = vpack.c.b16 %v439, %v438
        %v471 = vpack.c.b16 %v441, %v440
        %v472 = vpack.c.b16 %v443, %v442
        %v473 = vpack.c.b16 %v445, %v444
        %v474 = vpack.c.b16 %v447, %v446
        %v475 = vpack.c.b16 %v449, %v448
        %v476 = vpack.c.b16 %v451, %v450
        %v477 = vpack.c.b16 %v453, %v452
        %502 = vmatprep.subr.bf16.mxu0 0
        %503 = vmatpush1.bf16.msra.mxu0 %v461
        %504 = vmatprep.subr.bf16.mxu0 0
        %505 = vmatpush1.bf16.msra.mxu0 %v460
        %506 = vmatprep.subr.bf16.mxu0 0
        %507 = vmatpush1.bf16.msra.mxu0 %v459
        %508 = vmatprep.subr.bf16.mxu0 0
        %509 = vmatpush1.bf16.msra.mxu0 %v458
        %510 = vmatprep.subr.bf16.mxu0 0
        %511 = vmatpush1.bf16.msra.mxu0 %v457
        %512 = vmatprep.subr.bf16.mxu0 0
        %513 = vmatpush1.bf16.msra.mxu0 %v456
        %514 = vmatprep.subr.bf16.mxu0 0
        %515 = vmatpush1.bf16.msra.mxu0 %v455
        %516 = vmatprep.subr.bf16.mxu0 0
        %517 = vmatpush1.bf16.msra.mxu0 %v454
        %518 = vmatprep.subr.bf16.mxu0 0
        %519 = vmatpush2.bf16.msra.mxu0 %v469
        %520 = vmatprep.subr.bf16.mxu0 0
        %521 = vmatpush2.bf16.msra.mxu0 %v468
        %522 = vmatprep.subr.bf16.mxu0 0
        %523 = vmatpush2.bf16.msra.mxu0 %v467
        %524 = vmatprep.subr.bf16.mxu0 0
        %525 = vmatpush2.bf16.msra.mxu0 %v466
        %526 = vmatprep.subr.bf16.mxu0 0
        %527 = vmatpush2.bf16.msra.mxu0 %v465
        %528 = vmatprep.subr.bf16.mxu0 0
        %529 = vmatpush2.bf16.msra.mxu0 %v464
        %530 = vmatprep.subr.bf16.mxu0 0
        %531 = vmatpush2.bf16.msra.mxu0 %v463
        %532 = vmatprep.subr.bf16.mxu0 0
        %533 = vmatpush2.bf16.msra.mxu0 %v462
        %534 = vmatprep.mubr.bf16.mxu0 %v347
        %535 = vmatmul.mubr.bf16.gmra.mxu0 %v346
        %v536 = vpop.f32.mrf.mxu0
        %v537 = vadd.f32 0.0, %v536
        %v538 = vpop.f32.mrf.mxu0
        %v539 = vpop.f32.mrf.mxu0
        %v540 = vadd.f32 0.0, %v539
        %v541 = vpop.f32.mrf.mxu0
        %542 = vmatprep.mubr.bf16.mxu0 %v350
        %543 = vmatmul.mubr.bf16.gmra.mxu0 %v349
        %v544 = vpop.f32.mrf.mxu0
        %v545 = vadd.f32 0.0, %v544
        %v546 = vpop.f32.mrf.mxu0
        %v547 = vpop.f32.mrf.mxu0
        %v548 = vadd.f32 0.0, %v547
        %v549 = vpop.f32.mrf.mxu0
        %550 = vdwg.mxu0
        %551 = vmatprep.subr.bf16.mxu0 0
        %552 = vmatpush1.bf16.msra.mxu0 %v477
        %553 = vmatprep.subr.bf16.mxu0 0
        %554 = vmatpush1.bf16.msra.mxu0 %v476
        %555 = vmatprep.subr.bf16.mxu0 0
        %556 = vmatpush1.bf16.msra.mxu0 %v475
        %557 = vmatprep.subr.bf16.mxu0 0
        %558 = vmatpush1.bf16.msra.mxu0 %v474
        %559 = vmatprep.subr.bf16.mxu0 0
        %560 = vmatpush1.bf16.msra.mxu0 %v473
        %561 = vmatprep.subr.bf16.mxu0 0
        %562 = vmatpush1.bf16.msra.mxu0 %v472
        %563 = vmatprep.subr.bf16.mxu0 0
        %564 = vmatpush1.bf16.msra.mxu0 %v471
        %565 = vmatprep.subr.bf16.mxu0 0
        %566 = vmatpush1.bf16.msra.mxu0 %v470
        %567 = vmatprep.subr.bf16.mxu0 0
        %568 = vmatpush2.bf16.msra.mxu0 0
        %569 = vmatprep.subr.bf16.mxu0 0
        %570 = vmatpush2.bf16.msra.mxu0 0
        %571 = vmatprep.subr.bf16.mxu0 0
        %572 = vmatpush2.bf16.msra.mxu0 0
        %573 = vmatprep.subr.bf16.mxu0 0
        %574 = vmatpush2.bf16.msra.mxu0 0
        %575 = vmatprep.subr.bf16.mxu0 0
        %576 = vmatpush2.bf16.msra.mxu0 0
        %577 = vmatprep.subr.bf16.mxu0 0
        %578 = vmatpush2.bf16.msra.mxu0 0
        %579 = vmatprep.subr.bf16.mxu0 0
        %580 = vmatpush2.bf16.msra.mxu0 0
        %581 = vmatprep.subr.bf16.mxu0 0
        %582 = vmatpush2.bf16.msra.mxu0 0
        %583 = vmatprep.mubr.bf16.mxu0 0
        %584 = vmatmul.mubr.bf16.gmra.mxu0 %v348
        %v585 = vpop.f32.mrf.mxu0
        %v586 = vadd.f32 %v537, %v585
        %v587 = vpop.f32.mrf.mxu0
        %v588 = vpop.f32.mrf.mxu0
        %v589 = vadd.f32 %v540, %v588
        %v590 = vpop.f32.mrf.mxu0
        %591 = vmatprep.mubr.bf16.mxu0 0
        %592 = vmatmul.mubr.bf16.gmra.mxu0 %v351
        %v593 = vpop.f32.mrf.mxu0
        %v594 = vadd.f32 %v545, %v593
        %v595 = vpop.f32.mrf.mxu0
        %v596 = vpop.f32.mrf.mxu0
        %v597 = vadd.f32 %v548, %v596
        %v598 = vpop.f32.mrf.mxu0
        %599 = vdwg.mxu0
        %v600 = vadd.f32 %v266, %v586
        %v601 = vadd.f32 %v267, %v589
        %v602 = vadd.f32 %v268, %v594
        %v603 = vadd.f32 %v269, %v597
        %604 = vst [vmem:[#allocation2] sm:$0xff] %v600
        %605 = vst [vmem:[#allocation2 + $0x8] sm:$0xff] %v601
        %606 = vst [vmem:[#allocation2 + $0x10] sm:$0xff] %v602
        %607 = vst [vmem:[#allocation2 + $0x18] sm:$0xff] %v603
        %p608 = scmp.eq.s32.totalorder %s19, 2
        // Predicated region
        $region63: #{discriminator_forward.10} parent=53 // pred_check
          %p609 = pneg %p608
        $region64: #{discriminator_forward.10} parent=53 // pred_check_branch
          %611 = sbr.rel (%p609) target = $region66
        $region65: #{discriminator_forward.10} parent=53 // pred_region
          %v612 = vld [vmem:[#allocation2] sm:$0xff]
          %v613 = vld [vmem:[#allocation2 + $0x8] sm:$0xff]
          %v614 = vld [vmem:[#allocation2 + $0x10] sm:$0xff]
          %v615 = vld [vmem:[#allocation2 + $0x18] sm:$0xff]
          %v616 = vld [vmem:[%s2] sm:$0x1]
          %v618 = vlaneseq
          %v619 = vshrl.u32 %v618, 7
          %v620 = vsub.s32 0, %v619
          %v621 = vrot.slane %v616, %v620
          %v623 = vadd.f32 %v612, %v621
          %v624 = vadd.f32 %v613, %v621
          %v625 = vadd.f32 %v614, %v621
          %v626 = vadd.f32 %v615, %v621
          %vm627 = vcmp.ge.f32.partialorder %v623, 0.0
          %vm628 = vcmp.ge.f32.partialorder %v624, 0.0
          %vm629 = vcmp.ge.f32.partialorder %v625, 0.0
          %vm630 = vcmp.ge.f32.partialorder %v626, 0.0
          %v631 = vmul.f32 %v623, 0.2
          %v632 = vmul.f32 %v624, 0.2
          %v633 = vmul.f32 %v625, 0.2
          %v634 = vmul.f32 %v626, 0.2
          %v635 = vsel %vm627, %v623, %v631
          %v636 = vsel %vm628, %v624, %v632
          %v637 = vsel %vm629, %v625, %v633
          %v638 = vsel %vm630, %v626, %v634
          %v639 = vpack.c.bf16 %v636, %v635
          %v640 = vpack.c.bf16 %v638, %v637
          %v643 = vunpack.c.l.b16 %v639
          %v644 = vunpack.c.h.b16 %v639
          %v645 = vunpack.c.l.b16 %v640
          %v646 = vunpack.c.h.b16 %v640
          %v647 = vpack.c.b16 %v643, %v643
          %v648 = vpack.c.b16 %v644, %v644
          %v649 = vpack.c.b16 %v645, %v645
          %v650 = vpack.c.b16 %v646, %v646
          %655 = vst [vmem:[%s255] sm:$0xf] %v647
          %656 = vst [vmem:[%s255 + $0x4] sm:$0xf] %v648
          %657 = vst [vmem:[%s255 + $0x8] sm:$0xf] %v649
          %658 = vst [vmem:[%s255 + $0xc] sm:$0xf] %v650
        $region66: #{discriminator_forward.10} parent=53 // pred_fallthru
          _
        %s659 = smul.u32 4, %s18
        %p660 = scmp.lt.s32.totalorder %s659, 3
        %s661 = scalar_select %p660, %s659, 3
        %s662 = smul.addr %s661, 4
        %s663 = scalar_lea.vmem %s3, %s662
        // Predicated region
        $region67: #{discriminator_forward.10} parent=53 // pred_check
          %p664 = pneg %p119
        $region68: #{discriminator_forward.10} parent=53 // pred_check_branch
          %666 = sbr.rel (%p664) target = $region70
        $region69: #{discriminator_forward.10} parent=53 // pred_region
          %s667 = smul.u32 4, %s18
        $region70: #{discriminator_forward.10} parent=53 // pred_fallthru
          _
        // Predicated region
        $region71: #{discriminator_forward.10} parent=53 // pred_check
          %p668 = pneg %p119
        $region72: #{discriminator_forward.10} parent=53 // pred_check_branch
          %670 = sbr.rel (%p668) target = $region74
        $region73: #{discriminator_forward.10} parent=53 // pred_region
          %s671 = smul.u32 4, %s18
          %p672 = scmp.lt.s32.totalorder %s671, 3
          %s673 = scalar_select %p672, %s671, 3
          %s674 = smul.addr %s673, 4
          %s675 = scalar_lea.vmem %s3, %s674
        $region74: #{discriminator_forward.10} parent=53 // pred_fallthru
          _
      $region54: #{discriminator_forward.10} parent=5 // pred_fallthru
        _
      %p676 = scmp.le.s32.totalorder 2, %s9
      // Predicated region
      $region75: #{discriminator_forward.10} parent=5 // pred_check
        %p677 = pneg %p676
      $region76: #{discriminator_forward.10} parent=5 // pred_check_branch
        %679 = sbr.rel (%p677) target = $region78
      $region77: #{discriminator_forward.10} parent=5 // pred_region
        %s680 = ssub.s32 %s9, 2
      $region78: #{discriminator_forward.10} parent=5 // pred_fallthru
        _
    $region6: #{discriminator_forward.10} parent=1 // loop_footer
      %s13 = sadd.s32 1, %s9
    $region7: #{discriminator_forward.10} parent=1 // loop_footer_branch
      %8 = sbr.rel target = $region3
    $region8: #{discriminator_forward.10} parent=1 // loop_exit
      _

// kernel: custom-call.4
$region0: #{custom-call.4}
  %s0 = inlined_call_operand.vmem [shape: f32[256], index: 0, kind: output, shape index: {}]

// kernel: discriminator_forward.11
$region0: #{discriminator_forward.11}
  #allocation0 [shape = 'u32[]', space=smem, size = 0x4, offset = 0x4, fixed_abs, tag = 'smem constant byte address 0x4 - core index']
  #allocation1 [shape = 'u32[144,128]{1,0:T(1,128)}', space=vmem, size = 0x12000, scoped, tag = 'internal scratch']
  #allocation2 [shape = 'f32[32,256]{1,0:T(8,128)}', space=vmem, size = 0x8000, scoped, tag = 'scratch operand']
  %s0 = inlined_call_operand.vmem [shape: bf16[32,1152], index: 0, kind: input, shape index: {}]
  %s1 = inlined_call_operand.vmem [shape: bf16[1152,256], index: 1, kind: input, shape index: {}]
  %s2 = inlined_call_operand.vmem [shape: f32[1,256], index: 2, kind: input, shape index: {}]
  %s3 = inlined_call_operand.vmem [shape: bf16[32,256], index: 3, kind: output, shape index: {}]
  %s4 = sld [smem:[#allocation0]]
  $region79: #{discriminator_forward.11} parent=0
    _
  %s6 = ssub.s32 1, %s4
  %s7 = scalar_select 0, %s6, %s4
  $region1: #{discriminator_forward.11} parent=0
    #allocation3 [shape = 'u8[49152]{0}', space=vmem, size = 0xc000, scoped, tag = 'input window, operand 0']
    loop: start=0, step=1, limit=5
    $region2: #{discriminator_forward.11} parent=1 // loop_pre_header
      _
    $region3: #{discriminator_forward.11} parent=1 // loop_header
      %s9 = sphi 0, %s13
      %p10 = scmp.ge.s32.totalorder %s9, 5
      %s16 = sphi 0, %s28
      %s17 = sphi 0, %s24
      %s18 = sphi 0, %s16
      %s19 = sphi 0, %s17
      %s20 = sphi 0, %s18
      %s21 = sphi 0, %s19
      %s33 = sphi 0, %s35
      %s36 = sphi 0, %s33
      %s37 = sphi 0, %s36
      %s53 = sphi 0, %s37
      %s59 = sphi 0, %s61
      %s62 = sphi 0, %s59
      %s63 = sphi 0, %s62
      %s79 = sphi 0, %s63
      %s83 = sphi 0, %s83
      %s85 = sphi 0, %s83
      %s86 = sphi 0, %s85
      %s100 = sphi 0, %s86
      %s106 = sphi 0, %s108
      %s109 = sphi 0, %s106
      %s110 = sphi 0, %s109
      %s126 = sphi 0, %s110
    $region4: #{discriminator_forward.11} parent=1 // loop_header_branch
      %12 = sbr.rel (%p10) target = $region8
    $region5: #{discriminator_forward.11} parent=1 // loop_body
      %s14 = ssub.s32 %s9, 1
      %s15 = ssub.s32 %s9, 2
      %s22 = sadd.s32 1, %s17
      %p23 = scmp.ge.s32.totalorder %s22, 3
      %s24 = scalar_select %p23, 0, %s22
      %s25 = sadd.s32 1, %s16
      %s26 = scalar_select %p23, %s25, %s16
      %p27 = scmp.ge.s32.totalorder %s26, 1
      %s28 = scalar_select %p27, 0, %s26
      %s29 = ssub.s32 %s16, %s28
      %s30 = ssub.s32 %s17, %s24
      %s31 = sor.u32 %s29, %s30
      %p32 = scmp.eq.s32.totalorder %s31, 0
      %s34 = sadd.s32 %s33, 1
      %s35 = scalar_select %p32, %s33, %s34
      %p38 = pneg %p32
      %p39 = scmp.eq.s32.totalorder %s9, 2
      %p40 = por %p38, %p39
      %p41 = scmp.ne.s32.totalorder %s33, %s36
      %p42 = scmp.eq.s32.totalorder %s9, 0
      %p43 = por %p41, %p42
      %p44 = scmp.ne.s32.totalorder %s33, %s36
      %p45 = scmp.eq.s32.totalorder %s14, 2
      %p46 = por %p44, %p45
      %p47 = scmp.ne.s32.totalorder %s36, %s37
      %p48 = scmp.eq.s32.totalorder %s14, 0
      %p49 = por %p47, %p48
      %p50 = scmp.ne.s32.totalorder %s36, %s37
      %p51 = scmp.eq.s32.totalorder %s15, 2
      %p52 = por %p50, %p51
      %p54 = scmp.ne.s32.totalorder %s37, %s53
      %p55 = scmp.eq.s32.totalorder %s15, 0
      %p56 = por %p54, %p55
      %s57 = ssub.s32 %s17, %s24
      %p58 = scmp.eq.s32.totalorder %s57, 0
      %s60 = sadd.s32 %s59, 1
      %s61 = scalar_select %p58, %s59, %s60
      %p64 = pneg %p58
      %p65 = scmp.eq.s32.totalorder %s9, 2
      %p66 = por %p64, %p65
      %p67 = scmp.ne.s32.totalorder %s59, %s62
      %p68 = scmp.eq.s32.totalorder %s9, 0
      %p69 = por %p67, %p68
      %p70 = scmp.ne.s32.totalorder %s59, %s62
      %p71 = scmp.eq.s32.totalorder %s14, 2
      %p72 = por %p70, %p71
      %p73 = scmp.ne.s32.totalorder %s62, %s63
      %p74 = scmp.eq.s32.totalorder %s14, 0
      %p75 = por %p73, %p74
      %p76 = scmp.ne.s32.totalorder %s62, %s63
      %p77 = scmp.eq.s32.totalorder %s15, 2
      %p78 = por %p76, %p77
      %p80 = scmp.ne.s32.totalorder %s63, %s79
      %p81 = scmp.eq.s32.totalorder %s15, 0
      %p82 = por %p80, %p81
      %s84 = sadd.s32 %s83, 1
      %p87 = scmp.eq.s32.totalorder %s9, 2
      %p88 = scmp.ne.s32.totalorder %s83, %s85
      %p89 = scmp.eq.s32.totalorder %s9, 0
      %p90 = por %p88, %p89
      %p91 = scmp.ne.s32.totalorder %s83, %s85
      %p92 = scmp.eq.s32.totalorder %s14, 2
      %p93 = por %p91, %p92
      %p94 = scmp.ne.s32.totalorder %s85, %s86
      %p95 = scmp.eq.s32.totalorder %s14, 0
      %p96 = por %p94, %p95
      %p97 = scmp.ne.s32.totalorder %s85, %s86
      %p98 = scmp.eq.s32.totalorder %s15, 2
      %p99 = por %p97, %p98
      %p101 = scmp.ne.s32.totalorder %s86, %s100
      %p102 = scmp.eq.s32.totalorder %s15, 0
      %p103 = por %p101, %p102
      %s104 = ssub.s32 %s16, %s28
      %p105 = scmp.eq.s32.totalorder %s104, 0
      %s107 = sadd.s32 %s106, 1
      %s108 = scalar_select %p105, %s106, %s107
      %p111 = pneg %p105
      %p112 = scmp.eq.s32.totalorder %s9, 2
      %p113 = por %p111, %p112
      %p114 = scmp.ne.s32.totalorder %s106, %s109
      %p115 = scmp.eq.s32.totalorder %s9, 0
      %p116 = por %p114, %p115
      %p117 = scmp.ne.s32.totalorder %s106, %s109
      %p118 = scmp.eq.s32.totalorder %s14, 2
      %p119 = por %p117, %p118
      %p120 = scmp.ne.s32.totalorder %s109, %s110
      %p121 = scmp.eq.s32.totalorder %s14, 0
      %p122 = por %p120, %p121
      %p123 = scmp.ne.s32.totalorder %s109, %s110
      %p124 = scmp.eq.s32.totalorder %s15, 2
      %p125 = por %p123, %p124
      %p127 = scmp.ne.s32.totalorder %s110, %s126
      %p128 = scmp.eq.s32.totalorder %s15, 0
      %p129 = por %p127, %p128
      %p130 = scmp.le.s32.totalorder 1, %s9
      %p131 = scmp.lt.s32.totalorder %s9, 4
      %p132 = pnand %p130, %p131
      %p133 = pneg %p132
      // Predicated region
      $region9: #{discriminator_forward.11} parent=5 // pred_check
        _
      $region10: #{discriminator_forward.11} parent=5 // pred_check_branch
        %135 = sbr.rel (%p132) target = $region12
      $region11: #{discriminator_forward.11} parent=5 // pred_region
        %s136 = ssub.s32 %s9, 1
        // Predicated region
        $region13: #{discriminator_forward.11} parent=11 // pred_check
          %p137 = pneg %p96
        $region14: #{discriminator_forward.11} parent=11 // pred_check_branch
          %139 = sbr.rel (%p137) target = $region16
        $region15: #{discriminator_forward.11} parent=11 // pred_region
          _
        $region16: #{discriminator_forward.11} parent=11 // pred_fallthru
          _
      $region12: #{discriminator_forward.11} parent=5 // pred_fallthru
        _
      %p140 = scmp.lt.s32.totalorder %s9, 3
      // Predicated region
      $region17: #{discriminator_forward.11} parent=5 // pred_check
        %p141 = pneg %p140
      $region18: #{discriminator_forward.11} parent=5 // pred_check_branch
        %143 = sbr.rel (%p141) target = $region20
      $region19: #{discriminator_forward.11} parent=5 // pred_region
        // Predicated region
        $region21: #{discriminator_forward.11} parent=19 // pred_check
          %p144 = pneg %p43
        $region22: #{discriminator_forward.11} parent=19 // pred_check_branch
          %146 = sbr.rel (%p144) target = $region24
        $region23: #{discriminator_forward.11} parent=19 // pred_region
          %s147 = sand.u32 %s33, 1
          %s148 = sand.u32 %s33, 1
          %s149 = smul.addr %s148, 48
          %s150 = scalar_lea.vmem [#allocation3], %s149
          %s151 = smul.u32 4, %s16
          %s152 = smul.u32 3, %s17
          %s153 = smul.addr %s151, 9
          %s154 = sadd.s32 %s152, %s153
          %s155 = smul.addr %s154, 4
          %s156 = scalar_lea.vmem %s0, %s155
          // Predicated region
          $region25: #{discriminator_forward.11} parent=23 // pred_check
            _
          $region26: #{discriminator_forward.11} parent=23 // pred_check_branch
            %158 = sbr.rel (0) target = $region28
          $region27: #{discriminator_forward.11} parent=23 // pred_region
            // Predicated region
            $region29: #{discriminator_forward.11} parent=27 // pred_check
              _
            $region30: #{discriminator_forward.11} parent=27 // pred_check_branch
              %160 = sbr.rel (0) target = $region32
            $region31: #{discriminator_forward.11} parent=27 // pred_region
              %s161 = scalar_lea.vmem %s156, 8
              %s162 = scalar_lea.vmem %s150, 8 [#allocation3]
              loop: start=0, step=1, limit=1
              $region33: #{discriminator_forward.11} parent=31 // loop_pre_header
                _
              $region34: #{discriminator_forward.11} parent=31 // loop_header
                %s164 = sphi 0, %s168
                %p165 = scmp.ge.s32.totalorder %s164, 1
                %s169 = sphi %s156, %s156
                %s170 = sphi %s150, %s150
              $region35: #{discriminator_forward.11} parent=31 // loop_header_branch
                %167 = sbr.rel (%p165) target = $region39
              $region36: #{discriminator_forward.11} parent=31 // loop_body
                %v171 = vld [vmem:[%s169] sm:$0xff]
                %172 = vst [vmem:[%s170] sm:$0xff] %v171
                %v173 = vld [vmem:[%s169 + $0x24] sm:$0xff]
                %174 = vst [vmem:[%s170 + $0xc] sm:$0xff] %v173
                %v175 = vld [vmem:[%s169 + $0x48] sm:$0xff]
                %176 = vst [vmem:[%s170 + $0x18] sm:$0xff] %v175
                %v177 = vld [vmem:[%s169 + $0x6c] sm:$0xff]
                %178 = vst [vmem:[%s170 + $0x24] sm:$0xff] %v177
              $region37: #{discriminator_forward.11} parent=31 // loop_footer
                %s168 = sadd.s32 1, %s164
              $region38: #{discriminator_forward.11} parent=31 // loop_footer_branch
                %163 = sbr.rel target = $region34
              $region39: #{discriminator_forward.11} parent=31 // loop_exit
                _
              %s180 = ssub.s32 16, 1
              loop: start=0, step=1, limit=1
              $region40: #{discriminator_forward.11} parent=31 // loop_pre_header
                _
              $region41: #{discriminator_forward.11} parent=31 // loop_header
                %s182 = sphi 0, %s186
                %p183 = scmp.ge.s32.totalorder %s182, 1
                %s187 = sphi %s161, %s161
                %s188 = sphi %s162, %s162
              $region42: #{discriminator_forward.11} parent=31 // loop_header_branch
                %185 = sbr.rel (%p183) target = $region46
              $region43: #{discriminator_forward.11} parent=31 // loop_body
                %v189 = vld [vmem:[%s187] sm:%s180]
                %190 = vst [vmem:[%s188] sm:%s180] %v189
                %v191 = vld [vmem:[%s187 + $0x24] sm:%s180]
                %192 = vst [vmem:[%s188 + $0xc] sm:%s180] %v191
                %v193 = vld [vmem:[%s187 + $0x48] sm:%s180]
                %194 = vst [vmem:[%s188 + $0x18] sm:%s180] %v193
                %v195 = vld [vmem:[%s187 + $0x6c] sm:%s180]
                %196 = vst [vmem:[%s188 + $0x24] sm:%s180] %v195
              $region44: #{discriminator_forward.11} parent=31 // loop_footer
                %s186 = sadd.s32 1, %s182
              $region45: #{discriminator_forward.11} parent=31 // loop_footer_branch
                %181 = sbr.rel target = $region41
              $region46: #{discriminator_forward.11} parent=31 // loop_exit
                _
            $region32: #{discriminator_forward.11} parent=27 // pred_fallthru
              _
          $region28: #{discriminator_forward.11} parent=23 // pred_fallthru
            _
          %197 = vnop
        $region24: #{discriminator_forward.11} parent=19 // pred_fallthru
          _
        // Predicated region
        $region47: #{discriminator_forward.11} parent=19 // pred_check
          %p198 = pneg %p69
        $region48: #{discriminator_forward.11} parent=19 // pred_check_branch
          %200 = sbr.rel (%p198) target = $region50
        $region49: #{discriminator_forward.11} parent=19 // pred_region
          %s201 = smul.u32 48, %s17
          %p202 = scmp.lt.s32.totalorder %s201, 143
          %s203 = scalar_select %p202, %s201, 143
          %s204 = smul.addr %s203, 2
          %s205 = smul.addr %s204, 4
          %s206 = scalar_lea.vmem %s1, %s205
          %s207 = smul.u32 48, %s17
        $region50: #{discriminator_forward.11} parent=19 // pred_fallthru
          _
      $region20: #{discriminator_forward.11} parent=5 // pred_fallthru
        _
      %p208 = scmp.le.s32.totalorder 1, %s9
      %p209 = scmp.lt.s32.totalorder %s9, 4
      %p210 = pnand %p208, %p209
      %p211 = pneg %p210
      // Predicated region
      $region51: #{discriminator_forward.11} parent=5 // pred_check
        _
      $region52: #{discriminator_forward.11} parent=5 // pred_check_branch
        %213 = sbr.rel (%p210) target = $region54
      $region53: #{discriminator_forward.11} parent=5 // pred_region
        %s214 = ssub.s32 %s9, 1
        %s215 = sand.u32 %s36, 1
        %s216 = sand.u32 %s36, 1
        %s217 = smul.addr %s216, 48
        %s218 = scalar_lea.vmem [#allocation3], %s217
        // Predicated region
        $region55: #{discriminator_forward.11} parent=53 // pred_check
          %p219 = pneg %p49
        $region56: #{discriminator_forward.11} parent=53 // pred_check_branch
          %221 = sbr.rel (%p219) target = $region58
        $region57: #{discriminator_forward.11} parent=53 // pred_region
          _
        $region58: #{discriminator_forward.11} parent=53 // pred_fallthru
          _
        %s222 = sand.u32 %s36, 1
        %s223 = sand.u32 %s36, 1
        %s224 = smul.addr %s223, 48
        %s225 = scalar_lea.vmem [#allocation3], %s224
        %p226 = pneg %p49
        %p227 = pneg %p46
        %s228 = smul.u32 48, %s19
        %p229 = scmp.lt.s32.totalorder %s228, 143
        %s230 = scalar_select %p229, %s228, 143
        %s231 = smul.addr %s230, 2
        %s232 = smul.addr %s231, 4
        %s233 = scalar_lea.vmem %s1, %s232
        %p234 = pneg %p75
        %p235 = pneg %p72
        %p236 = pneg %p96
        %p237 = pneg %p93
        %p238 = pneg %p122
        %p239 = pneg %p119
        %s240 = smul.u32 4, %s18
        %p241 = scmp.lt.s32.totalorder %s240, 3
        %s242 = scalar_select %p241, %s240, 3
        %s243 = smul.addr %s242, 2
        %s244 = smul.addr %s243, 4
        %s245 = scalar_lea.vmem %s3, %s244
        %s246 = smul.u32 4, %s18
        %s247 = smul.u32 3, %s19
        %s248 = smul.u32 48, %s19
        %p249 = scmp.lt.s32.totalorder %s248, 143
        %s250 = scalar_select %p249, %s248, 143
        %s251 = smul.addr %s250, 2
        %s252 = smul.addr %s251, 4
        %s253 = scalar_lea.vmem %s1, %s252
        %s254 = smul.u32 48, %s19
        %s255 = smul.u32 4, %s18
        %p256 = scmp.lt.s32.totalorder %s255, 3
        %s257 = scalar_select %p256, %s255, 3
        %s258 = smul.addr %s257, 2
        %s259 = smul.addr %s258, 4
        %s260 = scalar_lea.vmem %s3, %s259
        %s261 = smul.u32 4, %s18
        %p263 = scmp.eq.s32.totalorder %s19, 0
        // Predicated region
        $region59: #{discriminator_forward.11} parent=53 // pred_check
          %p264 = pneg %p263
        $region60: #{discriminator_forward.11} parent=53 // pred_check_branch
          %266 = sbr.rel (%p264) target = $region62
        $region61: #{discriminator_forward.11} parent=53 // pred_region
          %267 = vst [vmem:[#allocation2] sm:$0xff] 0.0
          %268 = vst [vmem:[#allocation2 + $0x8] sm:$0xff] 0.0
          %269 = vst [vmem:[#allocation2 + $0x10] sm:$0xff] 0.0
          %270 = vst [vmem:[#allocation2 + $0x18] sm:$0xff] 0.0
          %271 = vst [vmem:[#allocation2 + $0x20] sm:$0xff] 0.0
          %272 = vst [vmem:[#allocation2 + $0x28] sm:$0xff] 0.0
          %273 = vst [vmem:[#allocation2 + $0x30] sm:$0xff] 0.0
          %274 = vst [vmem:[#allocation2 + $0x38] sm:$0xff] 0.0
        $region62: #{discriminator_forward.11} parent=53 // pred_fallthru
          _
        %v275 = vld [vmem:[#allocation2] sm:$0xff]
        %v276 = vld [vmem:[#allocation2 + $0x8] sm:$0xff]
        %v277 = vld [vmem:[#allocation2 + $0x10] sm:$0xff]
        %v278 = vld [vmem:[#allocation2 + $0x18] sm:$0xff]
        %v279 = vld [vmem:[#allocation2 + $0x20] sm:$0xff]
        %v280 = vld [vmem:[#allocation2 + $0x28] sm:$0xff]
        %v281 = vld [vmem:[#allocation2 + $0x30] sm:$0xff]
        %v282 = vld [vmem:[#allocation2 + $0x38] sm:$0xff]
        %v283 = vld [vmem:[%s218] sm:$0xff]
        %v284 = vld [vmem:[%s218 + $0x8] sm:$0xf]
        %v285 = vld [vmem:[%s218 + $0xc] sm:$0xff]
        %v286 = vld [vmem:[%s218 + $0x14] sm:$0xf]
        %v287 = vld [vmem:[%s218 + $0x18] sm:$0xff]
        %v288 = vld [vmem:[%s218 + $0x20] sm:$0xf]
        %v289 = vld [vmem:[%s218 + $0x24] sm:$0xff]
        %v290 = vld [vmem:[%s218 + $0x2c] sm:$0xf]
        %v291 = vld [vmem:[%s253] sm:$0xff]
        %v292 = vld [vmem:[%s253 + $0x8] sm:$0xff]
        %v293 = vld [vmem:[%s253 + $0x10] sm:$0xff]
        %v294 = vld [vmem:[%s253 + $0x18] sm:$0xff]
        %v295 = vld [vmem:[%s253 + $0x20] sm:$0xff]
        %v296 = vld [vmem:[%s253 + $0x28] sm:$0xff]
        %v297 = vld [vmem:[%s253 + $0x30] sm:$0xff]
        %v298 = vld [vmem:[%s253 + $0x38] sm:$0xff]
        %v299 = vld [vmem:[%s253 + $0x40] sm:$0xff]
        %v300 = vld [vmem:[%s253 + $0x48] sm:$0xff]
        %v301 = vld [vmem:[%s253 + $0x50] sm:$0xff]
        %v302 = vld [vmem:[%s253 + $0x58] sm:$0xff]
        %v303 = vld [vmem:[%s253 + $0x60] sm:$0xff]
        %v304 = vld [vmem:[%s253 + $0x68] sm:$0xff]
        %v305 = vld [vmem:[%s253 + $0x70] sm:$0xff]
        %v306 = vld [vmem:[%s253 + $0x78] sm:$0xff]
        %v307 = vld [vmem:[%s253 + $0x80] sm:$0xff]
        %v308 = vld [vmem:[%s253 + $0x88] sm:$0xff]
        %v309 = vld [vmem:[%s253 + $0x90] sm:$0xff]
        %v310 = vld [vmem:[%s253 + $0x98] sm:$0xff]
        %v311 = vld [vmem:[%s253 + $0xa0] sm:$0xff]
        %v312 = vld [vmem:[%s253 + $0xa8] sm:$0xff]
        %v313 = vld [vmem:[%s253 + $0xb0] sm:$0xff]
        %v314 = vld [vmem:[%s253 + $0xb8] sm:$0xff]
        %v315 = vld [vmem:[%s253 + $0xc0] sm:$0xff]
        %v316 = vld [vmem:[%s253 + $0xc8] sm:$0xff]
        %v317 = vld [vmem:[%s253 + $0xd0] sm:$0xff]
        %v318 = vld [vmem:[%s253 + $0xd8] sm:$0xff]
        %v319 = vld [vmem:[%s253 + $0xe0] sm:$0xff]
        %v320 = vld [vmem:[%s253 + $0xe8] sm:$0xff]
        %v321 = vld [vmem:[%s253 + $0xf0] sm:$0xff]
        %v322 = vld [vmem:[%s253 + $0xf8] sm:$0xff]
        %v323 = vld [vmem:[%s253 + $0x100] sm:$0xff]
        %v324 = vld [vmem:[%s253 + $0x108] sm:$0xff]
        %v325 = vld [vmem:[%s253 + $0x110] sm:$0xff]
        %v326 = vld [vmem:[%s253 + $0x118] sm:$0xff]
        %v327 = vld [vmem:[%s253 + $0x120] sm:$0xff]
        %v328 = vld [vmem:[%s253 + $0x128] sm:$0xff]
        %v329 = vld [vmem:[%s253 + $0x130] sm:$0xff]
        %v330 = vld [vmem:[%s253 + $0x138] sm:$0xff]
        %v331 = vld [vmem:[%s253 + $0x140] sm:$0xff]
        %v332 = vld [vmem:[%s253 + $0x148] sm:$0xff]
        %v333 = vld [vmem:[%s253 + $0x150] sm:$0xff]
        %v334 = vld [vmem:[%s253 + $0x158] sm:$0xff]
        %v335 = vld [vmem:[%s253 + $0x160] sm:$0xff]
        %v336 = vld [vmem:[%s253 + $0x168] sm:$0xff]
        %v337 = vld [vmem:[%s253 + $0x170] sm:$0xff]
        %v338 = vld [vmem:[%s253 + $0x178] sm:$0xff]
        %v347 = vunpack.c.l.b16 %v283
        %v348 = vunpack.c.h.b16 %v283
        %v349 = vunpack.c.l.b16 %v284
        %v350 = vunpack.c.l.b16 %v285
        %v351 = vunpack.c.h.b16 %v285
        %v352 = vunpack.c.l.b16 %v286
        %v353 = vunpack.c.l.b16 %v287
        %v354 = vunpack.c.h.b16 %v287
        %v355 = vunpack.c.l.b16 %v288
        %v356 = vunpack.c.l.b16 %v289
        %v357 = vunpack.c.h.b16 %v289
        %v358 = vunpack.c.l.b16 %v290
        %v359 = vpack.c.b16 %v350, %v347
        %v360 = vpack.c.b16 %v351, %v348
        %v361 = vpack.c.b16 %v352, %v349
        %v362 = vpack.c.b16 %v356, %v353
        %v363 = vpack.c.b16 %v357, %v354
        %v364 = vpack.c.b16 %v358, %v355
        %v419 = vunpack.c.l.b16 %v291
        %v420 = vunpack.c.h.b16 %v291
        %v421 = vunpack.c.l.b16 %v292
        %v422 = vunpack.c.h.b16 %v292
        %v423 = vunpack.c.l.b16 %v293
        %v424 = vunpack.c.h.b16 %v293
        %v425 = vunpack.c.l.b16 %v294
        %v426 = vunpack.c.h.b16 %v294
        %v427 = vunpack.c.l.b16 %v295
        %v428 = vunpack.c.h.b16 %v295
        %v429 = vunpack.c.l.b16 %v296
        %v430 = vunpack.c.h.b16 %v296
        %v431 = vunpack.c.l.b16 %v297
        %v432 = vunpack.c.h.b16 %v297
        %v433 = vunpack.c.l.b16 %v298
        %v434 = vunpack.c.h.b16 %v298
        %v435 = vunpack.c.l.b16 %v299
        %v436 = vunpack.c.h.b16 %v299
        %v437 = vunpack.c.l.b16 %v300
        %v438 = vunpack.c.h.b16 %v300
        %v439 = vunpack.c.l.b16 %v301
        %v440 = vunpack.c.h.b16 %v301
        %v441 = vunpack.c.l.b16 %v302
        %v442 = vunpack.c.h.b16 %v302
        %v443 = vunpack.c.l.b16 %v303
        %v444 = vunpack.c.h.b16 %v303
        %v445 = vunpack.c.l.b16 %v304
        %v446 = vunpack.c.h.b16 %v304
        %v447 = vunpack.c.l.b16 %v305
        %v448 = vunpack.c.h.b16 %v305
        %v449 = vunpack.c.l.b16 %v306
        %v450 = vunpack.c.h.b16 %v306
        %v451 = vunpack.c.l.b16 %v307
        %v452 = vunpack.c.h.b16 %v307
        %v453 = vunpack.c.l.b16 %v308
        %v454 = vunpack.c.h.b16 %v308
        %v455 = vunpack.c.l.b16 %v309
        %v456 = vunpack.c.h.b16 %v309
        %v457 = vunpack.c.l.b16 %v310
        %v458 = vunpack.c.h.b16 %v310
        %v459 = vunpack.c.l.b16 %v311
        %v460 = vunpack.c.h.b16 %v311
        %v461 = vunpack.c.l.b16 %v312
        %v462 = vunpack.c.h.b16 %v312
        %v463 = vunpack.c.l.b16 %v313
        %v464 = vunpack.c.h.b16 %v313
        %v465 = vunpack.c.l.b16 %v314
        %v466 = vunpack.c.h.b16 %v314
        %v467 = vunpack.c.l.b16 %v315
        %v468 = vunpack.c.h.b16 %v315
        %v469 = vunpack.c.l.b16 %v316
        %v470 = vunpack.c.h.b16 %v316
        %v471 = vunpack.c.l.b16 %v317
        %v472 = vunpack.c.h.b16 %v317
        %v473 = vunpack.c.l.b16 %v318
        %v474 = vunpack.c.h.b16 %v318
        %v475 = vunpack.c.l.b16 %v319
        %v476 = vunpack.c.h.b16 %v319
        %v477 = vunpack.c.l.b16 %v320
        %v478 = vunpack.c.h.b16 %v320
        %v479 = vunpack.c.l.b16 %v321
        %v480 = vunpack.c.h.b16 %v321
        %v481 = vunpack.c.l.b16 %v322
        %v482 = vunpack.c.h.b16 %v322
        %v483 = vunpack.c.l.b16 %v323
        %v484 = vunpack.c.h.b16 %v323
        %v485 = vunpack.c.l.b16 %v324
        %v486 = vunpack.c.h.b16 %v324
        %v487 = vunpack.c.l.b16 %v325
        %v488 = vunpack.c.h.b16 %v325
        %v489 = vunpack.c.l.b16 %v326
        %v490 = vunpack.c.h.b16 %v326
        %v491 = vunpack.c.l.b16 %v327
        %v492 = vunpack.c.h.b16 %v327
        %v493 = vunpack.c.l.b16 %v328
        %v494 = vunpack.c.h.b16 %v328
        %v495 = vunpack.c.l.b16 %v329
        %v496 = vunpack.c.h.b16 %v329
        %v497 = vunpack.c.l.b16 %v330
        %v498 = vunpack.c.h.b16 %v330
        %v499 = vunpack.c.l.b16 %v331
        %v500 = vunpack.c.h.b16 %v331
        %v501 = vunpack.c.l.b16 %v332
        %v502 = vunpack.c.h.b16 %v332
        %v503 = vunpack.c.l.b16 %v333
        %v504 = vunpack.c.h.b16 %v333
        %v505 = vunpack.c.l.b16 %v334
        %v506 = vunpack.c.h.b16 %v334
        %v507 = vunpack.c.l.b16 %v335
        %v508 = vunpack.c.h.b16 %v335
        %v509 = vunpack.c.l.b16 %v336
        %v510 = vunpack.c.h.b16 %v336
        %v511 = vunpack.c.l.b16 %v337
        %v512 = vunpack.c.h.b16 %v337
        %v513 = vunpack.c.l.b16 %v338
        %v514 = vunpack.c.h.b16 %v338
        %v515 = vpack.c.b16 %v421, %v419
        %v516 = vpack.c.b16 %v422, %v420
        %v517 = vpack.c.b16 %v425, %v423
        %v518 = vpack.c.b16 %v426, %v424
        %v519 = vpack.c.b16 %v429, %v427
        %v520 = vpack.c.b16 %v430, %v428
        %v521 = vpack.c.b16 %v433, %v431
        %v522 = vpack.c.b16 %v434, %v432
        %v523 = vpack.c.b16 %v437, %v435
        %v524 = vpack.c.b16 %v438, %v436
        %v525 = vpack.c.b16 %v441, %v439
        %v526 = vpack.c.b16 %v442, %v440
        %v527 = vpack.c.b16 %v445, %v443
        %v528 = vpack.c.b16 %v446, %v444
        %v529 = vpack.c.b16 %v449, %v447
        %v530 = vpack.c.b16 %v450, %v448
        %v531 = vpack.c.b16 %v453, %v451
        %v532 = vpack.c.b16 %v454, %v452
        %v533 = vpack.c.b16 %v457, %v455
        %v534 = vpack.c.b16 %v458, %v456
        %v535 = vpack.c.b16 %v461, %v459
        %v536 = vpack.c.b16 %v462, %v460
        %v537 = vpack.c.b16 %v465, %v463
        %v538 = vpack.c.b16 %v466, %v464
        %v539 = vpack.c.b16 %v469, %v467
        %v540 = vpack.c.b16 %v470, %v468
        %v541 = vpack.c.b16 %v473, %v471
        %v542 = vpack.c.b16 %v474, %v472
        %v543 = vpack.c.b16 %v477, %v475
        %v544 = vpack.c.b16 %v478, %v476
        %v545 = vpack.c.b16 %v481, %v479
        %v546 = vpack.c.b16 %v482, %v480
        %v547 = vpack.c.b16 %v485, %v483
        %v548 = vpack.c.b16 %v486, %v484
        %v549 = vpack.c.b16 %v489, %v487
        %v550 = vpack.c.b16 %v490, %v488
        %v551 = vpack.c.b16 %v493, %v491
        %v552 = vpack.c.b16 %v494, %v492
        %v553 = vpack.c.b16 %v497, %v495
        %v554 = vpack.c.b16 %v498, %v496
        %v555 = vpack.c.b16 %v501, %v499
        %v556 = vpack.c.b16 %v502, %v500
        %v557 = vpack.c.b16 %v505, %v503
        %v558 = vpack.c.b16 %v506, %v504
        %v559 = vpack.c.b16 %v509, %v507
        %v560 = vpack.c.b16 %v510, %v508
        %v561 = vpack.c.b16 %v513, %v511
        %v562 = vpack.c.b16 %v514, %v512
        %611 = vmatprep.subr.bf16.mxu0 %v530
        %612 = vmatpush1.bf16.msra.mxu0 %v529
        %613 = vmatprep.subr.bf16.mxu0 %v528
        %614 = vmatpush1.bf16.msra.mxu0 %v527
        %615 = vmatprep.subr.bf16.mxu0 %v526
        %616 = vmatpush1.bf16.msra.mxu0 %v525
        %617 = vmatprep.subr.bf16.mxu0 %v524
        %618 = vmatpush1.bf16.msra.mxu0 %v523
        %619 = vmatprep.subr.bf16.mxu0 %v522
        %620 = vmatpush1.bf16.msra.mxu0 %v521
        %621 = vmatprep.subr.bf16.mxu0 %v520
        %622 = vmatpush1.bf16.msra.mxu0 %v519
        %623 = vmatprep.subr.bf16.mxu0 %v518
        %624 = vmatpush1.bf16.msra.mxu0 %v517
        %625 = vmatprep.subr.bf16.mxu0 %v516
        %626 = vmatpush1.bf16.msra.mxu0 %v515
        %627 = vmatprep.subr.bf16.mxu0 %v546
        %628 = vmatpush2.bf16.msra.mxu0 %v545
        %629 = vmatprep.subr.bf16.mxu0 %v544
        %630 = vmatpush2.bf16.msra.mxu0 %v543
        %631 = vmatprep.subr.bf16.mxu0 %v542
        %632 = vmatpush2.bf16.msra.mxu0 %v541
        %633 = vmatprep.subr.bf16.mxu0 %v540
        %634 = vmatpush2.bf16.msra.mxu0 %v539
        %635 = vmatprep.subr.bf16.mxu0 %v538
        %636 = vmatpush2.bf16.msra.mxu0 %v537
        %637 = vmatprep.subr.bf16.mxu0 %v536
        %638 = vmatpush2.bf16.msra.mxu0 %v535
        %639 = vmatprep.subr.bf16.mxu0 %v534
        %640 = vmatpush2.bf16.msra.mxu0 %v533
        %641 = vmatprep.subr.bf16.mxu0 %v532
        %642 = vmatpush2.bf16.msra.mxu0 %v531
        %643 = vmatprep.mubr.bf16.mxu0 %v360
        %644 = vmatmul.mubr.bf16.gmra.mxu0 %v359
        %v645 = vpop.f32.mrf.mxu0
        %v646 = vadd.f32 0.0, %v645
        %v647 = vpop.f32.mrf.mxu0
        %v648 = vadd.f32 0.0, %v647
        %v649 = vpop.f32.mrf.mxu0
        %v650 = vadd.f32 0.0, %v649
        %v651 = vpop.f32.mrf.mxu0
        %v652 = vadd.f32 0.0, %v651
        %653 = vmatprep.mubr.bf16.mxu0 %v363
        %654 = vmatmul.mubr.bf16.gmra.mxu0 %v362
        %v655 = vpop.f32.mrf.mxu0
        %v656 = vadd.f32 0.0, %v655
        %v657 = vpop.f32.mrf.mxu0
        %v658 = vadd.f32 0.0, %v657
        %v659 = vpop.f32.mrf.mxu0
        %v660 = vadd.f32 0.0, %v659
        %v661 = vpop.f32.mrf.mxu0
        %v662 = vadd.f32 0.0, %v661
        %663 = vdwg.mxu0
        %664 = vmatprep.subr.bf16.mxu0 %v562
        %665 = vmatpush1.bf16.msra.mxu0 %v561
        %666 = vmatprep.subr.bf16.mxu0 %v560
        %667 = vmatpush1.bf16.msra.mxu0 %v559
        %668 = vmatprep.subr.bf16.mxu0 %v558
        %669 = vmatpush1.bf16.msra.mxu0 %v557
        %670 = vmatprep.subr.bf16.mxu0 %v556
        %671 = vmatpush1.bf16.msra.mxu0 %v555
        %672 = vmatprep.subr.bf16.mxu0 %v554
        %673 = vmatpush1.bf16.msra.mxu0 %v553
        %674 = vmatprep.subr.bf16.mxu0 %v552
        %675 = vmatpush1.bf16.msra.mxu0 %v551
        %676 = vmatprep.subr.bf16.mxu0 %v550
        %677 = vmatpush1.bf16.msra.mxu0 %v549
        %678 = vmatprep.subr.bf16.mxu0 %v548
        %679 = vmatpush1.bf16.msra.mxu0 %v547
        %680 = vmatprep.subr.bf16.mxu0 0
        %681 = vmatpush2.bf16.msra.mxu0 0
        %682 = vmatprep.subr.bf16.mxu0 0
        %683 = vmatpush2.bf16.msra.mxu0 0
        %684 = vmatprep.subr.bf16.mxu0 0
        %685 = vmatpush2.bf16.msra.mxu0 0
        %686 = vmatprep.subr.bf16.mxu0 0
        %687 = vmatpush2.bf16.msra.mxu0 0
        %688 = vmatprep.subr.bf16.mxu0 0
        %689 = vmatpush2.bf16.msra.mxu0 0
        %690 = vmatprep.subr.bf16.mxu0 0
        %691 = vmatpush2.bf16.msra.mxu0 0
        %692 = vmatprep.subr.bf16.mxu0 0
        %693 = vmatpush2.bf16.msra.mxu0 0
        %694 = vmatprep.subr.bf16.mxu0 0
        %695 = vmatpush2.bf16.msra.mxu0 0
        %696 = vmatprep.mubr.bf16.mxu0 0
        %697 = vmatmul.mubr.bf16.gmra.mxu0 %v361
        %v698 = vpop.f32.mrf.mxu0
        %v699 = vadd.f32 %v646, %v698
        %v700 = vpop.f32.mrf.mxu0
        %v701 = vadd.f32 %v648, %v700
        %v702 = vpop.f32.mrf.mxu0
        %v703 = vadd.f32 %v650, %v702
        %v704 = vpop.f32.mrf.mxu0
        %v705 = vadd.f32 %v652, %v704
        %706 = vmatprep.mubr.bf16.mxu0 0
        %707 = vmatmul.mubr.bf16.gmra.mxu0 %v364
        %v708 = vpop.f32.mrf.mxu0
        %v709 = vadd.f32 %v656, %v708
        %v710 = vpop.f32.mrf.mxu0
        %v711 = vadd.f32 %v658, %v710
        %v712 = vpop.f32.mrf.mxu0
        %v713 = vadd.f32 %v660, %v712
        %v714 = vpop.f32.mrf.mxu0
        %v715 = vadd.f32 %v662, %v714
        %716 = vdwg.mxu0
        %v717 = vadd.f32 %v275, %v699
        %v718 = vadd.f32 %v276, %v701
        %v719 = vadd.f32 %v277, %v703
        %v720 = vadd.f32 %v278, %v705
        %v721 = vadd.f32 %v279, %v709
        %v722 = vadd.f32 %v280, %v711
        %v723 = vadd.f32 %v281, %v713
        %v724 = vadd.f32 %v282, %v715
        %725 = vst [vmem:[#allocation2] sm:$0xff] %v717
        %726 = vst [vmem:[#allocation2 + $0x8] sm:$0xff] %v718
        %727 = vst [vmem:[#allocation2 + $0x10] sm:$0xff] %v719
        %728 = vst [vmem:[#allocation2 + $0x18] sm:$0xff] %v720
        %729 = vst [vmem:[#allocation2 + $0x20] sm:$0xff] %v721
        %730 = vst [vmem:[#allocation2 + $0x28] sm:$0xff] %v722
        %731 = vst [vmem:[#allocation2 + $0x30] sm:$0xff] %v723
        %732 = vst [vmem:[#allocation2 + $0x38] sm:$0xff] %v724
        %p733 = scmp.eq.s32.totalorder %s19, 2
        // Predicated region
        $region63: #{discriminator_forward.11} parent=53 // pred_check
          %p734 = pneg %p733
        $region64: #{discriminator_forward.11} parent=53 // pred_check_branch
          %736 = sbr.rel (%p734) target = $region66
        $region65: #{discriminator_forward.11} parent=53 // pred_region
          %v737 = vld [vmem:[#allocation2] sm:$0xff]
          %v738 = vld [vmem:[#allocation2 + $0x8] sm:$0xff]
          %v739 = vld [vmem:[#allocation2 + $0x10] sm:$0xff]
          %v740 = vld [vmem:[#allocation2 + $0x18] sm:$0xff]
          %v741 = vld [vmem:[#allocation2 + $0x20] sm:$0xff]
          %v742 = vld [vmem:[#allocation2 + $0x28] sm:$0xff]
          %v743 = vld [vmem:[#allocation2 + $0x30] sm:$0xff]
          %v744 = vld [vmem:[#allocation2 + $0x38] sm:$0xff]
          %v745 = vld [vmem:[%s2] sm:$0x3]
          %v747 = vlaneseq
          %v748 = vshrl.u32 %v747, 7
          %v749 = vsub.s32 0, %v748
          %v750 = vrot.slane %v745, %v749
          %v751 = vlaneseq
          %v752 = vshrl.u32 %v751, 7
          %v753 = vsub.s32 1, %v752
          %v754 = vrot.slane %v745, %v753
          %v757 = vadd.f32 %v737, %v750
          %v758 = vadd.f32 %v738, %v754
          %v759 = vadd.f32 %v739, %v750
          %v760 = vadd.f32 %v740, %v754
          %v761 = vadd.f32 %v741, %v750
          %v762 = vadd.f32 %v742, %v754
          %v763 = vadd.f32 %v743, %v750
          %v764 = vadd.f32 %v744, %v754
          %vm765 = vcmp.ge.f32.partialorder %v757, 0.0
          %vm766 = vcmp.ge.f32.partialorder %v758, 0.0
          %vm767 = vcmp.ge.f32.partialorder %v759, 0.0
          %vm768 = vcmp.ge.f32.partialorder %v760, 0.0
          %vm769 = vcmp.ge.f32.partialorder %v761, 0.0
          %vm770 = vcmp.ge.f32.partialorder %v762, 0.0
          %vm771 = vcmp.ge.f32.partialorder %v763, 0.0
          %vm772 = vcmp.ge.f32.partialorder %v764, 0.0
          %v773 = vmul.f32 %v757, 0.2
          %v774 = vmul.f32 %v758, 0.2
          %v775 = vmul.f32 %v759, 0.2
          %v776 = vmul.f32 %v760, 0.2
          %v777 = vmul.f32 %v761, 0.2
          %v778 = vmul.f32 %v762, 0.2
          %v779 = vmul.f32 %v763, 0.2
          %v780 = vmul.f32 %v764, 0.2
          %v781 = vsel %vm765, %v757, %v773
          %v782 = vsel %vm766, %v758, %v774
          %v783 = vsel %vm767, %v759, %v775
          %v784 = vsel %vm768, %v760, %v776
          %v785 = vsel %vm769, %v761, %v777
          %v786 = vsel %vm770, %v762, %v778
          %v787 = vsel %vm771, %v763, %v779
          %v788 = vsel %vm772, %v764, %v780
          %v789 = vpack.c.bf16 %v783, %v781
          %v790 = vpack.c.bf16 %v784, %v782
          %v791 = vpack.c.bf16 %v787, %v785
          %v792 = vpack.c.bf16 %v788, %v786
          %v797 = vunpack.c.l.b16 %v789
          %v798 = vunpack.c.l.b16 %v790
          %v799 = vunpack.c.h.b16 %v789
          %v800 = vunpack.c.h.b16 %v790
          %v801 = vunpack.c.l.b16 %v791
          %v802 = vunpack.c.l.b16 %v792
          %v803 = vunpack.c.h.b16 %v791
          %v804 = vunpack.c.h.b16 %v792
          %v805 = vpack.c.b16 %v798, %v797
          %v806 = vpack.c.b16 %v800, %v799
          %v807 = vpack.c.b16 %v802, %v801
          %v808 = vpack.c.b16 %v804, %v803
          %813 = vst [vmem:[%s260] sm:$0xff] %v805
          %814 = vst [vmem:[%s260 + $0x8] sm:$0xff] %v806
          %815 = vst [vmem:[%s260 + $0x10] sm:$0xff] %v807
          %816 = vst [vmem:[%s260 + $0x18] sm:$0xff] %v808
        $region66: #{discriminator_forward.11} parent=53 // pred_fallthru
          _
        %s817 = smul.u32 4, %s18
        %p818 = scmp.lt.s32.totalorder %s817, 3
        %s819 = scalar_select %p818, %s817, 3
        %s820 = smul.addr %s819, 2
        %s821 = smul.addr %s820, 4
        %s822 = scalar_lea.vmem %s3, %s821
        // Predicated region
        $region67: #{discriminator_forward.11} parent=53 // pred_check
          %p823 = pneg %p119
        $region68: #{discriminator_forward.11} parent=53 // pred_check_branch
          %825 = sbr.rel (%p823) target = $region70
        $region69: #{discriminator_forward.11} parent=53 // pred_region
          %s826 = smul.u32 4, %s18
        $region70: #{discriminator_forward.11} parent=53 // pred_fallthru
          _
        // Predicated region
        $region71: #{discriminator_forward.11} parent=53 // pred_check
          %p827 = pneg %p119
        $region72: #{discriminator_forward.11} parent=53 // pred_check_branch
          %829 = sbr.rel (%p827) target = $region74
        $region73: #{discriminator_forward.11} parent=53 // pred_region
          %s830 = smul.u32 4, %s18
          %p831 = scmp.lt.s32.totalorder %s830, 3
          %s832 = scalar_select %p831, %s830, 3
          %s833 = smul.addr %s832, 2
          %s834 = smul.addr %s833, 4
          %s835 = scalar_lea.vmem %s3, %s834
        $region74: #{discriminator_forward.11} parent=53 // pred_fallthru
          _
      $region54: #{discriminator_forward.11} parent=5 // pred_fallthru
        _
      %p836 = scmp.le.s32.totalorder 2, %s9
      // Predicated region
      $region75: #{discriminator_forward.11} parent=5 // pred_check
        %p837 = pneg %p836
      $region76: #{discriminator_forward.11} parent=5 // pred_check_branch
        %839 = sbr.rel (%p837) target = $region78
      $region77: #{discriminator_forward.11} parent=5 // pred_region
        %s840 = ssub.s32 %s9, 2
      $region78: #{discriminator_forward.11} parent=5 // pred_fallthru
        _
    $region6: #{discriminator_forward.11} parent=1 // loop_footer
      %s13 = sadd.s32 1, %s9
    $region7: #{discriminator_forward.11} parent=1 // loop_footer_branch
      %8 = sbr.rel target = $region3
    $region8: #{discriminator_forward.11} parent=1 // loop_exit
      _

// kernel: discriminator_forward.12
$region0: #{discriminator_forward.12}
  #allocation0 [shape = 'u32[]', space=smem, size = 0x4, offset = 0x4, fixed_abs, tag = 'smem constant byte address 0x4 - core index']
  #allocation1 [shape = 'u32[144,128]{1,0:T(1,128)}', space=vmem, size = 0x12000, scoped, tag = 'internal scratch']
  #allocation2 [shape = 'f32[8,256]{1,0:T(8,128)}', space=vmem, size = 0x2000, scoped, tag = 'scratch operand']
  %s0 = inlined_call_operand.vmem [shape: bf16[8,2304], index: 0, kind: input, shape index: {}]
  %s1 = inlined_call_operand.vmem [shape: bf16[2304,256], index: 1, kind: input, shape index: {}]
  %s2 = inlined_call_operand.vmem [shape: f32[1,256], index: 2, kind: input, shape index: {}]
  %s3 = inlined_call_operand.vmem [shape: bf16[8,256], index: 3, kind: output, shape index: {}]
  %s4 = sld [smem:[#allocation0]]
  $region53: #{discriminator_forward.12} parent=0
    _
  %s6 = ssub.s32 1, %s4
  %s7 = scalar_select 0, %s6, %s4
  loop: start=0, step=1, limit=5
  $region2: #{discriminator_forward.12} parent=0 // loop_pre_header
    _
  $region3: #{discriminator_forward.12} parent=0 // loop_header
    %s9 = sphi 0, %s13
    %p10 = scmp.ge.s32.totalorder %s9, 5
    %s16 = sphi 0, %s28
    %s17 = sphi 0, %s24
    %s18 = sphi 0, %s16
    %s19 = sphi 0, %s17
    %s20 = sphi 0, %s18
    %s21 = sphi 0, %s19
    %s33 = sphi 0, %s35
    %s36 = sphi 0, %s33
    %s37 = sphi 0, %s36
    %s53 = sphi 0, %s37
    %s59 = sphi 0, %s61
    %s62 = sphi 0, %s59
    %s63 = sphi 0, %s62
    %s79 = sphi 0, %s63
    %s83 = sphi 0, %s83
    %s85 = sphi 0, %s83
    %s86 = sphi 0, %s85
    %s100 = sphi 0, %s86
    %s106 = sphi 0, %s108
    %s109 = sphi 0, %s106
    %s110 = sphi 0, %s109
    %s126 = sphi 0, %s110
  $region4: #{discriminator_forward.12} parent=0 // loop_header_branch
    %12 = sbr.rel (%p10) target = $region8
  $region5: #{discriminator_forward.12} parent=0 // loop_body
    %s14 = ssub.s32 %s9, 1
    %s15 = ssub.s32 %s9, 2
    %s22 = sadd.s32 1, %s17
    %p23 = scmp.ge.s32.totalorder %s22, 3
    %s24 = scalar_select %p23, 0, %s22
    %s25 = sadd.s32 1, %s16
    %s26 = scalar_select %p23, %s25, %s16
    %p27 = scmp.ge.s32.totalorder %s26, 1
    %s28 = scalar_select %p27, 0, %s26
    %s29 = ssub.s32 %s16, %s28
    %s30 = ssub.s32 %s17, %s24
    %s31 = sor.u32 %s29, %s30
    %p32 = scmp.eq.s32.totalorder %s31, 0
    %s34 = sadd.s32 %s33, 1
    %s35 = scalar_select %p32, %s33, %s34
    %p38 = pneg %p32
    %p39 = scmp.eq.s32.totalorder %s9, 2
    %p40 = por %p38, %p39
    %p41 = scmp.ne.s32.totalorder %s33, %s36
    %p42 = scmp.eq.s32.totalorder %s9, 0
    %p43 = por %p41, %p42
    %p44 = scmp.ne.s32.totalorder %s33, %s36
    %p45 = scmp.eq.s32.totalorder %s14, 2
    %p46 = por %p44, %p45
    %p47 = scmp.ne.s32.totalorder %s36, %s37
    %p48 = scmp.eq.s32.totalorder %s14, 0
    %p49 = por %p47, %p48
    %p50 = scmp.ne.s32.totalorder %s36, %s37
    %p51 = scmp.eq.s32.totalorder %s15, 2
    %p52 = por %p50, %p51
    %p54 = scmp.ne.s32.totalorder %s37, %s53
    %p55 = scmp.eq.s32.totalorder %s15, 0
    %p56 = por %p54, %p55
    %s57 = ssub.s32 %s17, %s24
    %p58 = scmp.eq.s32.totalorder %s57, 0
    %s60 = sadd.s32 %s59, 1
    %s61 = scalar_select %p58, %s59, %s60
    %p64 = pneg %p58
    %p65 = scmp.eq.s32.totalorder %s9, 2
    %p66 = por %p64, %p65
    %p67 = scmp.ne.s32.totalorder %s59, %s62
    %p68 = scmp.eq.s32.totalorder %s9, 0
    %p69 = por %p67, %p68
    %p70 = scmp.ne.s32.totalorder %s59, %s62
    %p71 = scmp.eq.s32.totalorder %s14, 2
    %p72 = por %p70, %p71
    %p73 = scmp.ne.s32.totalorder %s62, %s63
    %p74 = scmp.eq.s32.totalorder %s14, 0
    %p75 = por %p73, %p74
    %p76 = scmp.ne.s32.totalorder %s62, %s63
    %p77 = scmp.eq.s32.totalorder %s15, 2
    %p78 = por %p76, %p77
    %p80 = scmp.ne.s32.totalorder %s63, %s79
    %p81 = scmp.eq.s32.totalorder %s15, 0
    %p82 = por %p80, %p81
    %s84 = sadd.s32 %s83, 1
    %p87 = scmp.eq.s32.totalorder %s9, 2
    %p88 = scmp.ne.s32.totalorder %s83, %s85
    %p89 = scmp.eq.s32.totalorder %s9, 0
    %p90 = por %p88, %p89
    %p91 = scmp.ne.s32.totalorder %s83, %s85
    %p92 = scmp.eq.s32.totalorder %s14, 2
    %p93 = por %p91, %p92
    %p94 = scmp.ne.s32.totalorder %s85, %s86
    %p95 = scmp.eq.s32.totalorder %s14, 0
    %p96 = por %p94, %p95
    %p97 = scmp.ne.s32.totalorder %s85, %s86
    %p98 = scmp.eq.s32.totalorder %s15, 2
    %p99 = por %p97, %p98
    %p101 = scmp.ne.s32.totalorder %s86, %s100
    %p102 = scmp.eq.s32.totalorder %s15, 0
    %p103 = por %p101, %p102
    %s104 = ssub.s32 %s16, %s28
    %p105 = scmp.eq.s32.totalorder %s104, 0
    %s107 = sadd.s32 %s106, 1
    %s108 = scalar_select %p105, %s106, %s107
    %p111 = pneg %p105
    %p112 = scmp.eq.s32.totalorder %s9, 2
    %p113 = por %p111, %p112
    %p114 = scmp.ne.s32.totalorder %s106, %s109
    %p115 = scmp.eq.s32.totalorder %s9, 0
    %p116 = por %p114, %p115
    %p117 = scmp.ne.s32.totalorder %s106, %s109
    %p118 = scmp.eq.s32.totalorder %s14, 2
    %p119 = por %p117, %p118
    %p120 = scmp.ne.s32.totalorder %s109, %s110
    %p121 = scmp.eq.s32.totalorder %s14, 0
    %p122 = por %p120, %p121
    %p123 = scmp.ne.s32.totalorder %s109, %s110
    %p124 = scmp.eq.s32.totalorder %s15, 2
    %p125 = por %p123, %p124
    %p127 = scmp.ne.s32.totalorder %s110, %s126
    %p128 = scmp.eq.s32.totalorder %s15, 0
    %p129 = por %p127, %p128
    %p130 = scmp.le.s32.totalorder 1, %s9
    %p131 = scmp.lt.s32.totalorder %s9, 4
    %p132 = pnand %p130, %p131
    %p133 = pneg %p132
    // Predicated region
    $region9: #{discriminator_forward.12} parent=5 // pred_check
      _
    $region10: #{discriminator_forward.12} parent=5 // pred_check_branch
      %135 = sbr.rel (%p132) target = $region12
    $region11: #{discriminator_forward.12} parent=5 // pred_region
      %s136 = ssub.s32 %s9, 1
      // Predicated region
      $region13: #{discriminator_forward.12} parent=11 // pred_check
        %p137 = pneg %p96
      $region14: #{discriminator_forward.12} parent=11 // pred_check_branch
        %139 = sbr.rel (%p137) target = $region16
      $region15: #{discriminator_forward.12} parent=11 // pred_region
        _
      $region16: #{discriminator_forward.12} parent=11 // pred_fallthru
        _
    $region12: #{discriminator_forward.12} parent=5 // pred_fallthru
      _
    %p140 = scmp.lt.s32.totalorder %s9, 3
    // Predicated region
    $region17: #{discriminator_forward.12} parent=5 // pred_check
      %p141 = pneg %p140
    $region18: #{discriminator_forward.12} parent=5 // pred_check_branch
      %143 = sbr.rel (%p141) target = $region20
    $region19: #{discriminator_forward.12} parent=5 // pred_region
      // Predicated region
      $region21: #{discriminator_forward.12} parent=19 // pred_check
        %p144 = pneg %p43
      $region22: #{discriminator_forward.12} parent=19 // pred_check_branch
        %146 = sbr.rel (%p144) target = $region24
      $region23: #{discriminator_forward.12} parent=19 // pred_region
        %s147 = smul.u32 6, %s17
        %p148 = scmp.lt.s32.totalorder %s16, 0
        %s149 = scalar_select %p148, %s16, 0
        %p150 = scmp.lt.s32.totalorder %s147, 17
        %s151 = scalar_select %p150, %s147, 17
        %s152 = smul.addr %s149, 18
        %s153 = sadd.s32 %s151, %s152
        %s154 = smul.addr %s153, 4
        %s155 = scalar_lea.vmem %s0, %s154
        %s156 = smul.u32 6, %s17
      $region24: #{discriminator_forward.12} parent=19 // pred_fallthru
        _
      // Predicated region
      $region25: #{discriminator_forward.12} parent=19 // pred_check
        %p157 = pneg %p69
      $region26: #{discriminator_forward.12} parent=19 // pred_check_branch
        %159 = sbr.rel (%p157) target = $region28
      $region27: #{discriminator_forward.12} parent=19 // pred_region
        %s160 = smul.u32 96, %s17
        %p161 = scmp.lt.s32.totalorder %s160, 287
        %s162 = scalar_select %p161, %s160, 287
        %s163 = smul.addr %s162, 2
        %s164 = smul.addr %s163, 4
        %s165 = scalar_lea.vmem %s1, %s164
        %s166 = smul.u32 96, %s17
      $region28: #{discriminator_forward.12} parent=19 // pred_fallthru
        _
    $region20: #{discriminator_forward.12} parent=5 // pred_fallthru
      _
    %p167 = scmp.le.s32.totalorder 1, %s9
    %p168 = scmp.lt.s32.totalorder %s9, 4
    %p169 = pnand %p167, %p168
    %p170 = pneg %p169
    // Predicated region
    $region29: #{discriminator_forward.12} parent=5 // pred_check
      _
    $region30: #{discriminator_forward.12} parent=5 // pred_check_branch
      %172 = sbr.rel (%p169) target = $region32
    $region31: #{discriminator_forward.12} parent=5 // pred_region
      %s173 = ssub.s32 %s9, 1
      %s174 = smul.u32 6, %s19
      %p175 = scmp.lt.s32.totalorder %s18, 0
      %s176 = scalar_select %p175, %s18, 0
      %p177 = scmp.lt.s32.totalorder %s174, 17
      %s178 = scalar_select %p177, %s174, 17
      %s179 = smul.addr %s176, 18
      %s180 = sadd.s32 %s178, %s179
      %s181 = smul.addr %s180, 4
      %s182 = scalar_lea.vmem %s0, %s181
      %p183 = pneg %p49
      %p184 = pneg %p46
      %s185 = smul.u32 96, %s19
      %p186 = scmp.lt.s32.totalorder %s185, 287
      %s187 = scalar_select %p186, %s185, 287
      %s188 = smul.addr %s187, 2
      %s189 = smul.addr %s188, 4
      %s190 = scalar_lea.vmem %s1, %s189
      %p191 = pneg %p75
      %p192 = pneg %p72
      %p193 = pneg %p96
      %p194 = pneg %p93
      %p195 = pneg %p122
      %p196 = pneg %p119
      %p197 = scmp.lt.s32.totalorder %s18, 0
      %s198 = scalar_select %p197, %s18, 0
      %s199 = smul.addr %s198, 2
      %s200 = smul.addr %s199, 4
      %s201 = scalar_lea.vmem %s3, %s200
      %s202 = smul.u32 6, %s19
      %p203 = scmp.lt.s32.totalorder %s18, 0
      %s204 = scalar_select %p203, %s18, 0
      %p205 = scmp.lt.s32.totalorder %s202, 17
      %s206 = scalar_select %p205, %s202, 17
      %s207 = smul.addr %s204, 18
      %s208 = sadd.s32 %s206, %s207
      %s209 = smul.addr %s208, 4
      %s210 = scalar_lea.vmem %s0, %s209
      %s211 = smul.u32 6, %s19
      %s212 = smul.u32 96, %s19
      %p213 = scmp.lt.s32.totalorder %s212, 287
      %s214 = scalar_select %p213, %s212, 287
      %s215 = smul.addr %s214, 2
      %s216 = smul.addr %s215, 4
      %s217 = scalar_lea.vmem %s1, %s216
      %s218 = smul.u32 96, %s19
      %p219 = scmp.lt.s32.totalorder %s18, 0
      %s220 = scalar_select %p219, %s18, 0
      %s221 = smul.addr %s220, 2
      %s222 = smul.addr %s221, 4
      %s223 = scalar_lea.vmem %s3, %s222
      %p224 = scmp.eq.s32.totalorder %s19, 0
      // Predicated region
      $region33: #{discriminator_forward.12} parent=31 // pred_check
        %p225 = pneg %p224
      $region34: #{discriminator_forward.12} parent=31 // pred_check_branch
        %227 = sbr.rel (%p225) target = $region36
      $region35: #{discriminator_forward.12} parent=31 // pred_region
        %228 = vst [vmem:[#allocation2] sm:$0xff] 0.0
        %229 = vst [vmem:[#allocation2 + $0x8] sm:$0xff] 0.0
      $region36: #{discriminator_forward.12} parent=31 // pred_fallthru
        _
      %v230 = vld [vmem:[#allocation2] sm:$0xff]
      %v231 = vld [vmem:[#allocation2 + $0x8] sm:$0xff]
      %v232 = vld [vmem:[%s210] sm:$0xff]
      %v233 = vld [vmem:[%s210 + $0x8] sm:$0xff]
      %v234 = vld [vmem:[%s210 + $0x10] sm:$0xff]
      %v235 = vld [vmem:[%s217] sm:$0xff]
      %v236 = vld [vmem:[%s217 + $0x8] sm:$0xff]
      %v237 = vld [vmem:[%s217 + $0x10] sm:$0xff]
      %v238 = vld [vmem:[%s217 + $0x18] sm:$0xff]
      %v239 = vld [vmem:[%s217 + $0x20] sm:$0xff]
      %v240 = vld [vmem:[%s217 + $0x28] sm:$0xff]
      %v241 = vld [vmem:[%s217 + $0x30] sm:$0xff]
      %v242 = vld [vmem:[%s217 + $0x38] sm:$0xff]
      %v243 = vld [vmem:[%s217 + $0x40] sm:$0xff]
      %v244 = vld [vmem:[%s217 + $0x48] sm:$0xff]
      %v245 = vld [vmem:[%s217 + $0x50] sm:$0xff]
      %v246 = vld [vmem:[%s217 + $0x58] sm:$0xff]
      %v247 = vld [vmem:[%s217 + $0x60] sm:$0xff]
      %v248 = vld [vmem:[%s217 + $0x68] sm:$0xff]
      %v249 = vld [vmem:[%s217 + $0x70] sm:$0xff]
      %v250 = vld [vmem:[%s217 + $0x78] sm:$0xff]
      %v251 = vld [vmem:[%s217 + $0x80] sm:$0xff]
      %v252 = vld [vmem:[%s217 + $0x88] sm:$0xff]
      %v253 = vld [vmem:[%s217 + $0x90] sm:$0xff]
      %v254 = vld [vmem:[%s217 + $0x98] sm:$0xff]
      %v255 = vld [vmem:[%s217 + $0xa0] sm:$0xff]
      %v256 = vld [vmem:[%s217 + $0xa8] sm:$0xff]
      %v257 = vld [vmem:[%s217 + $0xb0] sm:$0xff]
      %v258 = vld [vmem:[%s217 + $0xb8] sm:$0xff]
      %v259 = vld [vmem:[%s217 + $0xc0] sm:$0xff]
      %v260 = vld [vmem:[%s217 + $0xc8] sm:$0xff]
      %v261 = vld [vmem:[%s217 + $0xd0] sm:$0xff]
      %v262 = vld [vmem:[%s217 + $0xd8] sm:$0xff]
      %v263 = vld [vmem:[%s217 + $0xe0] sm:$0xff]
      %v264 = vld [vmem:[%s217 + $0xe8] sm:$0xff]
      %v265 = vld [vmem:[%s217 + $0xf0] sm:$0xff]
      %v266 = vld [vmem:[%s217 + $0xf8] sm:$0xff]
      %v267 = vld [vmem:[%s217 + $0x100] sm:$0xff]
      %v268 = vld [vmem:[%s217 + $0x108] sm:$0xff]
      %v269 = vld [vmem:[%s217 + $0x110] sm:$0xff]
      %v270 = vld [vmem:[%s217 + $0x118] sm:$0xff]
      %v271 = vld [vmem:[%s217 + $0x120] sm:$0xff]
      %v272 = vld [vmem:[%s217 + $0x128] sm:$0xff]
      %v273 = vld [vmem:[%s217 + $0x130] sm:$0xff]
      %v274 = vld [vmem:[%s217 + $0x138] sm:$0xff]
      %v275 = vld [vmem:[%s217 + $0x140] sm:$0xff]
      %v276 = vld [vmem:[%s217 + $0x148] sm:$0xff]
      %v277 = vld [vmem:[%s217 + $0x150] sm:$0xff]
      %v278 = vld [vmem:[%s217 + $0x158] sm:$0xff]
      %v279 = vld [vmem:[%s217 + $0x160] sm:$0xff]
      %v280 = vld [vmem:[%s217 + $0x168] sm:$0xff]
      %v281 = vld [vmem:[%s217 + $0x170] sm:$0xff]
      %v282 = vld [vmem:[%s217 + $0x178] sm:$0xff]
      %v283 = vld [vmem:[%s217 + $0x180] sm:$0xff]
      %v284 = vld [vmem:[%s217 + $0x188] sm:$0xff]
      %v285 = vld [vmem:[%s217 + $0x190] sm:$0xff]
      %v286 = vld [vmem:[%s217 + $0x198] sm:$0xff]
      %v287 = vld [vmem:[%s217 + $0x1a0] sm:$0xff]
      %v288 = vld [vmem:[%s217 + $0x1a8] sm:$0xff]
      %v289 = vld [vmem:[%s217 + $0x1b0] sm:$0xff]
      %v290 = vld [vmem:[%s217 + $0x1b8] sm:$0xff]
      %v291 = vld [vmem:[%s217 + $0x1c0] sm:$0xff]
      %v292 = vld [vmem:[%s217 + $0x1c8] sm:$0xff]
      %v293 = vld [vmem:[%s217 + $0x1d0] sm:$0xff]
      %v294 = vld [vmem:[%s217 + $0x1d8] sm:$0xff]
      %v295 = vld [vmem:[%s217 + $0x1e0] sm:$0xff]
      %v296 = vld [vmem:[%s217 + $0x1e8] sm:$0xff]
      %v297 = vld [vmem:[%s217 + $0x1f0] sm:$0xff]
      %v298 = vld [vmem:[%s217 + $0x1f8] sm:$0xff]
      %v299 = vld [vmem:[%s217 + $0x200] sm:$0xff]
      %v300 = vld [vmem:[%s217 + $0x208] sm:$0xff]
      %v301 = vld [vmem:[%s217 + $0x210] sm:$0xff]
      %v302 = vld [vmem:[%s217 + $0x218] sm:$0xff]
      %v303 = vld [vmem:[%s217 + $0x220] sm:$0xff]
      %v304 = vld [vmem:[%s217 + $0x228] sm:$0xff]
      %v305 = vld [vmem:[%s217 + $0x230] sm:$0xff]
      %v306 = vld [vmem:[%s217 + $0x238] sm:$0xff]
      %v307 = vld [vmem:[%s217 + $0x240] sm:$0xff]
      %v308 = vld [vmem:[%s217 + $0x248] sm:$0xff]
      %v309 = vld [vmem:[%s217 + $0x250] sm:$0xff]
      %v310 = vld [vmem:[%s217 + $0x258] sm:$0xff]
      %v311 = vld [vmem:[%s217 + $0x260] sm:$0xff]
      %v312 = vld [vmem:[%s217 + $0x268] sm:$0xff]
      %v313 = vld [vmem:[%s217 + $0x270] sm:$0xff]
      %v314 = vld [vmem:[%s217 + $0x278] sm:$0xff]
      %v315 = vld [vmem:[%s217 + $0x280] sm:$0xff]
      %v316 = vld [vmem:[%s217 + $0x288] sm:$0xff]
      %v317 = vld [vmem:[%s217 + $0x290] sm:$0xff]
      %v318 = vld [vmem:[%s217 + $0x298] sm:$0xff]
      %v319 = vld [vmem:[%s217 + $0x2a0] sm:$0xff]
      %v320 = vld [vmem:[%s217 + $0x2a8] sm:$0xff]
      %v321 = vld [vmem:[%s217 + $0x2b0] sm:$0xff]
      %v322 = vld [vmem:[%s217 + $0x2b8] sm:$0xff]
      %v323 = vld [vmem:[%s217 + $0x2c0] sm:$0xff]
      %v324 = vld [vmem:[%s217 + $0x2c8] sm:$0xff]
      %v325 = vld [vmem:[%s217 + $0x2d0] sm:$0xff]
      %v326 = vld [vmem:[%s217 + $0x2d8] sm:$0xff]
      %v327 = vld [vmem:[%s217 + $0x2e0] sm:$0xff]
      %v328 = vld [vmem:[%s217 + $0x2e8] sm:$0xff]
      %v329 = vld [vmem:[%s217 + $0x2f0] sm:$0xff]
      %v330 = vld [vmem:[%s217 + $0x2f8] sm:$0xff]
      %v334 = vunpack.c.l.b16 %v232
      %v335 = vunpack.c.h.b16 %v232
      %v336 = vunpack.c.l.b16 %v233
      %v337 = vunpack.c.h.b16 %v233
      %v338 = vunpack.c.l.b16 %v234
      %v339 = vunpack.c.h.b16 %v234
      %v340 = vpack.c.b16 %v334, %v334
      %v341 = vpack.c.b16 %v335, %v335
      %v342 = vpack.c.b16 %v336, %v336
      %v343 = vpack.c.b16 %v337, %v337
      %v344 = vpack.c.b16 %v338, %v338
      %v345 = vpack.c.b16 %v339, %v339
      %v448 = vunpack.c.l.b16 %v235
      %v449 = vunpack.c.h.b16 %v235
      %v450 = vunpack.c.l.b16 %v236
      %v451 = vunpack.c.h.b16 %v236
      %v452 = vunpack.c.l.b16 %v237
      %v453 = vunpack.c.h.b16 %v237
      %v454 = vunpack.c.l.b16 %v238
      %v455 = vunpack.c.h.b16 %v238
      %v456 = vunpack.c.l.b16 %v239
      %v457 = vunpack.c.h.b16 %v239
      %v458 = vunpack.c.l.b16 %v240
      %v459 = vunpack.c.h.b16 %v240
      %v460 = vunpack.c.l.b16 %v241
      %v461 = vunpack.c.h.b16 %v241
      %v462 = vunpack.c.l.b16 %v242
      %v463 = vunpack.c.h.b16 %v242
      %v464 = vunpack.c.l.b16 %v243
      %v465 = vunpack.c.h.b16 %v243
      %v466 = vunpack.c.l.b16 %v244
      %v467 = vunpack.c.h.b16 %v244
      %v468 = vunpack.c.l.b16 %v245
      %v469 = vunpack.c.h.b16 %v245
      %v470 = vunpack.c.l.b16 %v246
      %v471 = vunpack.c.h.b16 %v246
      %v472 = vunpack.c.l.b16 %v247
      %v473 = vunpack.c.h.b16 %v247
      %v474 = vunpack.c.l.b16 %v248
      %v475 = vunpack.c.h.b16 %v248
      %v476 = vunpack.c.l.b16 %v249
      %v477 = vunpack.c.h.b16 %v249
      %v478 = vunpack.c.l.b16 %v250
      %v479 = vunpack.c.h.b16 %v250
      %v480 = vunpack.c.l.b16 %v251
      %v481 = vunpack.c.h.b16 %v251
      %v482 = vunpack.c.l.b16 %v252
      %v483 = vunpack.c.h.b16 %v252
      %v484 = vunpack.c.l.b16 %v253
      %v485 = vunpack.c.h.b16 %v253
      %v486 = vunpack.c.l.b16 %v254
      %v487 = vunpack.c.h.b16 %v254
      %v488 = vunpack.c.l.b16 %v255
      %v489 = vunpack.c.h.b16 %v255
      %v490 = vunpack.c.l.b16 %v256
      %v491 = vunpack.c.h.b16 %v256
      %v492 = vunpack.c.l.b16 %v257
      %v493 = vunpack.c.h.b16 %v257
      %v494 = vunpack.c.l.b16 %v258
      %v495 = vunpack.c.h.b16 %v258
      %v496 = vunpack.c.l.b16 %v259
      %v497 = vunpack.c.h.b16 %v259
      %v498 = vunpack.c.l.b16 %v260
      %v499 = vunpack.c.h.b16 %v260
      %v500 = vunpack.c.l.b16 %v261
      %v501 = vunpack.c.h.b16 %v261
      %v502 = vunpack.c.l.b16 %v262
      %v503 = vunpack.c.h.b16 %v262
      %v504 = vunpack.c.l.b16 %v263
      %v505 = vunpack.c.h.b16 %v263
      %v506 = vunpack.c.l.b16 %v264
      %v507 = vunpack.c.h.b16 %v264
      %v508 = vunpack.c.l.b16 %v265
      %v509 = vunpack.c.h.b16 %v265
      %v510 = vunpack.c.l.b16 %v266
      %v511 = vunpack.c.h.b16 %v266
      %v512 = vunpack.c.l.b16 %v267
      %v513 = vunpack.c.h.b16 %v267
      %v514 = vunpack.c.l.b16 %v268
      %v515 = vunpack.c.h.b16 %v268
      %v516 = vunpack.c.l.b16 %v269
      %v517 = vunpack.c.h.b16 %v269
      %v518 = vunpack.c.l.b16 %v270
      %v519 = vunpack.c.h.b16 %v270
      %v520 = vunpack.c.l.b16 %v271
      %v521 = vunpack.c.h.b16 %v271
      %v522 = vunpack.c.l.b16 %v272
      %v523 = vunpack.c.h.b16 %v272
      %v524 = vunpack.c.l.b16 %v273
      %v525 = vunpack.c.h.b16 %v273
      %v526 = vunpack.c.l.b16 %v274
      %v527 = vunpack.c.h.b16 %v274
      %v528 = vunpack.c.l.b16 %v275
      %v529 = vunpack.c.h.b16 %v275
      %v530 = vunpack.c.l.b16 %v276
      %v531 = vunpack.c.h.b16 %v276
      %v532 = vunpack.c.l.b16 %v277
      %v533 = vunpack.c.h.b16 %v277
      %v534 = vunpack.c.l.b16 %v278
      %v535 = vunpack.c.h.b16 %v278
      %v536 = vunpack.c.l.b16 %v279
      %v537 = vunpack.c.h.b16 %v279
      %v538 = vunpack.c.l.b16 %v280
      %v539 = vunpack.c.h.b16 %v280
      %v540 = vunpack.c.l.b16 %v281
      %v541 = vunpack.c.h.b16 %v281
      %v542 = vunpack.c.l.b16 %v282
      %v543 = vunpack.c.h.b16 %v282
      %v544 = vunpack.c.l.b16 %v283
      %v545 = vunpack.c.h.b16 %v283
      %v546 = vunpack.c.l.b16 %v284
      %v547 = vunpack.c.h.b16 %v284
      %v548 = vunpack.c.l.b16 %v285
      %v549 = vunpack.c.h.b16 %v285
      %v550 = vunpack.c.l.b16 %v286
      %v551 = vunpack.c.h.b16 %v286
      %v552 = vunpack.c.l.b16 %v287
      %v553 = vunpack.c.h.b16 %v287
      %v554 = vunpack.c.l.b16 %v288
      %v555 = vunpack.c.h.b16 %v288
      %v556 = vunpack.c.l.b16 %v289
      %v557 = vunpack.c.h.b16 %v289
      %v558 = vunpack.c.l.b16 %v290
      %v559 = vunpack.c.h.b16 %v290
      %v560 = vunpack.c.l.b16 %v291
      %v561 = vunpack.c.h.b16 %v291
      %v562 = vunpack.c.l.b16 %v292
      %v563 = vunpack.c.h.b16 %v292
      %v564 = vunpack.c.l.b16 %v293
      %v565 = vunpack.c.h.b16 %v293
      %v566 = vunpack.c.l.b16 %v294
      %v567 = vunpack.c.h.b16 %v294
      %v568 = vunpack.c.l.b16 %v295
      %v569 = vunpack.c.h.b16 %v295
      %v570 = vunpack.c.l.b16 %v296
      %v571 = vunpack.c.h.b16 %v296
      %v572 = vunpack.c.l.b16 %v297
      %v573 = vunpack.c.h.b16 %v297
      %v574 = vunpack.c.l.b16 %v298
      %v575 = vunpack.c.h.b16 %v298
      %v576 = vunpack.c.l.b16 %v299
      %v577 = vunpack.c.h.b16 %v299
      %v578 = vunpack.c.l.b16 %v300
      %v579 = vunpack.c.h.b16 %v300
      %v580 = vunpack.c.l.b16 %v301
      %v581 = vunpack.c.h.b16 %v301
      %v582 = vunpack.c.l.b16 %v302
      %v583 = vunpack.c.h.b16 %v302
      %v584 = vunpack.c.l.b16 %v303
      %v585 = vunpack.c.h.b16 %v303
      %v586 = vunpack.c.l.b16 %v304
      %v587 = vunpack.c.h.b16 %v304
      %v588 = vunpack.c.l.b16 %v305
      %v589 = vunpack.c.h.b16 %v305
      %v590 = vunpack.c.l.b16 %v306
      %v591 = vunpack.c.h.b16 %v306
      %v592 = vunpack.c.l.b16 %v307
      %v593 = vunpack.c.h.b16 %v307
      %v594 = vunpack.c.l.b16 %v308
      %v595 = vunpack.c.h.b16 %v308
      %v596 = vunpack.c.l.b16 %v309
      %v597 = vunpack.c.h.b16 %v309
      %v598 = vunpack.c.l.b16 %v310
      %v599 = vunpack.c.h.b16 %v310
      %v600 = vunpack.c.l.b16 %v311
      %v601 = vunpack.c.h.b16 %v311
      %v602 = vunpack.c.l.b16 %v312
      %v603 = vunpack.c.h.b16 %v312
      %v604 = vunpack.c.l.b16 %v313
      %v605 = vunpack.c.h.b16 %v313
      %v606 = vunpack.c.l.b16 %v314
      %v607 = vunpack.c.h.b16 %v314
      %v608 = vunpack.c.l.b16 %v315
      %v609 = vunpack.c.h.b16 %v315
      %v610 = vunpack.c.l.b16 %v316
      %v611 = vunpack.c.h.b16 %v316
      %v612 = vunpack.c.l.b16 %v317
      %v613 = vunpack.c.h.b16 %v317
      %v614 = vunpack.c.l.b16 %v318
      %v615 = vunpack.c.h.b16 %v318
      %v616 = vunpack.c.l.b16 %v319
      %v617 = vunpack.c.h.b16 %v319
      %v618 = vunpack.c.l.b16 %v320
      %v619 = vunpack.c.h.b16 %v320
      %v620 = vunpack.c.l.b16 %v321
      %v621 = vunpack.c.h.b16 %v321
      %v622 = vunpack.c.l.b16 %v322
      %v623 = vunpack.c.h.b16 %v322
      %v624 = vunpack.c.l.b16 %v323
      %v625 = vunpack.c.h.b16 %v323
      %v626 = vunpack.c.l.b16 %v324
      %v627 = vunpack.c.h.b16 %v324
      %v628 = vunpack.c.l.b16 %v325
      %v629 = vunpack.c.h.b16 %v325
      %v630 = vunpack.c.l.b16 %v326
      %v631 = vunpack.c.h.b16 %v326
      %v632 = vunpack.c.l.b16 %v327
      %v633 = vunpack.c.h.b16 %v327
      %v634 = vunpack.c.l.b16 %v328
      %v635 = vunpack.c.h.b16 %v328
      %v636 = vunpack.c.l.b16 %v329
      %v637 = vunpack.c.h.b16 %v329
      %v638 = vunpack.c.l.b16 %v330
      %v639 = vunpack.c.h.b16 %v330
      %v640 = vpack.c.b16 %v450, %v448
      %v641 = vpack.c.b16 %v451, %v449
      %v642 = vpack.c.b16 %v454, %v452
      %v643 = vpack.c.b16 %v455, %v453
      %v644 = vpack.c.b16 %v458, %v456
      %v645 = vpack.c.b16 %v459, %v457
      %v646 = vpack.c.b16 %v462, %v460
      %v647 = vpack.c.b16 %v463, %v461
      %v648 = vpack.c.b16 %v466, %v464
      %v649 = vpack.c.b16 %v467, %v465
      %v650 = vpack.c.b16 %v470, %v468
      %v651 = vpack.c.b16 %v471, %v469
      %v652 = vpack.c.b16 %v474, %v472
      %v653 = vpack.c.b16 %v475, %v473
      %v654 = vpack.c.b16 %v478, %v476
      %v655 = vpack.c.b16 %v479, %v477
      %v656 = vpack.c.b16 %v482, %v480
      %v657 = vpack.c.b16 %v483, %v481
      %v658 = vpack.c.b16 %v486, %v484
      %v659 = vpack.c.b16 %v487, %v485
      %v660 = vpack.c.b16 %v490, %v488
      %v661 = vpack.c.b16 %v491, %v489
      %v662 = vpack.c.b16 %v494, %v492
      %v663 = vpack.c.b16 %v495, %v493
      %v664 = vpack.c.b16 %v498, %v496
      %v665 = vpack.c.b16 %v499, %v497
      %v666 = vpack.c.b16 %v502, %v500
      %v667 = vpack.c.b16 %v503, %v501
      %v668 = vpack.c.b16 %v506, %v504
      %v669 = vpack.c.b16 %v507, %v505
      %v670 = vpack.c.b16 %v510, %v508
      %v671 = vpack.c.b16 %v511, %v509
      %v672 = vpack.c.b16 %v514, %v512
      %v673 = vpack.c.b16 %v515, %v513
      %v674 = vpack.c.b16 %v518, %v516
      %v675 = vpack.c.b16 %v519, %v517
      %v676 = vpack.c.b16 %v522, %v520
      %v677 = vpack.c.b16 %v523, %v521
      %v678 = vpack.c.b16 %v526, %v524
      %v679 = vpack.c.b16 %v527, %v525
      %v680 = vpack.c.b16 %v530, %v528
      %v681 = vpack.c.b16 %v531, %v529
      %v682 = vpack.c.b16 %v534, %v532
      %v683 = vpack.c.b16 %v535, %v533
      %v684 = vpack.c.b16 %v538, %v536
      %v685 = vpack.c.b16 %v539, %v537
      %v686 = vpack.c.b16 %v542, %v540
      %v687 = vpack.c.b16 %v543, %v541
      %v688 = vpack.c.b16 %v546, %v544
      %v689 = vpack.c.b16 %v547, %v545
      %v690 = vpack.c.b16 %v550, %v548
      %v691 = vpack.c.b16 %v551, %v549
      %v692 = vpack.c.b16 %v554, %v552
      %v693 = vpack.c.b16 %v555, %v553
      %v694 = vpack.c.b16 %v558, %v556
      %v695 = vpack.c.b16 %v559, %v557
      %v696 = vpack.c.b16 %v562, %v560
      %v697 = vpack.c.b16 %v563, %v561
      %v698 = vpack.c.b16 %v566, %v564
      %v699 = vpack.c.b16 %v567, %v565
      %v700 = vpack.c.b16 %v570, %v568
      %v701 = vpack.c.b16 %v571, %v569
      %v702 = vpack.c.b16 %v574, %v572
      %v703 = vpack.c.b16 %v575, %v573
      %v704 = vpack.c.b16 %v578, %v576
      %v705 = vpack.c.b16 %v579, %v577
      %v706 = vpack.c.b16 %v582, %v580
      %v707 = vpack.c.b16 %v583, %v581
      %v708 = vpack.c.b16 %v586, %v584
      %v709 = vpack.c.b16 %v587, %v585
      %v710 = vpack.c.b16 %v590, %v588
      %v711 = vpack.c.b16 %v591, %v589
      %v712 = vpack.c.b16 %v594, %v592
      %v713 = vpack.c.b16 %v595, %v593
      %v714 = vpack.c.b16 %v598, %v596
      %v715 = vpack.c.b16 %v599, %v597
      %v716 = vpack.c.b16 %v602, %v600
      %v717 = vpack.c.b16 %v603, %v601
      %v718 = vpack.c.b16 %v606, %v604
      %v719 = vpack.c.b16 %v607, %v605
      %v720 = vpack.c.b16 %v610, %v608
      %v721 = vpack.c.b16 %v611, %v609
      %v722 = vpack.c.b16 %v614, %v612
      %v723 = vpack.c.b16 %v615, %v613
      %v724 = vpack.c.b16 %v618, %v616
      %v725 = vpack.c.b16 %v619, %v617
      %v726 = vpack.c.b16 %v622, %v620
      %v727 = vpack.c.b16 %v623, %v621
      %v728 = vpack.c.b16 %v626, %v624
      %v729 = vpack.c.b16 %v627, %v625
      %v730 = vpack.c.b16 %v630, %v628
      %v731 = vpack.c.b16 %v631, %v629
      %v732 = vpack.c.b16 %v634, %v632
      %v733 = vpack.c.b16 %v635, %v633
      %v734 = vpack.c.b16 %v638, %v636
      %v735 = vpack.c.b16 %v639, %v637
      %832 = vmatprep.subr.bf16.mxu0 %v655
      %833 = vmatpush1.bf16.msra.mxu0 %v654
      %834 = vmatprep.subr.bf16.mxu0 %v653
      %835 = vmatpush1.bf16.msra.mxu0 %v652
      %836 = vmatprep.subr.bf16.mxu0 %v651
      %837 = vmatpush1.bf16.msra.mxu0 %v650
      %838 = vmatprep.subr.bf16.mxu0 %v649
      %839 = vmatpush1.bf16.msra.mxu0 %v648
      %840 = vmatprep.subr.bf16.mxu0 %v647
      %841 = vmatpush1.bf16.msra.mxu0 %v646
      %842 = vmatprep.subr.bf16.mxu0 %v645
      %843 = vmatpush1.bf16.msra.mxu0 %v644
      %844 = vmatprep.subr.bf16.mxu0 %v643
      %845 = vmatpush1.bf16.msra.mxu0 %v642
      %846 = vmatprep.subr.bf16.mxu0 %v641
      %847 = vmatpush1.bf16.msra.mxu0 %v640
      %848 = vmatprep.subr.bf16.mxu0 %v671
      %849 = vmatpush2.bf16.msra.mxu0 %v670
      %850 = vmatprep.subr.bf16.mxu0 %v669
      %851 = vmatpush2.bf16.msra.mxu0 %v668
      %852 = vmatprep.subr.bf16.mxu0 %v667
      %853 = vmatpush2.bf16.msra.mxu0 %v666
      %854 = vmatprep.subr.bf16.mxu0 %v665
      %855 = vmatpush2.bf16.msra.mxu0 %v664
      %856 = vmatprep.subr.bf16.mxu0 %v663
      %857 = vmatpush2.bf16.msra.mxu0 %v662
      %858 = vmatprep.subr.bf16.mxu0 %v661
      %859 = vmatpush2.bf16.msra.mxu0 %v660
      %860 = vmatprep.subr.bf16.mxu0 %v659
      %861 = vmatpush2.bf16.msra.mxu0 %v658
      %862 = vmatprep.subr.bf16.mxu0 %v657
      %863 = vmatpush2.bf16.msra.mxu0 %v656
      %864 = vmatprep.mubr.bf16.mxu0 %v341
      %865 = vmatmul.mubr.bf16.gmra.mxu0 %v340
      %v866 = vpop.f32.mrf.mxu0
      %v867 = vadd.f32 0.0, %v866
      %v868 = vpop.f32.mrf.mxu0
      %v869 = vadd.f32 0.0, %v868
      %v870 = vpop.f32.mrf.mxu0
      %v871 = vpop.f32.mrf.mxu0
      %872 = vdwg.mxu0
      %873 = vmatprep.subr.bf16.mxu0 %v687
      %874 = vmatpush1.bf16.msra.mxu0 %v686
      %875 = vmatprep.subr.bf16.mxu0 %v685
      %876 = vmatpush1.bf16.msra.mxu0 %v684
      %877 = vmatprep.subr.bf16.mxu0 %v683
      %878 = vmatpush1.bf16.msra.mxu0 %v682
      %879 = vmatprep.subr.bf16.mxu0 %v681
      %880 = vmatpush1.bf16.msra.mxu0 %v680
      %881 = vmatprep.subr.bf16.mxu0 %v679
      %882 = vmatpush1.bf16.msra.mxu0 %v678
      %883 = vmatprep.subr.bf16.mxu0 %v677
      %884 = vmatpush1.bf16.msra.mxu0 %v676
      %885 = vmatprep.subr.bf16.mxu0 %v675
      %886 = vmatpush1.bf16.msra.mxu0 %v674
      %887 = vmatprep.subr.bf16.mxu0 %v673
      %888 = vmatpush1.bf16.msra.mxu0 %v672
      %889 = vmatprep.subr.bf16.mxu0 %v703
      %890 = vmatpush2.bf16.msra.mxu0 %v702
      %891 = vmatprep.subr.bf16.mxu0 %v701
      %892 = vmatpush2.bf16.msra.mxu0 %v700
      %893 = vmatprep.subr.bf16.mxu0 %v699
      %894 = vmatpush2.bf16.msra.mxu0 %v698
      %895 = vmatprep.subr.bf16.mxu0 %v697
      %896 = vmatpush2.bf16.msra.mxu0 %v696
      %897 = vmatprep.subr.bf16.mxu0 %v695
      %898 = vmatpush2.bf16.msra.mxu0 %v694
      %899 = vmatprep.subr.bf16.mxu0 %v693
      %900 = vmatpush2.bf16.msra.mxu0 %v692
      %901 = vmatprep.subr.bf16.mxu0 %v691
      %902 = vmatpush2.bf16.msra.mxu0 %v690
      %903 = vmatprep.subr.bf16.mxu0 %v689
      %904 = vmatpush2.bf16.msra.mxu0 %v688
      %905 = vmatprep.mubr.bf16.mxu0 %v343
      %906 = vmatmul.mubr.bf16.gmra.mxu0 %v342
      %v907 = vpop.f32.mrf.mxu0
      %v908 = vadd.f32 %v867, %v907
      %v909 = vpop.f32.mrf.mxu0
      %v910 = vadd.f32 %v869, %v909
      %v911 = vpop.f32.mrf.mxu0
      %v912 = vpop.f32.mrf.mxu0
      %913 = vdwg.mxu0
      %914 = vmatprep.subr.bf16.mxu0 %v719
      %915 = vmatpush1.bf16.msra.mxu0 %v718
      %916 = vmatprep.subr.bf16.mxu0 %v717
      %917 = vmatpush1.bf16.msra.mxu0 %v716
      %918 = vmatprep.subr.bf16.mxu0 %v715
      %919 = vmatpush1.bf16.msra.mxu0 %v714
      %920 = vmatprep.subr.bf16.mxu0 %v713
      %921 = vmatpush1.bf16.msra.mxu0 %v712
      %922 = vmatprep.subr.bf16.mxu0 %v711
      %923 = vmatpush1.bf16.msra.mxu0 %v710
      %924 = vmatprep.subr.bf16.mxu0 %v709
      %925 = vmatpush1.bf16.msra.mxu0 %v708
      %926 = vmatprep.subr.bf16.mxu0 %v707
      %927 = vmatpush1.bf16.msra.mxu0 %v706
      %928 = vmatprep.subr.bf16.mxu0 %v705
      %929 = vmatpush1.bf16.msra.mxu0 %v704
      %930 = vmatprep.subr.bf16.mxu0 %v735
      %931 = vmatpush2.bf16.msra.mxu0 %v734
      %932 = vmatprep.subr.bf16.mxu0 %v733
      %933 = vmatpush2.bf16.msra.mxu0 %v732
      %934 = vmatprep.subr.bf16.mxu0 %v731
      %935 = vmatpush2.bf16.msra.mxu0 %v730
      %936 = vmatprep.subr.bf16.mxu0 %v729
      %937 = vmatpush2.bf16.msra.mxu0 %v728
      %938 = vmatprep.subr.bf16.mxu0 %v727
      %939 = vmatpush2.bf16.msra.mxu0 %v726
      %940 = vmatprep.subr.bf16.mxu0 %v725
      %941 = vmatpush2.bf16.msra.mxu0 %v724
      %942 = vmatprep.subr.bf16.mxu0 %v723
      %943 = vmatpush2.bf16.msra.mxu0 %v722
      %944 = vmatprep.subr.bf16.mxu0 %v721
      %945 = vmatpush2.bf16.msra.mxu0 %v720
      %946 = vmatprep.mubr.bf16.mxu0 %v345
      %947 = vmatmul.mubr.bf16.gmra.mxu0 %v344
      %v948 = vpop.f32.mrf.mxu0
      %v949 = vadd.f32 %v908, %v948
      %v950 = vpop.f32.mrf.mxu0
      %v951 = vadd.f32 %v910, %v950
      %v952 = vpop.f32.mrf.mxu0
      %v953 = vpop.f32.mrf.mxu0
      %954 = vdwg.mxu0
      %v955 = vadd.f32 %v230, %v949
      %v956 = vadd.f32 %v231, %v951
      %957 = vst [vmem:[#allocation2] sm:$0xff] %v955
      %958 = vst [vmem:[#allocation2 + $0x8] sm:$0xff] %v956
      %p959 = scmp.eq.s32.totalorder %s19, 2
      // Predicated region
      $region37: #{discriminator_forward.12} parent=31 // pred_check
        %p960 = pneg %p959
      $region38: #{discriminator_forward.12} parent=31 // pred_check_branch
        %962 = sbr.rel (%p960) target = $region40
      $region39: #{discriminator_forward.12} parent=31 // pred_region
        %v963 = vld [vmem:[#allocation2] sm:$0xff]
        %v964 = vld [vmem:[#allocation2 + $0x8] sm:$0xff]
        %v965 = vld [vmem:[%s2] sm:$0x3]
        %v967 = vlaneseq
        %v968 = vshrl.u32 %v967, 7
        %v969 = vsub.s32 0, %v968
        %v970 = vrot.slane %v965, %v969
        %v971 = vlaneseq
        %v972 = vshrl.u32 %v971, 7
        %v973 = vsub.s32 1, %v972
        %v974 = vrot.slane %v965, %v973
        %v977 = vadd.f32 %v963, %v970
        %v978 = vadd.f32 %v964, %v974
        %vm979 = vcmp.ge.f32.partialorder %v977, 0.0
        %vm980 = vcmp.ge.f32.partialorder %v978, 0.0
        %v981 = vmul.f32 %v977, 0.2
        %v982 = vmul.f32 %v978, 0.2
        %v983 = vsel %vm979, %v977, %v981
        %v984 = vsel %vm980, %v978, %v982
        %v985 = vpack.c.bf16 %v983, %v983
        %v986 = vpack.c.bf16 %v984, %v984
        %v989 = vunpack.c.l.b16 %v985
        %v990 = vunpack.c.l.b16 %v986
        %v991 = vpack.c.b16 %v990, %v989
        %993 = vst [vmem:[%s223] sm:$0xff] %v991
      $region40: #{discriminator_forward.12} parent=31 // pred_fallthru
        _
      %p994 = scmp.lt.s32.totalorder %s18, 0
      %s995 = scalar_select %p994, %s18, 0
      %s996 = smul.addr %s995, 2
      %s997 = smul.addr %s996, 4
      %s998 = scalar_lea.vmem %s3, %s997
      // Predicated region
      $region41: #{discriminator_forward.12} parent=31 // pred_check
        %p999 = pneg %p119
      $region42: #{discriminator_forward.12} parent=31 // pred_check_branch
        %1001 = sbr.rel (%p999) target = $region44
      $region43: #{discriminator_forward.12} parent=31 // pred_region
        _
      $region44: #{discriminator_forward.12} parent=31 // pred_fallthru
        _
      // Predicated region
      $region45: #{discriminator_forward.12} parent=31 // pred_check
        %p1002 = pneg %p119
      $region46: #{discriminator_forward.12} parent=31 // pred_check_branch
        %1004 = sbr.rel (%p1002) target = $region48
      $region47: #{discriminator_forward.12} parent=31 // pred_region
        %p1005 = scmp.lt.s32.totalorder %s18, 0
        %s1006 = scalar_select %p1005, %s18, 0
        %s1007 = smul.addr %s1006, 2
        %s1008 = smul.addr %s1007, 4
        %s1009 = scalar_lea.vmem %s3, %s1008
      $region48: #{discriminator_forward.12} parent=31 // pred_fallthru
        _
    $region32: #{discriminator_forward.12} parent=5 // pred_fallthru
      _
    %p1010 = scmp.le.s32.totalorder 2, %s9
    // Predicated region
    $region49: #{discriminator_forward.12} parent=5 // pred_check
      %p1011 = pneg %p1010
    $region50: #{discriminator_forward.12} parent=5 // pred_check_branch
      %1013 = sbr.rel (%p1011) target = $region52
    $region51: #{discriminator_forward.12} parent=5 // pred_region
      %s1014 = ssub.s32 %s9, 2
    $region52: #{discriminator_forward.12} parent=5 // pred_fallthru
      _
  $region6: #{discriminator_forward.12} parent=0 // loop_footer
    %s13 = sadd.s32 1, %s9
  $region7: #{discriminator_forward.12} parent=0 // loop_footer_branch
    %8 = sbr.rel target = $region3
  $region8: #{discriminator_forward.12} parent=0 // loop_exit
    _

// kernel: discriminator_forward.13
$region0: #{discriminator_forward.13}
  #allocation0 [shape = 'u32[]', space=smem, size = 0x4, offset = 0x4, fixed_abs, tag = 'smem constant byte address 0x4 - core index']
  #allocation1 [shape = 'u32[144,128]{1,0:T(1,128)}', space=vmem, size = 0x12000, scoped, tag = 'internal scratch']
  #allocation2 [shape = 'f32[1,1]{1,0:T(1,128)S(1)}', space=vmem, size = 0x200, scoped, tag = 'scoped memory for discriminator_forward.13']
  %s0 = inlined_call_operand.vmem [shape: bf16[2,4,256], index: 0, kind: input, shape index: {}]
  %s1 = inlined_call_operand.vmem [shape: f32[256,1], index: 1, kind: input, shape index: {}]
  %s2 = inlined_call_operand.<no memory space> [shape: f32[1,1], index: 2, kind: input, shape index: {}]
  %s3 = inlined_call_operand.vmem [shape: f32[2,1], index: 3, kind: output, shape index: {}]
  %s4 = sld [smem:[#allocation0]]
  $region22: #{discriminator_forward.13} parent=0
    _
  %s6 = ssub.s32 1, %s4
  %s7 = scalar_select 0, %s6, %s4
  %v8 = vstv %s2
  %9 = vst [vmem:[#allocation2] sm:$0x1] %v8
  // Predicated region
  $region2: #{discriminator_forward.13} parent=0 // pred_check
    _
  $region3: #{discriminator_forward.13} parent=0 // pred_check_branch
    %11 = sbr.rel (0) target = $region5
  $region4: #{discriminator_forward.13} parent=0 // pred_region
    _
  $region5: #{discriminator_forward.13} parent=0 // pred_fallthru
    _
  // Predicated region
  $region6: #{discriminator_forward.13} parent=0 // pred_check
    _
  $region7: #{discriminator_forward.13} parent=0 // pred_check_branch
    %13 = sbr.rel (0) target = $region9
  $region8: #{discriminator_forward.13} parent=0 // pred_region
    _
  $region9: #{discriminator_forward.13} parent=0 // pred_fallthru
    _
  // Predicated region
  $region10: #{discriminator_forward.13} parent=0 // pred_check
    _
  $region11: #{discriminator_forward.13} parent=0 // pred_check_branch
    %15 = sbr.rel (0) target = $region13
  $region12: #{discriminator_forward.13} parent=0 // pred_region
    _
  $region13: #{discriminator_forward.13} parent=0 // pred_fallthru
    _
  %v16 = vld [vmem:[%s0] sm:$0xf]
  %v17 = vld [vmem:[%s0 + $0x4] sm:$0xf]
  %v18 = vunpack.c.l.bf16 %v16
  %v19 = vunpack.c.l.bf16 %v17
  %v22 = vcombine.high %v18, %v18
  %v23 = vcombine.high %v19, %v19
  %vm26 = vcmask 1043456
  %v27 = vsel %vm26, %v18, 0.0
  %v28 = vrot.slane %v27, 4
  %v29 = vadd.f32 %v27, %v28
  %v30 = vrot.slane %v29, 2
  %v31 = vadd.f32 %v29, %v30
  %v32 = vrot.slane %v31, 1
  %v33 = vadd.f32 %v31, %v32
  %v34 = vsel %vm26, %v22, 0.0
  %v35 = vrot.slane %v34, 4
  %v36 = vadd.f32 %v34, %v35
  %v37 = vrot.slane %v36, 2
  %v38 = vadd.f32 %v36, %v37
  %v39 = vrot.slane %v38, 1
  %v40 = vadd.f32 %v38, %v39
  %v41 = vsel %vm26, %v19, 0.0
  %v42 = vrot.slane %v41, 4
  %v43 = vadd.f32 %v41, %v42
  %v44 = vrot.slane %v43, 2
  %v45 = vadd.f32 %v43, %v44
  %v46 = vrot.slane %v45, 1
  %v47 = vadd.f32 %v45, %v46
  %v48 = vsel %vm26, %v23, 0.0
  %v49 = vrot.slane %v48, 4
  %v50 = vadd.f32 %v48, %v49
  %v51 = vrot.slane %v50, 2
  %v52 = vadd.f32 %v50, %v51
  %v53 = vrot.slane %v52, 1
  %v54 = vadd.f32 %v52, %v53
  %v55 = vrcp.pop 4.0
  %v56 = vmul.f32 %v33, %v55
  %v57 = vmul.f32 %v40, %v55
  %v58 = vmul.f32 %v47, %v55
  %v59 = vmul.f32 %v54, %v55
  %v60 = vld [vmem:[%s1] sm:$0xff]
  %v61 = vld [vmem:[%s1 + $0x8] sm:$0xff]
  %v62 = vld [vmem:[%s1 + $0x10] sm:$0xff]
  %v63 = vld [vmem:[%s1 + $0x18] sm:$0xff]
  %v64 = vld [vmem:[%s1 + $0x20] sm:$0xff]
  %v65 = vld [vmem:[%s1 + $0x28] sm:$0xff]
  %v66 = vld [vmem:[%s1 + $0x30] sm:$0xff]
  %v67 = vld [vmem:[%s1 + $0x38] sm:$0xff]
  %v68 = vld [vmem:[%s1 + $0x40] sm:$0xff]
  %v69 = vld [vmem:[%s1 + $0x48] sm:$0xff]
  %v70 = vld [vmem:[%s1 + $0x50] sm:$0xff]
  %v71 = vld [vmem:[%s1 + $0x58] sm:$0xff]
  %v72 = vld [vmem:[%s1 + $0x60] sm:$0xff]
  %v73 = vld [vmem:[%s1 + $0x68] sm:$0xff]
  %v74 = vld [vmem:[%s1 + $0x70] sm:$0xff]
  %v75 = vld [vmem:[%s1 + $0x78] sm:$0xff]
  %v76 = vld [vmem:[%s1 + $0x80] sm:$0xff]
  %v77 = vld [vmem:[%s1 + $0x88] sm:$0xff]
  %v78 = vld [vmem:[%s1 + $0x90] sm:$0xff]
  %v79 = vld [vmem:[%s1 + $0x98] sm:$0xff]
  %v80 = vld [vmem:[%s1 + $0xa0] sm:$0xff]
  %v81 = vld [vmem:[%s1 + $0xa8] sm:$0xff]
  %v82 = vld [vmem:[%s1 + $0xb0] sm:$0xff]
  %v83 = vld [vmem:[%s1 + $0xb8] sm:$0xff]
  %v84 = vld [vmem:[%s1 + $0xc0] sm:$0xff]
  %v85 = vld [vmem:[%s1 + $0xc8] sm:$0xff]
  %v86 = vld [vmem:[%s1 + $0xd0] sm:$0xff]
  %v87 = vld [vmem:[%s1 + $0xd8] sm:$0xff]
  %v88 = vld [vmem:[%s1 + $0xe0] sm:$0xff]
  %v89 = vld [vmem:[%s1 + $0xe8] sm:$0xff]
  %v90 = vld [vmem:[%s1 + $0xf0] sm:$0xff]
  %v91 = vld [vmem:[%s1 + $0xf8] sm:$0xff]
  %v92 = vld [vmem:[#allocation2] sm:$0x1]
  %v94 = vlaneseq
  %v95 = vshrl.u32 %v94, 7
  %v96 = vsub.s32 0, %v95
  %v97 = vrot.slane %v92, %v96
  %vm103 = vcmask 1041409
  %v104 = vsel %vm103, %v58, %v56
  %v105 = vsel %vm103, %v59, %v57
  %108 = vmatprep.subr.mxu0 0.0
  %109 = vmatpush1.msra.mxu0 %v75
  %110 = vmatprep.subr.mxu0 0.0
  %111 = vmatpush1.msra.mxu0 %v74
  %112 = vmatprep.subr.mxu0 0.0
  %113 = vmatpush1.msra.mxu0 %v73
  %114 = vmatprep.subr.mxu0 0.0
  %115 = vmatpush1.msra.mxu0 %v72
  %116 = vmatprep.subr.mxu0 0.0
  %117 = vmatpush1.msra.mxu0 %v71
  %118 = vmatprep.subr.mxu0 0.0
  %119 = vmatpush1.msra.mxu0 %v70
  %120 = vmatprep.subr.mxu0 0.0
  %121 = vmatpush1.msra.mxu0 %v69
  %122 = vmatprep.subr.mxu0 0.0
  %123 = vmatpush1.msra.mxu0 %v68
  %124 = vmatprep.subr.mxu0 0.0
  %125 = vmatpush1.msra.mxu0 %v67
  %126 = vmatprep.subr.mxu0 0.0
  %127 = vmatpush1.msra.mxu0 %v66
  %128 = vmatprep.subr.mxu0 0.0
  %129 = vmatpush1.msra.mxu0 %v65
  %130 = vmatprep.subr.mxu0 0.0
  %131 = vmatpush1.msra.mxu0 %v64
  %132 = vmatprep.subr.mxu0 0.0
  %133 = vmatpush1.msra.mxu0 %v63
  %134 = vmatprep.subr.mxu0 0.0
  %135 = vmatpush1.msra.mxu0 %v62
  %136 = vmatprep.subr.mxu0 0.0
  %137 = vmatpush1.msra.mxu0 %v61
  %138 = vmatprep.subr.mxu0 0.0
  %139 = vmatpush1.msra.mxu0 %v60
  %140 = vmatprep.subr.mxu0 0.0
  %141 = vmatpush2.msra.mxu0 %v91
  %142 = vmatprep.subr.mxu0 0.0
  %143 = vmatpush2.msra.mxu0 %v90
  %144 = vmatprep.subr.mxu0 0.0
  %145 = vmatpush2.msra.mxu0 %v89
  %146 = vmatprep.subr.mxu0 0.0
  %147 = vmatpush2.msra.mxu0 %v88
  %148 = vmatprep.subr.mxu0 0.0
  %149 = vmatpush2.msra.mxu0 %v87
  %150 = vmatprep.subr.mxu0 0.0
  %151 = vmatpush2.msra.mxu0 %v86
  %152 = vmatprep.subr.mxu0 0.0
  %153 = vmatpush2.msra.mxu0 %v85
  %154 = vmatprep.subr.mxu0 0.0
  %155 = vmatpush2.msra.mxu0 %v84
  %156 = vmatprep.subr.mxu0 0.0
  %157 = vmatpush2.msra.mxu0 %v83
  %158 = vmatprep.subr.mxu0 0.0
  %159 = vmatpush2.msra.mxu0 %v82
  %160 = vmatprep.subr.mxu0 0.0
  %161 = vmatpush2.msra.mxu0 %v81
  %162 = vmatprep.subr.mxu0 0.0
  %163 = vmatpush2.msra.mxu0 %v80
  %164 = vmatprep.subr.mxu0 0.0
  %165 = vmatpush2.msra.mxu0 %v79
  %166 = vmatprep.subr.mxu0 0.0
  %167 = vmatpush2.msra.mxu0 %v78
  %168 = vmatprep.subr.mxu0 0.0
  %169 = vmatpush2.msra.mxu0 %v77
  %170 = vmatprep.subr.mxu0 0.0
  %171 = vmatpush2.msra.mxu0 %v76
  %172 = vmatprep.mubr.f32.mxu0 %v105
  %173 = vmatmul.mubr.f32.gmra.mxu0 %v104
  %v174 = vpop.f32.mrf.mxu0
  %v175 = vadd.f32 %v97, %v174
  %v176 = vpop.f32.mrf.mxu0
  %177 = vdwg.mxu0
  %vm178 = vcmask 1024
  %179 = vst.msk [vmem:[%s3] sm:$0x3] %vm178, %v175
  // Predicated region
  $region14: #{discriminator_forward.13} parent=0 // pred_check
    _
  $region15: #{discriminator_forward.13} parent=0 // pred_check_branch
    %181 = sbr.rel (0) target = $region17
  $region16: #{discriminator_forward.13} parent=0 // pred_region
    _
  $region17: #{discriminator_forward.13} parent=0 // pred_fallthru
    _
  // Predicated region
  $region18: #{discriminator_forward.13} parent=0 // pred_check
    _
  $region19: #{discriminator_forward.13} parent=0 // pred_check_branch
    %183 = sbr.rel (0) target = $region21
  $region20: #{discriminator_forward.13} parent=0 // pred_region
    _
  $region21: #{discriminator_forward.13} parent=0 // pred_fallthru
    _

</llo_original>
